<compile_context>
chip_gen: v6e
topology: v6e:2x2x1
jax: 0.10.0
libtpu: 0.0.40
codegen_flags: <defaults>
</compile_context>

<pallas_src>
import math

import jax
import jax.numpy as jnp
from jax import lax
from jax.experimental import pallas as pl
from jax.experimental.pallas import tpu as pltpu


def _leaky_relu(x, slope=0.01):
    return jnp.where(x > 0, x, slope * x)


def _round_up(x, m):
    return (x + m - 1) // m * m


_UNROLL_T_MAX = 16          # fully unroll the recurrence only for small T


# ----------------------------------------------------------------------------
# Fused kernel: LSTM stack + fc1 + single-head MHA + fc2
# ----------------------------------------------------------------------------
def _make_fused_kernel(L, T, B, In, H, HP, OP, unroll_full):
    TB = T * B
    scale = 1.0 / math.sqrt(float(H))          # python float -> no captured const
    bf16 = jnp.bfloat16
    f32 = jnp.float32

    def kernel(*refs):
        x_ref, h0_ref, c0_ref = refs[0:3]
        lstm_refs = refs[3:3 + 3 * L]
        (w1_ref, b1_ref, wq_ref, bq_ref, wk_ref, bk_ref,
         wv_ref, bv_ref, wo_ref, bo_ref, w2_ref, b2_ref) = refs[3 + 3 * L:
                                                                3 + 3 * L + 12]
        out_ref, hout_ref, cout_ref = refs[3 + 3 * L + 12:3 + 3 * L + 15]
        scratch = refs[3 + 3 * L + 15:]
        xg_ref = scratch[0]                              # (T, B, 4*HP) f32
        y_ref = None if unroll_full else scratch[1]      # (T, B, HP)  bf16

        # ------------------------------ LSTM stack ---------------------------
        cur = x_ref[...]                                 # (T, B, In) bf16
        feat = In
        for l in range(L):
            wih_ref = lstm_refs[3 * l + 0]               # (feat_pad, 4*HP) bf16
            whh_ref = lstm_refs[3 * l + 1]               # (HP, 4*HP)       bf16
            b_ref = lstm_refs[3 * l + 2]                 # (1, 4*HP)        f32

            # Hoisted input projection (one bf16 matmul off the serial chain),
            # staged in VMEM scratch so it is not live across the recurrence.
            xg = jnp.dot(cur.reshape(TB, feat), wih_ref[...],
                         preferred_element_type=f32) + b_ref[...]
            xg_ref[...] = xg.reshape(T, B, 4 * HP)

            h = h0_ref[l]                                # (B, HP) f32
            c = c0_ref[l]                                # (B, HP) f32

            def _cell(xg_t, h, c):
                gates = xg_t + jnp.dot(h.astype(bf16), whh_ref[...],
                                       preferred_element_type=f32)
                i = jax.nn.sigmoid(gates[:, 0 * HP:1 * HP])
                f = jax.nn.sigmoid(gates[:, 1 * HP:2 * HP])
                g = jnp.tanh(gates[:, 2 * HP:3 * HP])
                o = jax.nn.sigmoid(gates[:, 3 * HP:4 * HP])
                c = f * c + i * g
                h = o * jnp.tanh(c)
                return h, c

            if unroll_full:
                hs = []
                for t in range(T):
                    h, c = _cell(xg_ref[t], h, c)
                    hs.append(h.astype(bf16))
                cur = jnp.stack(hs, axis=0)              # (T,B,HP), one aligned value
            else:
                def step(t, carry):
                    hh, cc = carry
                    hh, cc = _cell(xg_ref[t], hh, cc)
                    y_ref[t] = hh.astype(bf16)           # aligned per-t slab
                    return hh, cc
                h, c = lax.fori_loop(0, T, step, (h, c), unroll=4)
                cur = y_ref[...]

            hout_ref[l] = h
            cout_ref[l] = c
            feat = HP

        # -------------------- fc1 + 1-head attention + fc2 -------------------
        y2 = cur.reshape(TB, HP)                         # bf16, lane-dense
        a = _leaky_relu(jnp.dot(y2, w1_ref[...],
                                preferred_element_type=f32) + b1_ref[...])
        a16 = a.astype(bf16)                             # q = k = v = leaky(fc1(x))
        qp = jnp.dot(a16, wq_ref[...], preferred_element_type=f32) + bq_ref[...]
        kp = jnp.dot(a16, wk_ref[...], preferred_element_type=f32) + bk_ref[...]
        vp = jnp.dot(a16, wv_ref[...], preferred_element_type=f32) + bv_ref[...]

        # nn.MultiheadAttention sees the batch_first LSTM output (B,T,H) as
        # (L=B, N=T, E=H): attention mixes the BATCH axis independently per
        # timestep -> T-batched (B,B) softmax, no dense (TB,TB) mask.
        q3 = (qp * scale).astype(bf16).reshape(T, B, HP)
        k3 = kp.astype(bf16).reshape(T, B, HP)
        v3 = vp.astype(bf16).reshape(T, B, HP)
        s = jnp.einsum('tbh,tch->tbc', q3, k3, preferred_element_type=f32)
        m = jnp.max(s, axis=-1, keepdims=True)
        e = jnp.exp(s - m)
        attn = e * pl.reciprocal(jnp.sum(e, axis=-1, keepdims=True), approx=True)
        o3 = jnp.einsum('tbc,tch->tbh', attn.astype(bf16), v3,
                        preferred_element_type=f32)      # (T,B,HP)

        o = jnp.dot(o3.reshape(TB, HP).astype(bf16), wo_ref[...],
                    preferred_element_type=f32) + bo_ref[...]
        out = _leaky_relu(jnp.dot(o.astype(bf16), w2_ref[...],
                                  preferred_element_type=f32) + b2_ref[...])
        out_ref[...] = out.reshape(T, B, OP)

    return kernel


# ----------------------------------------------------------------------------
# Wrapper: parameter padding / layout prep + pallas_call
# ----------------------------------------------------------------------------
def lstm_attention_decoder(x, prev_hidden, params):
    """x: (B, T, In); prev_hidden = (h0, c0), each (L, B, H).
    Returns (out (B, T, O), (h_out, c_out))."""
    f32, bf16 = jnp.float32, jnp.bfloat16
    lstm_raw = params['lstm']
    L = len(lstm_raw)
    H = lstm_raw[0]['whh'].shape[1]
    O = params['w2'].shape[0]
    B, T, In = x.shape
    HP = _round_up(H, 128)        # lane-dense hidden / per-gate width
    OP = _round_up(O, 128)        # lane-dense output
    TB = T * B
    h0, c0 = prev_hidden
    unroll_full = T <= _UNROLL_T_MAX

    def pad_gate_cols(m):         # (rows, 4H) -> (rows, 4*HP), zero-padded gates
        rows = m.shape[0]
        m = m.reshape(rows, 4, H)
        m = jnp.pad(m, ((0, 0), (0, 0), (0, HP - H)))
        return m.reshape(rows, 4 * HP)

    def pad_mat(m, rp, cp):       # zero-pad a 2-D matrix to (rp, cp)
        return jnp.pad(m, ((0, rp - m.shape[0]), (0, cp - m.shape[1])))

    lstm_args = []
    for l, p in enumerate(lstm_raw):
        wih = pad_gate_cols(p['wih'].T.astype(f32))          # (in_l, 4HP)
        if l > 0:                                            # deeper layers see HP-wide y
            wih = pad_mat(wih, HP, 4 * HP)
        whh = pad_mat(pad_gate_cols(p['whh'].T.astype(f32)), HP, 4 * HP)
        b = pad_gate_cols((p['bih'] + p['bhh']).reshape(1, 4 * H).astype(f32))
        lstm_args += [wih.astype(bf16), whh.astype(bf16), b]  # biases stay f32

    wq, wk, wv = jnp.split(params['in_proj_w'], 3, axis=0)
    bq, bk, bv = jnp.split(params['in_proj_b'], 3)

    def padb(v, width):
        return jnp.pad(v.reshape(1, -1).astype(f32), ((0, 0), (0, width - v.shape[0])))

    attn_args = [
        pad_mat(params['w1'].T.astype(f32), HP, HP).astype(bf16), padb(params['b1'], HP),
        pad_mat(wq.T.astype(f32), HP, HP).astype(bf16), padb(bq, HP),
        pad_mat(wk.T.astype(f32), HP, HP).astype(bf16), padb(bk, HP),
        pad_mat(wv.T.astype(f32), HP, HP).astype(bf16), padb(bv, HP),
        pad_mat(params['out_proj_w'].T.astype(f32), HP, HP).astype(bf16),
        padb(params['out_proj_b'], HP),
        pad_mat(params['w2'].T.astype(f32), HP, OP).astype(bf16), padb(params['b2'], OP),
    ]

    # time-major activations: (T, B, feature)
    x3 = jnp.transpose(x, (1, 0, 2)).astype(bf16)
    h0_p = jnp.pad(h0.astype(f32), ((0, 0), (0, 0), (0, HP - H)))
    c0_p = jnp.pad(c0.astype(f32), ((0, 0), (0, 0), (0, HP - H)))

    args = [x3, h0_p, c0_p] + lstm_args + attn_args
    n_in = len(args)

    scratch_shapes = [pltpu.VMEM((T, B, 4 * HP), f32)]           # staged x-projection
    if not unroll_full:
        scratch_shapes.append(pltpu.VMEM((T, B, HP), bf16))      # layer output buffer

    # ------- explicit VMEM budget + cost estimate (no grid: all co-resident) --
    io_bytes = sum(int(a.size) * a.dtype.itemsize for a in args)
    out_bytes = (T * B * OP + 2 * L * B * HP) * 4
    scratch_bytes = T * B * 4 * HP * 4 + (0 if unroll_full else T * B * HP * 2)
    work_bytes = TB * 4 * HP * 4 + 8 * TB * HP * 4 + 4 * T * B * B * 4
    vmem_limit = int(min(96 * 2 ** 20,
                         max(8 * 2 ** 20,
                             2 * (io_bytes + out_bytes + scratch_bytes + work_bytes))))

    flops = 0
    feat = In
    for _ in range(L):
        flops += 2 * TB * feat * 4 * HP + 2 * TB * HP * 4 * HP + 10 * TB * HP
        feat = HP
    flops += 5 * 2 * TB * HP * HP + 2 * 2 * T * B * B * HP + 2 * TB * HP * OP
    transcendentals = L * TB * 5 * HP + T * B * B
    cost = pl.CostEstimate(flops=int(flops), transcendentals=int(transcendentals),
                           bytes_accessed=int(io_bytes + out_bytes))

    kernel = _make_fused_kernel(L, T, B, In, H, HP, OP, unroll_full)
    out3, h_out_p, c_out_p = pl.pallas_call(
        kernel,
        out_shape=(jax.ShapeDtypeStruct((T, B, OP), f32),
                   jax.ShapeDtypeStruct((L, B, HP), f32),
                   jax.ShapeDtypeStruct((L, B, HP), f32)),
        in_specs=[pl.BlockSpec(memory_space=pltpu.MemorySpace.VMEM)] * n_in,
        out_specs=tuple(pl.BlockSpec(memory_space=pltpu.MemorySpace.VMEM)
                        for _ in range(3)),
        scratch_shapes=scratch_shapes,
        input_output_aliases={1: 1, 2: 2},          # h0 -> h_out, c0 -> c_out
        compiler_params=pltpu.CompilerParams(vmem_limit_bytes=vmem_limit),
        cost_estimate=cost,
    )(*args)

    out = out3[:, :, :O].transpose(1, 0, 2)          # (B, T, O)
    return out, (h_out_p[:, :, :H], c_out_p[:, :, :H])


# ----------------------------------------------------------------------------
# Synthetic parameter init (PyTorch nn.Module shapes)
# ----------------------------------------------------------------------------
def init_params(key, input_size, hidden_size, num_layers, output_size):
    keys = iter(jax.random.split(key, 64))

    def rand(shape, scale=0.1):
        return (scale * jax.random.normal(next(keys), shape)).astype(jnp.float32)

    lstm = []
    for l in range(num_layers):
        in_f = input_size if l == 0 else hidden_size
        lstm.append(dict(
            wih=rand((4 * hidden_size, in_f)),       # nn.LSTM weight_ih_l{l}
            whh=rand((4 * hidden_size, hidden_size)),
            bih=rand((4 * hidden_size,)),
            bhh=rand((4 * hidden_size,)),
        ))
    return dict(
        lstm=lstm,
        w1=rand((hidden_size, hidden_size)), b1=rand((hidden_size,)),     # fc1
        in_proj_w=rand((3 * hidden_size, hidden_size)),                   # MHA in_proj
        in_proj_b=rand((3 * hidden_size,)),
        out_proj_w=rand((hidden_size, hidden_size)),                      # MHA out_proj
        out_proj_b=rand((hidden_size,)),
        w2=rand((output_size, hidden_size)), b2=rand((output_size,)),     # fc2
    )


# ----------------------------------------------------------------------------
# Pure-JAX reference (correctness baseline, f32)
# ----------------------------------------------------------------------------
def reference_forward(x, prev_hidden, params):
    h0_all, c0_all = prev_hidden
    B, T, _ = x.shape
    cur = x
    h_outs, c_outs = [], []
    for l, p in enumerate(params['lstm']):
        H = p['whh'].shape[1]
        h, c = h0_all[l], c0_all[l]
        ys = []
        for t in range(T):
            gates = cur[:, t, :] @ p['wih'].T + h @ p['whh'].T + p['bih'] + p['bhh']
            i = jax.nn.sigmoid(gates[:, :H]); f = jax.nn.sigmoid(gates[:, H:2 * H])
            g = jnp.tanh(gates[:, 2 * H:3 * H]); o = jax.nn.sigmoid(gates[:, 3 * H:])
            c = f * c + i * g
            h = o * jnp.tanh(c)
            ys.append(h)
        cur = jnp.stack(ys, axis=1)
        h_outs.append(h); c_outs.append(c)
    H = params['w1'].shape[0]
    a = _leaky_relu(cur @ params['w1'].T + params['b1'])          # q = k = v
    wq, wk, wv = jnp.split(params['in_proj_w'], 3, axis=0)
    bq, bk, bv = jnp.split(params['in_proj_b'], 3)
    qp = a @ wq.T + bq; kp = a @ wk.T + bk; vp = a @ wv.T + bv
    scores = jnp.einsum('btd,ctd->tbc', qp, kp) / jnp.sqrt(jnp.float32(H))
    attn = jax.nn.softmax(scores, axis=-1)
    o = jnp.einsum('tbc,ctd->btd', attn, vp)
    o = o @ params['out_proj_w'].T + params['out_proj_b']
    out = _leaky_relu(o @ params['w2'].T + params['b2'])
    return out, (jnp.stack(h_outs), jnp.stack(c_outs))


if __name__ == "__main__":
    B, T, IN, H, O, L = 2, 8, 4, 32, 8, 2

    key = jax.random.PRNGKey(0)
    kx, kh, kc, kp = jax.random.split(key, 4)
    x = jax.random.normal(kx, (B, T, IN), dtype=jnp.float32)
    h0 = jax.random.normal(kh, (L, B, H), dtype=jnp.float32)
    c0 = jax.random.normal(kc, (L, B, H), dtype=jnp.float32)
    params = init_params(kp, IN, H, L, O)

    out, (h_out, c_out) = lstm_attention_decoder(x, (h0, c0), params)
    jax.block_until_ready((out, h_out, c_out))

    ref_out, (ref_h, ref_c) = reference_forward(x, (h0, c0), params)
    assert out.shape == (B, T, O)
    assert h_out.shape == (L, B, H) and c_out.shape == (L, B, H)
    # bf16 matmuls with f32 accumulation (per perf review); observed error is
    # O(1e-3), well within the 2e-2 tolerance.
    assert jnp.allclose(out, ref_out, rtol=2e-2, atol=2e-2), \
        float(jnp.max(jnp.abs(out - ref_out)))
    assert jnp.allclose(h_out, ref_h, rtol=2e-2, atol=2e-2), \
        float(jnp.max(jnp.abs(h_out - ref_h)))
    assert jnp.allclose(c_out, ref_c, rtol=2e-2, atol=2e-2), \
        float(jnp.max(jnp.abs(c_out - ref_c)))

    print("KERNEL_OK")
</pallas_src>

<mosaic_0001>
module attributes {stable_mosaic.version = 11 : i64} {
  func.func @kernel(%arg0: memref<8x2x4xbf16, #tpu.memory_space<vmem>>, %arg1: memref<2x2x128xf32, #tpu.memory_space<vmem>>, %arg2: memref<2x2x128xf32, #tpu.memory_space<vmem>>, %arg3: memref<4x512xbf16, #tpu.memory_space<vmem>>, %arg4: memref<128x512xbf16, #tpu.memory_space<vmem>>, %arg5: memref<1x512xf32, #tpu.memory_space<vmem>>, %arg6: memref<128x512xbf16, #tpu.memory_space<vmem>>, %arg7: memref<128x512xbf16, #tpu.memory_space<vmem>>, %arg8: memref<1x512xf32, #tpu.memory_space<vmem>>, %arg9: memref<128x128xbf16, #tpu.memory_space<vmem>>, %arg10: memref<1x128xf32, #tpu.memory_space<vmem>>, %arg11: memref<128x128xbf16, #tpu.memory_space<vmem>>, %arg12: memref<1x128xf32, #tpu.memory_space<vmem>>, %arg13: memref<128x128xbf16, #tpu.memory_space<vmem>>, %arg14: memref<1x128xf32, #tpu.memory_space<vmem>>, %arg15: memref<128x128xbf16, #tpu.memory_space<vmem>>, %arg16: memref<1x128xf32, #tpu.memory_space<vmem>>, %arg17: memref<128x128xbf16, #tpu.memory_space<vmem>>, %arg18: memref<1x128xf32, #tpu.memory_space<vmem>>, %arg19: memref<128x128xbf16, #tpu.memory_space<vmem>>, %arg20: memref<1x128xf32, #tpu.memory_space<vmem>>, %arg21: memref<8x2x128xf32, #tpu.memory_space<vmem>>, %arg22: memref<2x2x128xf32, #tpu.memory_space<vmem>>, %arg23: memref<2x2x128xf32, #tpu.memory_space<vmem>>, %arg24: memref<8x2x512xf32, #tpu.memory_space<vmem>>) attributes {dimension_semantics = [], scalar_prefetch = 0 : i64, scratch_operands = 1 : i64, tpu.core_type = #tpu.core_type<tc>} {
    %c0 = arith.constant 0 : index
    %c0_0 = arith.constant 0 : index
    %c0_1 = arith.constant 0 : index
    %0 = vector.load %arg0[%c0, %c0_0, %c0_1] : memref<8x2x4xbf16, #tpu.memory_space<vmem>>, vector<8x2x4xbf16>
    %1 = vector.shape_cast %0 : vector<8x2x4xbf16> to vector<16x4xbf16>
    %c0_2 = arith.constant 0 : index
    %c0_3 = arith.constant 0 : index
    %2 = vector.load %arg3[%c0_2, %c0_3] : memref<4x512xbf16, #tpu.memory_space<vmem>>, vector<4x512xbf16>
    %cst = arith.constant dense<0.000000e+00> : vector<16x512xf32>
    %3 = tpu.matmul %1, %2, %cst {dimension_numbers = #tpu.dot_dimension_numbers<[1], [0], [0], [1], [0, 0, 1, 1], [], []>} : vector<16x4xbf16>, vector<4x512xbf16>, vector<16x512xf32> -> vector<16x512xf32>
    %c0_4 = arith.constant 0 : index
    %c0_5 = arith.constant 0 : index
    %4 = vector.load %arg5[%c0_4, %c0_5] : memref<1x512xf32, #tpu.memory_space<vmem>>, vector<1x512xf32>
    %5 = vector.broadcast %4 : vector<1x512xf32> to vector<16x512xf32>
    %6 = arith.addf %3, %5 : vector<16x512xf32>
    %7 = vector.shape_cast %6 : vector<16x512xf32> to vector<8x2x512xf32>
    %c0_6 = arith.constant 0 : index
    %c0_7 = arith.constant 0 : index
    %c0_8 = arith.constant 0 : index
    %8 = vector.load %arg24[%c0_6, %c0_7, %c0_8] : memref<8x2x512xf32, #tpu.memory_space<vmem>>, vector<8x2x512xf32>
    tpu.vector_store %arg24[%c0_6, %c0_7, %c0_8], %7 {strides = array<i32>} : memref<8x2x512xf32, #tpu.memory_space<vmem>>, vector<8x2x512xf32>,
    %c0_9 = arith.constant 0 : index
    %c0_10 = arith.constant 0 : index
    %c0_11 = arith.constant 0 : index
    %9 = vector.load %arg1[%c0_9, %c0_10, %c0_11] : memref<2x2x128xf32, #tpu.memory_space<vmem>>, vector<1x2x128xf32>
    %10 = vector.shape_cast %9 : vector<1x2x128xf32> to vector<2x128xf32>
    %c0_12 = arith.constant 0 : index
    %c0_13 = arith.constant 0 : index
    %c0_14 = arith.constant 0 : index
    %11 = vector.load %arg2[%c0_12, %c0_13, %c0_14] : memref<2x2x128xf32, #tpu.memory_space<vmem>>, vector<1x2x128xf32>
    %12 = vector.shape_cast %11 : vector<1x2x128xf32> to vector<2x128xf32>
    %c0_15 = arith.constant 0 : index
    %c0_16 = arith.constant 0 : index
    %c0_17 = arith.constant 0 : index
    %13 = vector.load %arg24[%c0_15, %c0_16, %c0_17] : memref<8x2x512xf32, #tpu.memory_space<vmem>>, vector<1x2x512xf32>
    %14 = vector.shape_cast %13 : vector<1x2x512xf32> to vector<2x512xf32>
    %15 = arith.truncf %10 : vector<2x128xf32> to vector<2x128xbf16>
    %c0_18 = arith.constant 0 : index
    %c0_19 = arith.constant 0 : index
    %16 = vector.load %arg4[%c0_18, %c0_19] : memref<128x512xbf16, #tpu.memory_space<vmem>>, vector<128x512xbf16>
    %cst_20 = arith.constant dense<0.000000e+00> : vector<2x512xf32>
    %17 = tpu.matmul %15, %16, %cst_20 {dimension_numbers = #tpu.dot_dimension_numbers<[1], [0], [0], [1], [0, 0, 1, 1], [], []>} : vector<2x128xbf16>, vector<128x512xbf16>, vector<2x512xf32> -> vector<2x512xf32>
    %18 = arith.addf %14, %17 : vector<2x512xf32>
    %19 = vector.extract_strided_slice %18 {offsets = [0, 0], sizes = [2, 128], strides = [1, 1]} : vector<2x512xf32> to vector<2x128xf32>
    %20 = arith.negf %19 : vector<2x128xf32>
    %21 = math.exp %20 : vector<2x128xf32>
    %cst_21 = arith.constant 1.000000e+00 : f32
    %22 = vector.broadcast %cst_21 : f32 to vector<2x128xf32>
    %23 = arith.addf %22, %21 : vector<2x128xf32>
    %24 = arith.divf %22, %23 : vector<2x128xf32>
    %25 = vector.extract_strided_slice %18 {offsets = [0, 128], sizes = [2, 128], strides = [1, 1]} : vector<2x512xf32> to vector<2x128xf32>
    %26 = arith.negf %25 : vector<2x128xf32>
    %27 = math.exp %26 : vector<2x128xf32>
    %cst_22 = arith.constant 1.000000e+00 : f32
    %28 = vector.broadcast %cst_22 : f32 to vector<2x128xf32>
    %29 = arith.addf %28, %27 : vector<2x128xf32>
    %30 = arith.divf %28, %29 : vector<2x128xf32>
    %31 = vector.extract_strided_slice %18 {offsets = [0, 256], sizes = [2, 128], strides = [1, 1]} : vector<2x512xf32> to vector<2x128xf32>
    %32 = math.tanh %31 : vector<2x128xf32>
    %33 = vector.extract_strided_slice %18 {offsets = [0, 384], sizes = [2, 128], strides = [1, 1]} : vector<2x512xf32> to vector<2x128xf32>
    %34 = arith.negf %33 : vector<2x128xf32>
    %35 = math.exp %34 : vector<2x128xf32>
    %cst_23 = arith.constant 1.000000e+00 : f32
    %36 = vector.broadcast %cst_23 : f32 to vector<2x128xf32>
    %37 = arith.addf %36, %35 : vector<2x128xf32>
    %38 = arith.divf %36, %37 : vector<2x128xf32>
    %39 = arith.mulf %30, %12 : vector<2x128xf32>
    %40 = arith.mulf %24, %32 : vector<2x128xf32>
    %41 = arith.addf %39, %40 : vector<2x128xf32>
    %42 = math.tanh %41 : vector<2x128xf32>
    %43 = arith.mulf %38, %42 : vector<2x128xf32>
    %44 = arith.truncf %43 : vector<2x128xf32> to vector<2x128xbf16>
    %c1 = arith.constant 1 : index
    %c0_24 = arith.constant 0 : index
    %c0_25 = arith.constant 0 : index
    %45 = vector.load %arg24[%c1, %c0_24, %c0_25] : memref<8x2x512xf32, #tpu.memory_space<vmem>>, vector<1x2x512xf32>
    %46 = vector.shape_cast %45 : vector<1x2x512xf32> to vector<2x512xf32>
    %47 = arith.truncf %43 : vector<2x128xf32> to vector<2x128xbf16>
    %c0_26 = arith.constant 0 : index
    %c0_27 = arith.constant 0 : index
    %48 = vector.load %arg4[%c0_26, %c0_27] : memref<128x512xbf16, #tpu.memory_space<vmem>>, vector<128x512xbf16>
    %cst_28 = arith.constant dense<0.000000e+00> : vector<2x512xf32>
    %49 = tpu.matmul %47, %48, %cst_28 {dimension_numbers = #tpu.dot_dimension_numbers<[1], [0], [0], [1], [0, 0, 1, 1], [], []>} : vector<2x128xbf16>, vector<128x512xbf16>, vector<2x512xf32> -> vector<2x512xf32>
    %50 = arith.addf %46, %49 : vector<2x512xf32>
    %51 = vector.extract_strided_slice %50 {offsets = [0, 0], sizes = [2, 128], strides = [1, 1]} : vector<2x512xf32> to vector<2x128xf32>
    %52 = arith.negf %51 : vector<2x128xf32>
    %53 = math.exp %52 : vector<2x128xf32>
    %cst_29 = arith.constant 1.000000e+00 : f32
    %54 = vector.broadcast %cst_29 : f32 to vector<2x128xf32>
    %55 = arith.addf %54, %53 : vector<2x128xf32>
    %56 = arith.divf %54, %55 : vector<2x128xf32>
    %57 = vector.extract_strided_slice %50 {offsets = [0, 128], sizes = [2, 128], strides = [1, 1]} : vector<2x512xf32> to vector<2x128xf32>
    %58 = arith.negf %57 : vector<2x128xf32>
    %59 = math.exp %58 : vector<2x128xf32>
    %cst_30 = arith.constant 1.000000e+00 : f32
    %60 = vector.broadcast %cst_30 : f32 to vector<2x128xf32>
    %61 = arith.addf %60, %59 : vector<2x128xf32>
    %62 = arith.divf %60, %61 : vector<2x128xf32>
    %63 = vector.extract_strided_slice %50 {offsets = [0, 256], sizes = [2, 128], strides = [1, 1]} : vector<2x512xf32> to vector<2x128xf32>
    %64 = math.tanh %63 : vector<2x128xf32>
    %65 = vector.extract_strided_slice %50 {offsets = [0, 384], sizes = [2, 128], strides = [1, 1]} : vector<2x512xf32> to vector<2x128xf32>
    %66 = arith.negf %65 : vector<2x128xf32>
    %67 = math.exp %66 : vector<2x128xf32>
    %cst_31 = arith.constant 1.000000e+00 : f32
    %68 = vector.broadcast %cst_31 : f32 to vector<2x128xf32>
    %69 = arith.addf %68, %67 : vector<2x128xf32>
    %70 = arith.divf %68, %69 : vector<2x128xf32>
    %71 = arith.mulf %62, %41 : vector<2x128xf32>
    %72 = arith.mulf %56, %64 : vector<2x128xf32>
    %73 = arith.addf %71, %72 : vector<2x128xf32>
    %74 = math.tanh %73 : vector<2x128xf32>
    %75 = arith.mulf %70, %74 : vector<2x128xf32>
    %76 = arith.truncf %75 : vector<2x128xf32> to vector<2x128xbf16>
    %c2 = arith.constant 2 : index
    %c0_32 = arith.constant 0 : index
    %c0_33 = arith.constant 0 : index
    %77 = vector.load %arg24[%c2, %c0_32, %c0_33] : memref<8x2x512xf32, #tpu.memory_space<vmem>>, vector<1x2x512xf32>
    %78 = vector.shape_cast %77 : vector<1x2x512xf32> to vector<2x512xf32>
    %79 = arith.truncf %75 : vector<2x128xf32> to vector<2x128xbf16>
    %c0_34 = arith.constant 0 : index
    %c0_35 = arith.constant 0 : index
    %80 = vector.load %arg4[%c0_34, %c0_35] : memref<128x512xbf16, #tpu.memory_space<vmem>>, vector<128x512xbf16>
    %cst_36 = arith.constant dense<0.000000e+00> : vector<2x512xf32>
    %81 = tpu.matmul %79, %80, %cst_36 {dimension_numbers = #tpu.dot_dimension_numbers<[1], [0], [0], [1], [0, 0, 1, 1], [], []>} : vector<2x128xbf16>, vector<128x512xbf16>, vector<2x512xf32> -> vector<2x512xf32>
    %82 = arith.addf %78, %81 : vector<2x512xf32>
    %83 = vector.extract_strided_slice %82 {offsets = [0, 0], sizes = [2, 128], strides = [1, 1]} : vector<2x512xf32> to vector<2x128xf32>
    %84 = arith.negf %83 : vector<2x128xf32>
    %85 = math.exp %84 : vector<2x128xf32>
    %cst_37 = arith.constant 1.000000e+00 : f32
    %86 = vector.broadcast %cst_37 : f32 to vector<2x128xf32>
    %87 = arith.addf %86, %85 : vector<2x128xf32>
    %88 = arith.divf %86, %87 : vector<2x128xf32>
    %89 = vector.extract_strided_slice %82 {offsets = [0, 128], sizes = [2, 128], strides = [1, 1]} : vector<2x512xf32> to vector<2x128xf32>
    %90 = arith.negf %89 : vector<2x128xf32>
    %91 = math.exp %90 : vector<2x128xf32>
    %cst_38 = arith.constant 1.000000e+00 : f32
    %92 = vector.broadcast %cst_38 : f32 to vector<2x128xf32>
    %93 = arith.addf %92, %91 : vector<2x128xf32>
    %94 = arith.divf %92, %93 : vector<2x128xf32>
    %95 = vector.extract_strided_slice %82 {offsets = [0, 256], sizes = [2, 128], strides = [1, 1]} : vector<2x512xf32> to vector<2x128xf32>
    %96 = math.tanh %95 : vector<2x128xf32>
    %97 = vector.extract_strided_slice %82 {offsets = [0, 384], sizes = [2, 128], strides = [1, 1]} : vector<2x512xf32> to vector<2x128xf32>
    %98 = arith.negf %97 : vector<2x128xf32>
    %99 = math.exp %98 : vector<2x128xf32>
    %cst_39 = arith.constant 1.000000e+00 : f32
    %100 = vector.broadcast %cst_39 : f32 to vector<2x128xf32>
    %101 = arith.addf %100, %99 : vector<2x128xf32>
    %102 = arith.divf %100, %101 : vector<2x128xf32>
    %103 = arith.mulf %94, %73 : vector<2x128xf32>
    %104 = arith.mulf %88, %96 : vector<2x128xf32>
    %105 = arith.addf %103, %104 : vector<2x128xf32>
    %106 = math.tanh %105 : vector<2x128xf32>
    %107 = arith.mulf %102, %106 : vector<2x128xf32>
    %108 = arith.truncf %107 : vector<2x128xf32> to vector<2x128xbf16>
    %c3 = arith.constant 3 : index
    %c0_40 = arith.constant 0 : index
    %c0_41 = arith.constant 0 : index
    %109 = vector.load %arg24[%c3, %c0_40, %c0_41] : memref<8x2x512xf32, #tpu.memory_space<vmem>>, vector<1x2x512xf32>
    %110 = vector.shape_cast %109 : vector<1x2x512xf32> to vector<2x512xf32>
    %111 = arith.truncf %107 : vector<2x128xf32> to vector<2x128xbf16>
    %c0_42 = arith.constant 0 : index
    %c0_43 = arith.constant 0 : index
    %112 = vector.load %arg4[%c0_42, %c0_43] : memref<128x512xbf16, #tpu.memory_space<vmem>>, vector<128x512xbf16>
    %cst_44 = arith.constant dense<0.000000e+00> : vector<2x512xf32>
    %113 = tpu.matmul %111, %112, %cst_44 {dimension_numbers = #tpu.dot_dimension_numbers<[1], [0], [0], [1], [0, 0, 1, 1], [], []>} : vector<2x128xbf16>, vector<128x512xbf16>, vector<2x512xf32> -> vector<2x512xf32>
    %114 = arith.addf %110, %113 : vector<2x512xf32>
    %115 = vector.extract_strided_slice %114 {offsets = [0, 0], sizes = [2, 128], strides = [1, 1]} : vector<2x512xf32> to vector<2x128xf32>
    %116 = arith.negf %115 : vector<2x128xf32>
    %117 = math.exp %116 : vector<2x128xf32>
    %cst_45 = arith.constant 1.000000e+00 : f32
    %118 = vector.broadcast %cst_45 : f32 to vector<2x128xf32>
    %119 = arith.addf %118, %117 : vector<2x128xf32>
    %120 = arith.divf %118, %119 : vector<2x128xf32>
    %121 = vector.extract_strided_slice %114 {offsets = [0, 128], sizes = [2, 128], strides = [1, 1]} : vector<2x512xf32> to vector<2x128xf32>
    %122 = arith.negf %121 : vector<2x128xf32>
    %123 = math.exp %122 : vector<2x128xf32>
    %cst_46 = arith.constant 1.000000e+00 : f32
    %124 = vector.broadcast %cst_46 : f32 to vector<2x128xf32>
    %125 = arith.addf %124, %123 : vector<2x128xf32>
    %126 = arith.divf %124, %125 : vector<2x128xf32>
    %127 = vector.extract_strided_slice %114 {offsets = [0, 256], sizes = [2, 128], strides = [1, 1]} : vector<2x512xf32> to vector<2x128xf32>
    %128 = math.tanh %127 : vector<2x128xf32>
    %129 = vector.extract_strided_slice %114 {offsets = [0, 384], sizes = [2, 128], strides = [1, 1]} : vector<2x512xf32> to vector<2x128xf32>
    %130 = arith.negf %129 : vector<2x128xf32>
    %131 = math.exp %130 : vector<2x128xf32>
    %cst_47 = arith.constant 1.000000e+00 : f32
    %132 = vector.broadcast %cst_47 : f32 to vector<2x128xf32>
    %133 = arith.addf %132, %131 : vector<2x128xf32>
    %134 = arith.divf %132, %133 : vector<2x128xf32>
    %135 = arith.mulf %126, %105 : vector<2x128xf32>
    %136 = arith.mulf %120, %128 : vector<2x128xf32>
    %137 = arith.addf %135, %136 : vector<2x128xf32>
    %138 = math.tanh %137 : vector<2x128xf32>
    %139 = arith.mulf %134, %138 : vector<2x128xf32>
    %140 = arith.truncf %139 : vector<2x128xf32> to vector<2x128xbf16>
    %c4 = arith.constant 4 : index
    %c0_48 = arith.constant 0 : index
    %c0_49 = arith.constant 0 : index
    %141 = vector.load %arg24[%c4, %c0_48, %c0_49] : memref<8x2x512xf32, #tpu.memory_space<vmem>>, vector<1x2x512xf32>
    %142 = vector.shape_cast %141 : vector<1x2x512xf32> to vector<2x512xf32>
    %143 = arith.truncf %139 : vector<2x128xf32> to vector<2x128xbf16>
    %c0_50 = arith.constant 0 : index
    %c0_51 = arith.constant 0 : index
    %144 = vector.load %arg4[%c0_50, %c0_51] : memref<128x512xbf16, #tpu.memory_space<vmem>>, vector<128x512xbf16>
    %cst_52 = arith.constant dense<0.000000e+00> : vector<2x512xf32>
    %145 = tpu.matmul %143, %144, %cst_52 {dimension_numbers = #tpu.dot_dimension_numbers<[1], [0], [0], [1], [0, 0, 1, 1], [], []>} : vector<2x128xbf16>, vector<128x512xbf16>, vector<2x512xf32> -> vector<2x512xf32>
    %146 = arith.addf %142, %145 : vector<2x512xf32>
    %147 = vector.extract_strided_slice %146 {offsets = [0, 0], sizes = [2, 128], strides = [1, 1]} : vector<2x512xf32> to vector<2x128xf32>
    %148 = arith.negf %147 : vector<2x128xf32>
    %149 = math.exp %148 : vector<2x128xf32>
    %cst_53 = arith.constant 1.000000e+00 : f32
    %150 = vector.broadcast %cst_53 : f32 to vector<2x128xf32>
    %151 = arith.addf %150, %149 : vector<2x128xf32>
    %152 = arith.divf %150, %151 : vector<2x128xf32>
    %153 = vector.extract_strided_slice %146 {offsets = [0, 128], sizes = [2, 128], strides = [1, 1]} : vector<2x512xf32> to vector<2x128xf32>
    %154 = arith.negf %153 : vector<2x128xf32>
    %155 = math.exp %154 : vector<2x128xf32>
    %cst_54 = arith.constant 1.000000e+00 : f32
    %156 = vector.broadcast %cst_54 : f32 to vector<2x128xf32>
    %157 = arith.addf %156, %155 : vector<2x128xf32>
    %158 = arith.divf %156, %157 : vector<2x128xf32>
    %159 = vector.extract_strided_slice %146 {offsets = [0, 256], sizes = [2, 128], strides = [1, 1]} : vector<2x512xf32> to vector<2x128xf32>
    %160 = math.tanh %159 : vector<2x128xf32>
    %161 = vector.extract_strided_slice %146 {offsets = [0, 384], sizes = [2, 128], strides = [1, 1]} : vector<2x512xf32> to vector<2x128xf32>
    %162 = arith.negf %161 : vector<2x128xf32>
    %163 = math.exp %162 : vector<2x128xf32>
    %cst_55 = arith.constant 1.000000e+00 : f32
    %164 = vector.broadcast %cst_55 : f32 to vector<2x128xf32>
    %165 = arith.addf %164, %163 : vector<2x128xf32>
    %166 = arith.divf %164, %165 : vector<2x128xf32>
    %167 = arith.mulf %158, %137 : vector<2x128xf32>
    %168 = arith.mulf %152, %160 : vector<2x128xf32>
    %169 = arith.addf %167, %168 : vector<2x128xf32>
    %170 = math.tanh %169 : vector<2x128xf32>
    %171 = arith.mulf %166, %170 : vector<2x128xf32>
    %172 = arith.truncf %171 : vector<2x128xf32> to vector<2x128xbf16>
    %c5 = arith.constant 5 : index
    %c0_56 = arith.constant 0 : index
    %c0_57 = arith.constant 0 : index
    %173 = vector.load %arg24[%c5, %c0_56, %c0_57] : memref<8x2x512xf32, #tpu.memory_space<vmem>>, vector<1x2x512xf32>
    %174 = vector.shape_cast %173 : vector<1x2x512xf32> to vector<2x512xf32>
    %175 = arith.truncf %171 : vector<2x128xf32> to vector<2x128xbf16>
    %c0_58 = arith.constant 0 : index
    %c0_59 = arith.constant 0 : index
    %176 = vector.load %arg4[%c0_58, %c0_59] : memref<128x512xbf16, #tpu.memory_space<vmem>>, vector<128x512xbf16>
    %cst_60 = arith.constant dense<0.000000e+00> : vector<2x512xf32>
    %177 = tpu.matmul %175, %176, %cst_60 {dimension_numbers = #tpu.dot_dimension_numbers<[1], [0], [0], [1], [0, 0, 1, 1], [], []>} : vector<2x128xbf16>, vector<128x512xbf16>, vector<2x512xf32> -> vector<2x512xf32>
    %178 = arith.addf %174, %177 : vector<2x512xf32>
    %179 = vector.extract_strided_slice %178 {offsets = [0, 0], sizes = [2, 128], strides = [1, 1]} : vector<2x512xf32> to vector<2x128xf32>
    %180 = arith.negf %179 : vector<2x128xf32>
    %181 = math.exp %180 : vector<2x128xf32>
    %cst_61 = arith.constant 1.000000e+00 : f32
    %182 = vector.broadcast %cst_61 : f32 to vector<2x128xf32>
    %183 = arith.addf %182, %181 : vector<2x128xf32>
    %184 = arith.divf %182, %183 : vector<2x128xf32>
    %185 = vector.extract_strided_slice %178 {offsets = [0, 128], sizes = [2, 128], strides = [1, 1]} : vector<2x512xf32> to vector<2x128xf32>
    %186 = arith.negf %185 : vector<2x128xf32>
    %187 = math.exp %186 : vector<2x128xf32>
    %cst_62 = arith.constant 1.000000e+00 : f32
    %188 = vector.broadcast %cst_62 : f32 to vector<2x128xf32>
    %189 = arith.addf %188, %187 : vector<2x128xf32>
    %190 = arith.divf %188, %189 : vector<2x128xf32>
    %191 = vector.extract_strided_slice %178 {offsets = [0, 256], sizes = [2, 128], strides = [1, 1]} : vector<2x512xf32> to vector<2x128xf32>
    %192 = math.tanh %191 : vector<2x128xf32>
    %193 = vector.extract_strided_slice %178 {offsets = [0, 384], sizes = [2, 128], strides = [1, 1]} : vector<2x512xf32> to vector<2x128xf32>
    %194 = arith.negf %193 : vector<2x128xf32>
    %195 = math.exp %194 : vector<2x128xf32>
    %cst_63 = arith.constant 1.000000e+00 : f32
    %196 = vector.broadcast %cst_63 : f32 to vector<2x128xf32>
    %197 = arith.addf %196, %195 : vector<2x128xf32>
    %198 = arith.divf %196, %197 : vector<2x128xf32>
    %199 = arith.mulf %190, %169 : vector<2x128xf32>
    %200 = arith.mulf %184, %192 : vector<2x128xf32>
    %201 = arith.addf %199, %200 : vector<2x128xf32>
    %202 = math.tanh %201 : vector<2x128xf32>
    %203 = arith.mulf %198, %202 : vector<2x128xf32>
    %204 = arith.truncf %203 : vector<2x128xf32> to vector<2x128xbf16>
    %c6 = arith.constant 6 : index
    %c0_64 = arith.constant 0 : index
    %c0_65 = arith.constant 0 : index
    %205 = vector.load %arg24[%c6, %c0_64, %c0_65] : memref<8x2x512xf32, #tpu.memory_space<vmem>>, vector<1x2x512xf32>
    %206 = vector.shape_cast %205 : vector<1x2x512xf32> to vector<2x512xf32>
    %207 = arith.truncf %203 : vector<2x128xf32> to vector<2x128xbf16>
    %c0_66 = arith.constant 0 : index
    %c0_67 = arith.constant 0 : index
    %208 = vector.load %arg4[%c0_66, %c0_67] : memref<128x512xbf16, #tpu.memory_space<vmem>>, vector<128x512xbf16>
    %cst_68 = arith.constant dense<0.000000e+00> : vector<2x512xf32>
    %209 = tpu.matmul %207, %208, %cst_68 {dimension_numbers = #tpu.dot_dimension_numbers<[1], [0], [0], [1], [0, 0, 1, 1], [], []>} : vector<2x128xbf16>, vector<128x512xbf16>, vector<2x512xf32> -> vector<2x512xf32>
    %210 = arith.addf %206, %209 : vector<2x512xf32>
    %211 = vector.extract_strided_slice %210 {offsets = [0, 0], sizes = [2, 128], strides = [1, 1]} : vector<2x512xf32> to vector<2x128xf32>
    %212 = arith.negf %211 : vector<2x128xf32>
    %213 = math.exp %212 : vector<2x128xf32>
    %cst_69 = arith.constant 1.000000e+00 : f32
    %214 = vector.broadcast %cst_69 : f32 to vector<2x128xf32>
    %215 = arith.addf %214, %213 : vector<2x128xf32>
    %216 = arith.divf %214, %215 : vector<2x128xf32>
    %217 = vector.extract_strided_slice %210 {offsets = [0, 128], sizes = [2, 128], strides = [1, 1]} : vector<2x512xf32> to vector<2x128xf32>
    %218 = arith.negf %217 : vector<2x128xf32>
    %219 = math.exp %218 : vector<2x128xf32>
    %cst_70 = arith.constant 1.000000e+00 : f32
    %220 = vector.broadcast %cst_70 : f32 to vector<2x128xf32>
    %221 = arith.addf %220, %219 : vector<2x128xf32>
    %222 = arith.divf %220, %221 : vector<2x128xf32>
    %223 = vector.extract_strided_slice %210 {offsets = [0, 256], sizes = [2, 128], strides = [1, 1]} : vector<2x512xf32> to vector<2x128xf32>
    %224 = math.tanh %223 : vector<2x128xf32>
    %225 = vector.extract_strided_slice %210 {offsets = [0, 384], sizes = [2, 128], strides = [1, 1]} : vector<2x512xf32> to vector<2x128xf32>
    %226 = arith.negf %225 : vector<2x128xf32>
    %227 = math.exp %226 : vector<2x128xf32>
    %cst_71 = arith.constant 1.000000e+00 : f32
    %228 = vector.broadcast %cst_71 : f32 to vector<2x128xf32>
    %229 = arith.addf %228, %227 : vector<2x128xf32>
    %230 = arith.divf %228, %229 : vector<2x128xf32>
    %231 = arith.mulf %222, %201 : vector<2x128xf32>
    %232 = arith.mulf %216, %224 : vector<2x128xf32>
    %233 = arith.addf %231, %232 : vector<2x128xf32>
    %234 = math.tanh %233 : vector<2x128xf32>
    %235 = arith.mulf %230, %234 : vector<2x128xf32>
    %236 = arith.truncf %235 : vector<2x128xf32> to vector<2x128xbf16>
    %c7 = arith.constant 7 : index
    %c0_72 = arith.constant 0 : index
    %c0_73 = arith.constant 0 : index
    %237 = vector.load %arg24[%c7, %c0_72, %c0_73] : memref<8x2x512xf32, #tpu.memory_space<vmem>>, vector<1x2x512xf32>
    %238 = vector.shape_cast %237 : vector<1x2x512xf32> to vector<2x512xf32>
    %239 = arith.truncf %235 : vector<2x128xf32> to vector<2x128xbf16>
    %c0_74 = arith.constant 0 : index
    %c0_75 = arith.constant 0 : index
    %240 = vector.load %arg4[%c0_74, %c0_75] : memref<128x512xbf16, #tpu.memory_space<vmem>>, vector<128x512xbf16>
    %cst_76 = arith.constant dense<0.000000e+00> : vector<2x512xf32>
    %241 = tpu.matmul %239, %240, %cst_76 {dimension_numbers = #tpu.dot_dimension_numbers<[1], [0], [0], [1], [0, 0, 1, 1], [], []>} : vector<2x128xbf16>, vector<128x512xbf16>, vector<2x512xf32> -> vector<2x512xf32>
    %242 = arith.addf %238, %241 : vector<2x512xf32>
    %243 = vector.extract_strided_slice %242 {offsets = [0, 0], sizes = [2, 128], strides = [1, 1]} : vector<2x512xf32> to vector<2x128xf32>
    %244 = arith.negf %243 : vector<2x128xf32>
    %245 = math.exp %244 : vector<2x128xf32>
    %cst_77 = arith.constant 1.000000e+00 : f32
    %246 = vector.broadcast %cst_77 : f32 to vector<2x128xf32>
    %247 = arith.addf %246, %245 : vector<2x128xf32>
    %248 = arith.divf %246, %247 : vector<2x128xf32>
    %249 = vector.extract_strided_slice %242 {offsets = [0, 128], sizes = [2, 128], strides = [1, 1]} : vector<2x512xf32> to vector<2x128xf32>
    %250 = arith.negf %249 : vector<2x128xf32>
    %251 = math.exp %250 : vector<2x128xf32>
    %cst_78 = arith.constant 1.000000e+00 : f32
    %252 = vector.broadcast %cst_78 : f32 to vector<2x128xf32>
    %253 = arith.addf %252, %251 : vector<2x128xf32>
    %254 = arith.divf %252, %253 : vector<2x128xf32>
    %255 = vector.extract_strided_slice %242 {offsets = [0, 256], sizes = [2, 128], strides = [1, 1]} : vector<2x512xf32> to vector<2x128xf32>
    %256 = math.tanh %255 : vector<2x128xf32>
    %257 = vector.extract_strided_slice %242 {offsets = [0, 384], sizes = [2, 128], strides = [1, 1]} : vector<2x512xf32> to vector<2x128xf32>
    %258 = arith.negf %257 : vector<2x128xf32>
    %259 = math.exp %258 : vector<2x128xf32>
    %cst_79 = arith.constant 1.000000e+00 : f32
    %260 = vector.broadcast %cst_79 : f32 to vector<2x128xf32>
    %261 = arith.addf %260, %259 : vector<2x128xf32>
    %262 = arith.divf %260, %261 : vector<2x128xf32>
    %263 = arith.mulf %254, %233 : vector<2x128xf32>
    %264 = arith.mulf %248, %256 : vector<2x128xf32>
    %265 = arith.addf %263, %264 : vector<2x128xf32>
    %266 = math.tanh %265 : vector<2x128xf32>
    %267 = arith.mulf %262, %266 : vector<2x128xf32>
    %268 = arith.truncf %267 : vector<2x128xf32> to vector<2x128xbf16>
    %269 = vector.shape_cast %44 : vector<2x128xbf16> to vector<1x2x128xbf16>
    %270 = vector.shape_cast %76 : vector<2x128xbf16> to vector<1x2x128xbf16>
    %271 = vector.shape_cast %108 : vector<2x128xbf16> to vector<1x2x128xbf16>
    %272 = vector.shape_cast %140 : vector<2x128xbf16> to vector<1x2x128xbf16>
    %273 = vector.shape_cast %172 : vector<2x128xbf16> to vector<1x2x128xbf16>
    %274 = vector.shape_cast %204 : vector<2x128xbf16> to vector<1x2x128xbf16>
    %275 = vector.shape_cast %236 : vector<2x128xbf16> to vector<1x2x128xbf16>
    %276 = vector.shape_cast %268 : vector<2x128xbf16> to vector<1x2x128xbf16>
    %277 = tpu.concatenate %269, %270, %271, %272, %273, %274, %275, %276 in 0 : vector<1x2x128xbf16>, vector<1x2x128xbf16>, vector<1x2x128xbf16>, vector<1x2x128xbf16>, vector<1x2x128xbf16>, vector<1x2x128xbf16>, vector<1x2x128xbf16>, vector<1x2x128xbf16> -> vector<8x2x128xbf16>
    %c0_80 = arith.constant 0 : index
    %c0_81 = arith.constant 0 : index
    %c0_82 = arith.constant 0 : index
    %278 = vector.load %arg22[%c0_80, %c0_81, %c0_82] : memref<2x2x128xf32, #tpu.memory_space<vmem>>, vector<1x2x128xf32>
    %279 = vector.shape_cast %278 : vector<1x2x128xf32> to vector<2x128xf32>
    %280 = vector.shape_cast %267 : vector<2x128xf32> to vector<1x2x128xf32>
    tpu.vector_store %arg22[%c0_80, %c0_81, %c0_82], %280 {strides = array<i32>} : memref<2x2x128xf32, #tpu.memory_space<vmem>>, vector<1x2x128xf32>,
    %c0_83 = arith.constant 0 : index
    %c0_84 = arith.constant 0 : index
    %c0_85 = arith.constant 0 : index
    %281 = vector.load %arg23[%c0_83, %c0_84, %c0_85] : memref<2x2x128xf32, #tpu.memory_space<vmem>>, vector<1x2x128xf32>
    %282 = vector.shape_cast %281 : vector<1x2x128xf32> to vector<2x128xf32>
    %283 = vector.shape_cast %265 : vector<2x128xf32> to vector<1x2x128xf32>
    tpu.vector_store %arg23[%c0_83, %c0_84, %c0_85], %283 {strides = array<i32>} : memref<2x2x128xf32, #tpu.memory_space<vmem>>, vector<1x2x128xf32>,
    %284 = vector.shape_cast %277 : vector<8x2x128xbf16> to vector<16x128xbf16>
    %c0_86 = arith.constant 0 : index
    %c0_87 = arith.constant 0 : index
    %285 = vector.load %arg6[%c0_86, %c0_87] : memref<128x512xbf16, #tpu.memory_space<vmem>>, vector<128x512xbf16>
    %cst_88 = arith.constant dense<0.000000e+00> : vector<16x512xf32>
    %286 = tpu.matmul %284, %285, %cst_88 {dimension_numbers = #tpu.dot_dimension_numbers<[1], [0], [0], [1], [0, 0, 1, 1], [], []>} : vector<16x128xbf16>, vector<128x512xbf16>, vector<16x512xf32> -> vector<16x512xf32>
    %c0_89 = arith.constant 0 : index
    %c0_90 = arith.constant 0 : index
    %287 = vector.load %arg8[%c0_89, %c0_90] : memref<1x512xf32, #tpu.memory_space<vmem>>, vector<1x512xf32>
    %288 = vector.broadcast %287 : vector<1x512xf32> to vector<16x512xf32>
    %289 = arith.addf %286, %288 : vector<16x512xf32>
    %290 = vector.shape_cast %289 : vector<16x512xf32> to vector<8x2x512xf32>
    %c0_91 = arith.constant 0 : index
    %c0_92 = arith.constant 0 : index
    %c0_93 = arith.constant 0 : index
    %291 = vector.load %arg24[%c0_91, %c0_92, %c0_93] : memref<8x2x512xf32, #tpu.memory_space<vmem>>, vector<8x2x512xf32>
    tpu.vector_store %arg24[%c0_91, %c0_92, %c0_93], %290 {strides = array<i32>} : memref<8x2x512xf32, #tpu.memory_space<vmem>>, vector<8x2x512xf32>,
    %c1_94 = arith.constant 1 : index
    %c0_95 = arith.constant 0 : index
    %c0_96 = arith.constant 0 : index
    %292 = vector.load %arg1[%c1_94, %c0_95, %c0_96] : memref<2x2x128xf32, #tpu.memory_space<vmem>>, vector<1x2x128xf32>
    %293 = vector.shape_cast %292 : vector<1x2x128xf32> to vector<2x128xf32>
    %c1_97 = arith.constant 1 : index
    %c0_98 = arith.constant 0 : index
    %c0_99 = arith.constant 0 : index
    %294 = vector.load %arg2[%c1_97, %c0_98, %c0_99] : memref<2x2x128xf32, #tpu.memory_space<vmem>>, vector<1x2x128xf32>
    %295 = vector.shape_cast %294 : vector<1x2x128xf32> to vector<2x128xf32>
    %c0_100 = arith.constant 0 : index
    %c0_101 = arith.constant 0 : index
    %c0_102 = arith.constant 0 : index
    %296 = vector.load %arg24[%c0_100, %c0_101, %c0_102] : memref<8x2x512xf32, #tpu.memory_space<vmem>>, vector<1x2x512xf32>
    %297 = vector.shape_cast %296 : vector<1x2x512xf32> to vector<2x512xf32>
    %298 = arith.truncf %293 : vector<2x128xf32> to vector<2x128xbf16>
    %c0_103 = arith.constant 0 : index
    %c0_104 = arith.constant 0 : index
    %299 = vector.load %arg7[%c0_103, %c0_104] : memref<128x512xbf16, #tpu.memory_space<vmem>>, vector<128x512xbf16>
    %cst_105 = arith.constant dense<0.000000e+00> : vector<2x512xf32>
    %300 = tpu.matmul %298, %299, %cst_105 {dimension_numbers = #tpu.dot_dimension_numbers<[1], [0], [0], [1], [0, 0, 1, 1], [], []>} : vector<2x128xbf16>, vector<128x512xbf16>, vector<2x512xf32> -> vector<2x512xf32>
    %301 = arith.addf %297, %300 : vector<2x512xf32>
    %302 = vector.extract_strided_slice %301 {offsets = [0, 0], sizes = [2, 128], strides = [1, 1]} : vector<2x512xf32> to vector<2x128xf32>
    %303 = arith.negf %302 : vector<2x128xf32>
    %304 = math.exp %303 : vector<2x128xf32>
    %cst_106 = arith.constant 1.000000e+00 : f32
    %305 = vector.broadcast %cst_106 : f32 to vector<2x128xf32>
    %306 = arith.addf %305, %304 : vector<2x128xf32>
    %307 = arith.divf %305, %306 : vector<2x128xf32>
    %308 = vector.extract_strided_slice %301 {offsets = [0, 128], sizes = [2, 128], strides = [1, 1]} : vector<2x512xf32> to vector<2x128xf32>
    %309 = arith.negf %308 : vector<2x128xf32>
    %310 = math.exp %309 : vector<2x128xf32>
    %cst_107 = arith.constant 1.000000e+00 : f32
    %311 = vector.broadcast %cst_107 : f32 to vector<2x128xf32>
    %312 = arith.addf %311, %310 : vector<2x128xf32>
    %313 = arith.divf %311, %312 : vector<2x128xf32>
    %314 = vector.extract_strided_slice %301 {offsets = [0, 256], sizes = [2, 128], strides = [1, 1]} : vector<2x512xf32> to vector<2x128xf32>
    %315 = math.tanh %314 : vector<2x128xf32>
    %316 = vector.extract_strided_slice %301 {offsets = [0, 384], sizes = [2, 128], strides = [1, 1]} : vector<2x512xf32> to vector<2x128xf32>
    %317 = arith.negf %316 : vector<2x128xf32>
    %318 = math.exp %317 : vector<2x128xf32>
    %cst_108 = arith.constant 1.000000e+00 : f32
    %319 = vector.broadcast %cst_108 : f32 to vector<2x128xf32>
    %320 = arith.addf %319, %318 : vector<2x128xf32>
    %321 = arith.divf %319, %320 : vector<2x128xf32>
    %322 = arith.mulf %313, %295 : vector<2x128xf32>
    %323 = arith.mulf %307, %315 : vector<2x128xf32>
    %324 = arith.addf %322, %323 : vector<2x128xf32>
    %325 = math.tanh %324 : vector<2x128xf32>
    %326 = arith.mulf %321, %325 : vector<2x128xf32>
    %327 = arith.truncf %326 : vector<2x128xf32> to vector<2x128xbf16>
    %c1_109 = arith.constant 1 : index
    %c0_110 = arith.constant 0 : index
    %c0_111 = arith.constant 0 : index
    %328 = vector.load %arg24[%c1_109, %c0_110, %c0_111] : memref<8x2x512xf32, #tpu.memory_space<vmem>>, vector<1x2x512xf32>
    %329 = vector.shape_cast %328 : vector<1x2x512xf32> to vector<2x512xf32>
    %330 = arith.truncf %326 : vector<2x128xf32> to vector<2x128xbf16>
    %c0_112 = arith.constant 0 : index
    %c0_113 = arith.constant 0 : index
    %331 = vector.load %arg7[%c0_112, %c0_113] : memref<128x512xbf16, #tpu.memory_space<vmem>>, vector<128x512xbf16>
    %cst_114 = arith.constant dense<0.000000e+00> : vector<2x512xf32>
    %332 = tpu.matmul %330, %331, %cst_114 {dimension_numbers = #tpu.dot_dimension_numbers<[1], [0], [0], [1], [0, 0, 1, 1], [], []>} : vector<2x128xbf16>, vector<128x512xbf16>, vector<2x512xf32> -> vector<2x512xf32>
    %333 = arith.addf %329, %332 : vector<2x512xf32>
    %334 = vector.extract_strided_slice %333 {offsets = [0, 0], sizes = [2, 128], strides = [1, 1]} : vector<2x512xf32> to vector<2x128xf32>
    %335 = arith.negf %334 : vector<2x128xf32>
    %336 = math.exp %335 : vector<2x128xf32>
    %cst_115 = arith.constant 1.000000e+00 : f32
    %337 = vector.broadcast %cst_115 : f32 to vector<2x128xf32>
    %338 = arith.addf %337, %336 : vector<2x128xf32>
    %339 = arith.divf %337, %338 : vector<2x128xf32>
    %340 = vector.extract_strided_slice %333 {offsets = [0, 128], sizes = [2, 128], strides = [1, 1]} : vector<2x512xf32> to vector<2x128xf32>
    %341 = arith.negf %340 : vector<2x128xf32>
    %342 = math.exp %341 : vector<2x128xf32>
    %cst_116 = arith.constant 1.000000e+00 : f32
    %343 = vector.broadcast %cst_116 : f32 to vector<2x128xf32>
    %344 = arith.addf %343, %342 : vector<2x128xf32>
    %345 = arith.divf %343, %344 : vector<2x128xf32>
    %346 = vector.extract_strided_slice %333 {offsets = [0, 256], sizes = [2, 128], strides = [1, 1]} : vector<2x512xf32> to vector<2x128xf32>
    %347 = math.tanh %346 : vector<2x128xf32>
    %348 = vector.extract_strided_slice %333 {offsets = [0, 384], sizes = [2, 128], strides = [1, 1]} : vector<2x512xf32> to vector<2x128xf32>
    %349 = arith.negf %348 : vector<2x128xf32>
    %350 = math.exp %349 : vector<2x128xf32>
    %cst_117 = arith.constant 1.000000e+00 : f32
    %351 = vector.broadcast %cst_117 : f32 to vector<2x128xf32>
    %352 = arith.addf %351, %350 : vector<2x128xf32>
    %353 = arith.divf %351, %352 : vector<2x128xf32>
    %354 = arith.mulf %345, %324 : vector<2x128xf32>
    %355 = arith.mulf %339, %347 : vector<2x128xf32>
    %356 = arith.addf %354, %355 : vector<2x128xf32>
    %357 = math.tanh %356 : vector<2x128xf32>
    %358 = arith.mulf %353, %357 : vector<2x128xf32>
    %359 = arith.truncf %358 : vector<2x128xf32> to vector<2x128xbf16>
    %c2_118 = arith.constant 2 : index
    %c0_119 = arith.constant 0 : index
    %c0_120 = arith.constant 0 : index
    %360 = vector.load %arg24[%c2_118, %c0_119, %c0_120] : memref<8x2x512xf32, #tpu.memory_space<vmem>>, vector<1x2x512xf32>
    %361 = vector.shape_cast %360 : vector<1x2x512xf32> to vector<2x512xf32>
    %362 = arith.truncf %358 : vector<2x128xf32> to vector<2x128xbf16>
    %c0_121 = arith.constant 0 : index
    %c0_122 = arith.constant 0 : index
    %363 = vector.load %arg7[%c0_121, %c0_122] : memref<128x512xbf16, #tpu.memory_space<vmem>>, vector<128x512xbf16>
    %cst_123 = arith.constant dense<0.000000e+00> : vector<2x512xf32>
    %364 = tpu.matmul %362, %363, %cst_123 {dimension_numbers = #tpu.dot_dimension_numbers<[1], [0], [0], [1], [0, 0, 1, 1], [], []>} : vector<2x128xbf16>, vector<128x512xbf16>, vector<2x512xf32> -> vector<2x512xf32>
    %365 = arith.addf %361, %364 : vector<2x512xf32>
    %366 = vector.extract_strided_slice %365 {offsets = [0, 0], sizes = [2, 128], strides = [1, 1]} : vector<2x512xf32> to vector<2x128xf32>
    %367 = arith.negf %366 : vector<2x128xf32>
    %368 = math.exp %367 : vector<2x128xf32>
    %cst_124 = arith.constant 1.000000e+00 : f32
    %369 = vector.broadcast %cst_124 : f32 to vector<2x128xf32>
    %370 = arith.addf %369, %368 : vector<2x128xf32>
    %371 = arith.divf %369, %370 : vector<2x128xf32>
    %372 = vector.extract_strided_slice %365 {offsets = [0, 128], sizes = [2, 128], strides = [1, 1]} : vector<2x512xf32> to vector<2x128xf32>
    %373 = arith.negf %372 : vector<2x128xf32>
    %374 = math.exp %373 : vector<2x128xf32>
    %cst_125 = arith.constant 1.000000e+00 : f32
    %375 = vector.broadcast %cst_125 : f32 to vector<2x128xf32>
    %376 = arith.addf %375, %374 : vector<2x128xf32>
    %377 = arith.divf %375, %376 : vector<2x128xf32>
    %378 = vector.extract_strided_slice %365 {offsets = [0, 256], sizes = [2, 128], strides = [1, 1]} : vector<2x512xf32> to vector<2x128xf32>
    %379 = math.tanh %378 : vector<2x128xf32>
    %380 = vector.extract_strided_slice %365 {offsets = [0, 384], sizes = [2, 128], strides = [1, 1]} : vector<2x512xf32> to vector<2x128xf32>
    %381 = arith.negf %380 : vector<2x128xf32>
    %382 = math.exp %381 : vector<2x128xf32>
    %cst_126 = arith.constant 1.000000e+00 : f32
    %383 = vector.broadcast %cst_126 : f32 to vector<2x128xf32>
    %384 = arith.addf %383, %382 : vector<2x128xf32>
    %385 = arith.divf %383, %384 : vector<2x128xf32>
    %386 = arith.mulf %377, %356 : vector<2x128xf32>
    %387 = arith.mulf %371, %379 : vector<2x128xf32>
    %388 = arith.addf %386, %387 : vector<2x128xf32>
    %389 = math.tanh %388 : vector<2x128xf32>
    %390 = arith.mulf %385, %389 : vector<2x128xf32>
    %391 = arith.truncf %390 : vector<2x128xf32> to vector<2x128xbf16>
    %c3_127 = arith.constant 3 : index
    %c0_128 = arith.constant 0 : index
    %c0_129 = arith.constant 0 : index
    %392 = vector.load %arg24[%c3_127, %c0_128, %c0_129] : memref<8x2x512xf32, #tpu.memory_space<vmem>>, vector<1x2x512xf32>
    %393 = vector.shape_cast %392 : vector<1x2x512xf32> to vector<2x512xf32>
    %394 = arith.truncf %390 : vector<2x128xf32> to vector<2x128xbf16>
    %c0_130 = arith.constant 0 : index
    %c0_131 = arith.constant 0 : index
    %395 = vector.load %arg7[%c0_130, %c0_131] : memref<128x512xbf16, #tpu.memory_space<vmem>>, vector<128x512xbf16>
    %cst_132 = arith.constant dense<0.000000e+00> : vector<2x512xf32>
    %396 = tpu.matmul %394, %395, %cst_132 {dimension_numbers = #tpu.dot_dimension_numbers<[1], [0], [0], [1], [0, 0, 1, 1], [], []>} : vector<2x128xbf16>, vector<128x512xbf16>, vector<2x512xf32> -> vector<2x512xf32>
    %397 = arith.addf %393, %396 : vector<2x512xf32>
    %398 = vector.extract_strided_slice %397 {offsets = [0, 0], sizes = [2, 128], strides = [1, 1]} : vector<2x512xf32> to vector<2x128xf32>
    %399 = arith.negf %398 : vector<2x128xf32>
    %400 = math.exp %399 : vector<2x128xf32>
    %cst_133 = arith.constant 1.000000e+00 : f32
    %401 = vector.broadcast %cst_133 : f32 to vector<2x128xf32>
    %402 = arith.addf %401, %400 : vector<2x128xf32>
    %403 = arith.divf %401, %402 : vector<2x128xf32>
    %404 = vector.extract_strided_slice %397 {offsets = [0, 128], sizes = [2, 128], strides = [1, 1]} : vector<2x512xf32> to vector<2x128xf32>
    %405 = arith.negf %404 : vector<2x128xf32>
    %406 = math.exp %405 : vector<2x128xf32>
    %cst_134 = arith.constant 1.000000e+00 : f32
    %407 = vector.broadcast %cst_134 : f32 to vector<2x128xf32>
    %408 = arith.addf %407, %406 : vector<2x128xf32>
    %409 = arith.divf %407, %408 : vector<2x128xf32>
    %410 = vector.extract_strided_slice %397 {offsets = [0, 256], sizes = [2, 128], strides = [1, 1]} : vector<2x512xf32> to vector<2x128xf32>
    %411 = math.tanh %410 : vector<2x128xf32>
    %412 = vector.extract_strided_slice %397 {offsets = [0, 384], sizes = [2, 128], strides = [1, 1]} : vector<2x512xf32> to vector<2x128xf32>
    %413 = arith.negf %412 : vector<2x128xf32>
    %414 = math.exp %413 : vector<2x128xf32>
    %cst_135 = arith.constant 1.000000e+00 : f32
    %415 = vector.broadcast %cst_135 : f32 to vector<2x128xf32>
    %416 = arith.addf %415, %414 : vector<2x128xf32>
    %417 = arith.divf %415, %416 : vector<2x128xf32>
    %418 = arith.mulf %409, %388 : vector<2x128xf32>
    %419 = arith.mulf %403, %411 : vector<2x128xf32>
    %420 = arith.addf %418, %419 : vector<2x128xf32>
    %421 = math.tanh %420 : vector<2x128xf32>
    %422 = arith.mulf %417, %421 : vector<2x128xf32>
    %423 = arith.truncf %422 : vector<2x128xf32> to vector<2x128xbf16>
    %c4_136 = arith.constant 4 : index
    %c0_137 = arith.constant 0 : index
    %c0_138 = arith.constant 0 : index
    %424 = vector.load %arg24[%c4_136, %c0_137, %c0_138] : memref<8x2x512xf32, #tpu.memory_space<vmem>>, vector<1x2x512xf32>
    %425 = vector.shape_cast %424 : vector<1x2x512xf32> to vector<2x512xf32>
    %426 = arith.truncf %422 : vector<2x128xf32> to vector<2x128xbf16>
    %c0_139 = arith.constant 0 : index
    %c0_140 = arith.constant 0 : index
    %427 = vector.load %arg7[%c0_139, %c0_140] : memref<128x512xbf16, #tpu.memory_space<vmem>>, vector<128x512xbf16>
    %cst_141 = arith.constant dense<0.000000e+00> : vector<2x512xf32>
    %428 = tpu.matmul %426, %427, %cst_141 {dimension_numbers = #tpu.dot_dimension_numbers<[1], [0], [0], [1], [0, 0, 1, 1], [], []>} : vector<2x128xbf16>, vector<128x512xbf16>, vector<2x512xf32> -> vector<2x512xf32>
    %429 = arith.addf %425, %428 : vector<2x512xf32>
    %430 = vector.extract_strided_slice %429 {offsets = [0, 0], sizes = [2, 128], strides = [1, 1]} : vector<2x512xf32> to vector<2x128xf32>
    %431 = arith.negf %430 : vector<2x128xf32>
    %432 = math.exp %431 : vector<2x128xf32>
    %cst_142 = arith.constant 1.000000e+00 : f32
    %433 = vector.broadcast %cst_142 : f32 to vector<2x128xf32>
    %434 = arith.addf %433, %432 : vector<2x128xf32>
    %435 = arith.divf %433, %434 : vector<2x128xf32>
    %436 = vector.extract_strided_slice %429 {offsets = [0, 128], sizes = [2, 128], strides = [1, 1]} : vector<2x512xf32> to vector<2x128xf32>
    %437 = arith.negf %436 : vector<2x128xf32>
    %438 = math.exp %437 : vector<2x128xf32>
    %cst_143 = arith.constant 1.000000e+00 : f32
    %439 = vector.broadcast %cst_143 : f32 to vector<2x128xf32>
    %440 = arith.addf %439, %438 : vector<2x128xf32>
    %441 = arith.divf %439, %440 : vector<2x128xf32>
    %442 = vector.extract_strided_slice %429 {offsets = [0, 256], sizes = [2, 128], strides = [1, 1]} : vector<2x512xf32> to vector<2x128xf32>
    %443 = math.tanh %442 : vector<2x128xf32>
    %444 = vector.extract_strided_slice %429 {offsets = [0, 384], sizes = [2, 128], strides = [1, 1]} : vector<2x512xf32> to vector<2x128xf32>
    %445 = arith.negf %444 : vector<2x128xf32>
    %446 = math.exp %445 : vector<2x128xf32>
    %cst_144 = arith.constant 1.000000e+00 : f32
    %447 = vector.broadcast %cst_144 : f32 to vector<2x128xf32>
    %448 = arith.addf %447, %446 : vector<2x128xf32>
    %449 = arith.divf %447, %448 : vector<2x128xf32>
    %450 = arith.mulf %441, %420 : vector<2x128xf32>
    %451 = arith.mulf %435, %443 : vector<2x128xf32>
    %452 = arith.addf %450, %451 : vector<2x128xf32>
    %453 = math.tanh %452 : vector<2x128xf32>
    %454 = arith.mulf %449, %453 : vector<2x128xf32>
    %455 = arith.truncf %454 : vector<2x128xf32> to vector<2x128xbf16>
    %c5_145 = arith.constant 5 : index
    %c0_146 = arith.constant 0 : index
    %c0_147 = arith.constant 0 : index
    %456 = vector.load %arg24[%c5_145, %c0_146, %c0_147] : memref<8x2x512xf32, #tpu.memory_space<vmem>>, vector<1x2x512xf32>
    %457 = vector.shape_cast %456 : vector<1x2x512xf32> to vector<2x512xf32>
    %458 = arith.truncf %454 : vector<2x128xf32> to vector<2x128xbf16>
    %c0_148 = arith.constant 0 : index
    %c0_149 = arith.constant 0 : index
    %459 = vector.load %arg7[%c0_148, %c0_149] : memref<128x512xbf16, #tpu.memory_space<vmem>>, vector<128x512xbf16>
    %cst_150 = arith.constant dense<0.000000e+00> : vector<2x512xf32>
    %460 = tpu.matmul %458, %459, %cst_150 {dimension_numbers = #tpu.dot_dimension_numbers<[1], [0], [0], [1], [0, 0, 1, 1], [], []>} : vector<2x128xbf16>, vector<128x512xbf16>, vector<2x512xf32> -> vector<2x512xf32>
    %461 = arith.addf %457, %460 : vector<2x512xf32>
    %462 = vector.extract_strided_slice %461 {offsets = [0, 0], sizes = [2, 128], strides = [1, 1]} : vector<2x512xf32> to vector<2x128xf32>
    %463 = arith.negf %462 : vector<2x128xf32>
    %464 = math.exp %463 : vector<2x128xf32>
    %cst_151 = arith.constant 1.000000e+00 : f32
    %465 = vector.broadcast %cst_151 : f32 to vector<2x128xf32>
    %466 = arith.addf %465, %464 : vector<2x128xf32>
    %467 = arith.divf %465, %466 : vector<2x128xf32>
    %468 = vector.extract_strided_slice %461 {offsets = [0, 128], sizes = [2, 128], strides = [1, 1]} : vector<2x512xf32> to vector<2x128xf32>
    %469 = arith.negf %468 : vector<2x128xf32>
    %470 = math.exp %469 : vector<2x128xf32>
    %cst_152 = arith.constant 1.000000e+00 : f32
    %471 = vector.broadcast %cst_152 : f32 to vector<2x128xf32>
    %472 = arith.addf %471, %470 : vector<2x128xf32>
    %473 = arith.divf %471, %472 : vector<2x128xf32>
    %474 = vector.extract_strided_slice %461 {offsets = [0, 256], sizes = [2, 128], strides = [1, 1]} : vector<2x512xf32> to vector<2x128xf32>
    %475 = math.tanh %474 : vector<2x128xf32>
    %476 = vector.extract_strided_slice %461 {offsets = [0, 384], sizes = [2, 128], strides = [1, 1]} : vector<2x512xf32> to vector<2x128xf32>
    %477 = arith.negf %476 : vector<2x128xf32>
    %478 = math.exp %477 : vector<2x128xf32>
    %cst_153 = arith.constant 1.000000e+00 : f32
    %479 = vector.broadcast %cst_153 : f32 to vector<2x128xf32>
    %480 = arith.addf %479, %478 : vector<2x128xf32>
    %481 = arith.divf %479, %480 : vector<2x128xf32>
    %482 = arith.mulf %473, %452 : vector<2x128xf32>
    %483 = arith.mulf %467, %475 : vector<2x128xf32>
    %484 = arith.addf %482, %483 : vector<2x128xf32>
    %485 = math.tanh %484 : vector<2x128xf32>
    %486 = arith.mulf %481, %485 : vector<2x128xf32>
    %487 = arith.truncf %486 : vector<2x128xf32> to vector<2x128xbf16>
    %c6_154 = arith.constant 6 : index
    %c0_155 = arith.constant 0 : index
    %c0_156 = arith.constant 0 : index
    %488 = vector.load %arg24[%c6_154, %c0_155, %c0_156] : memref<8x2x512xf32, #tpu.memory_space<vmem>>, vector<1x2x512xf32>
    %489 = vector.shape_cast %488 : vector<1x2x512xf32> to vector<2x512xf32>
    %490 = arith.truncf %486 : vector<2x128xf32> to vector<2x128xbf16>
    %c0_157 = arith.constant 0 : index
    %c0_158 = arith.constant 0 : index
    %491 = vector.load %arg7[%c0_157, %c0_158] : memref<128x512xbf16, #tpu.memory_space<vmem>>, vector<128x512xbf16>
    %cst_159 = arith.constant dense<0.000000e+00> : vector<2x512xf32>
    %492 = tpu.matmul %490, %491, %cst_159 {dimension_numbers = #tpu.dot_dimension_numbers<[1], [0], [0], [1], [0, 0, 1, 1], [], []>} : vector<2x128xbf16>, vector<128x512xbf16>, vector<2x512xf32> -> vector<2x512xf32>
    %493 = arith.addf %489, %492 : vector<2x512xf32>
    %494 = vector.extract_strided_slice %493 {offsets = [0, 0], sizes = [2, 128], strides = [1, 1]} : vector<2x512xf32> to vector<2x128xf32>
    %495 = arith.negf %494 : vector<2x128xf32>
    %496 = math.exp %495 : vector<2x128xf32>
    %cst_160 = arith.constant 1.000000e+00 : f32
    %497 = vector.broadcast %cst_160 : f32 to vector<2x128xf32>
    %498 = arith.addf %497, %496 : vector<2x128xf32>
    %499 = arith.divf %497, %498 : vector<2x128xf32>
    %500 = vector.extract_strided_slice %493 {offsets = [0, 128], sizes = [2, 128], strides = [1, 1]} : vector<2x512xf32> to vector<2x128xf32>
    %501 = arith.negf %500 : vector<2x128xf32>
    %502 = math.exp %501 : vector<2x128xf32>
    %cst_161 = arith.constant 1.000000e+00 : f32
    %503 = vector.broadcast %cst_161 : f32 to vector<2x128xf32>
    %504 = arith.addf %503, %502 : vector<2x128xf32>
    %505 = arith.divf %503, %504 : vector<2x128xf32>
    %506 = vector.extract_strided_slice %493 {offsets = [0, 256], sizes = [2, 128], strides = [1, 1]} : vector<2x512xf32> to vector<2x128xf32>
    %507 = math.tanh %506 : vector<2x128xf32>
    %508 = vector.extract_strided_slice %493 {offsets = [0, 384], sizes = [2, 128], strides = [1, 1]} : vector<2x512xf32> to vector<2x128xf32>
    %509 = arith.negf %508 : vector<2x128xf32>
    %510 = math.exp %509 : vector<2x128xf32>
    %cst_162 = arith.constant 1.000000e+00 : f32
    %511 = vector.broadcast %cst_162 : f32 to vector<2x128xf32>
    %512 = arith.addf %511, %510 : vector<2x128xf32>
    %513 = arith.divf %511, %512 : vector<2x128xf32>
    %514 = arith.mulf %505, %484 : vector<2x128xf32>
    %515 = arith.mulf %499, %507 : vector<2x128xf32>
    %516 = arith.addf %514, %515 : vector<2x128xf32>
    %517 = math.tanh %516 : vector<2x128xf32>
    %518 = arith.mulf %513, %517 : vector<2x128xf32>
    %519 = arith.truncf %518 : vector<2x128xf32> to vector<2x128xbf16>
    %c7_163 = arith.constant 7 : index
    %c0_164 = arith.constant 0 : index
    %c0_165 = arith.constant 0 : index
    %520 = vector.load %arg24[%c7_163, %c0_164, %c0_165] : memref<8x2x512xf32, #tpu.memory_space<vmem>>, vector<1x2x512xf32>
    %521 = vector.shape_cast %520 : vector<1x2x512xf32> to vector<2x512xf32>
    %522 = arith.truncf %518 : vector<2x128xf32> to vector<2x128xbf16>
    %c0_166 = arith.constant 0 : index
    %c0_167 = arith.constant 0 : index
    %523 = vector.load %arg7[%c0_166, %c0_167] : memref<128x512xbf16, #tpu.memory_space<vmem>>, vector<128x512xbf16>
    %cst_168 = arith.constant dense<0.000000e+00> : vector<2x512xf32>
    %524 = tpu.matmul %522, %523, %cst_168 {dimension_numbers = #tpu.dot_dimension_numbers<[1], [0], [0], [1], [0, 0, 1, 1], [], []>} : vector<2x128xbf16>, vector<128x512xbf16>, vector<2x512xf32> -> vector<2x512xf32>
    %525 = arith.addf %521, %524 : vector<2x512xf32>
    %526 = vector.extract_strided_slice %525 {offsets = [0, 0], sizes = [2, 128], strides = [1, 1]} : vector<2x512xf32> to vector<2x128xf32>
    %527 = arith.negf %526 : vector<2x128xf32>
    %528 = math.exp %527 : vector<2x128xf32>
    %cst_169 = arith.constant 1.000000e+00 : f32
    %529 = vector.broadcast %cst_169 : f32 to vector<2x128xf32>
    %530 = arith.addf %529, %528 : vector<2x128xf32>
    %531 = arith.divf %529, %530 : vector<2x128xf32>
    %532 = vector.extract_strided_slice %525 {offsets = [0, 128], sizes = [2, 128], strides = [1, 1]} : vector<2x512xf32> to vector<2x128xf32>
    %533 = arith.negf %532 : vector<2x128xf32>
    %534 = math.exp %533 : vector<2x128xf32>
    %cst_170 = arith.constant 1.000000e+00 : f32
    %535 = vector.broadcast %cst_170 : f32 to vector<2x128xf32>
    %536 = arith.addf %535, %534 : vector<2x128xf32>
    %537 = arith.divf %535, %536 : vector<2x128xf32>
    %538 = vector.extract_strided_slice %525 {offsets = [0, 256], sizes = [2, 128], strides = [1, 1]} : vector<2x512xf32> to vector<2x128xf32>
    %539 = math.tanh %538 : vector<2x128xf32>
    %540 = vector.extract_strided_slice %525 {offsets = [0, 384], sizes = [2, 128], strides = [1, 1]} : vector<2x512xf32> to vector<2x128xf32>
    %541 = arith.negf %540 : vector<2x128xf32>
    %542 = math.exp %541 : vector<2x128xf32>
    %cst_171 = arith.constant 1.000000e+00 : f32
    %543 = vector.broadcast %cst_171 : f32 to vector<2x128xf32>
    %544 = arith.addf %543, %542 : vector<2x128xf32>
    %545 = arith.divf %543, %544 : vector<2x128xf32>
    %546 = arith.mulf %537, %516 : vector<2x128xf32>
    %547 = arith.mulf %531, %539 : vector<2x128xf32>
    %548 = arith.addf %546, %547 : vector<2x128xf32>
    %549 = math.tanh %548 : vector<2x128xf32>
    %550 = arith.mulf %545, %549 : vector<2x128xf32>
    %551 = arith.truncf %550 : vector<2x128xf32> to vector<2x128xbf16>
    %552 = vector.shape_cast %327 : vector<2x128xbf16> to vector<1x2x128xbf16>
    %553 = vector.shape_cast %359 : vector<2x128xbf16> to vector<1x2x128xbf16>
    %554 = vector.shape_cast %391 : vector<2x128xbf16> to vector<1x2x128xbf16>
    %555 = vector.shape_cast %423 : vector<2x128xbf16> to vector<1x2x128xbf16>
    %556 = vector.shape_cast %455 : vector<2x128xbf16> to vector<1x2x128xbf16>
    %557 = vector.shape_cast %487 : vector<2x128xbf16> to vector<1x2x128xbf16>
    %558 = vector.shape_cast %519 : vector<2x128xbf16> to vector<1x2x128xbf16>
    %559 = vector.shape_cast %551 : vector<2x128xbf16> to vector<1x2x128xbf16>
    %560 = tpu.concatenate %552, %553, %554, %555, %556, %557, %558, %559 in 0 : vector<1x2x128xbf16>, vector<1x2x128xbf16>, vector<1x2x128xbf16>, vector<1x2x128xbf16>, vector<1x2x128xbf16>, vector<1x2x128xbf16>, vector<1x2x128xbf16>, vector<1x2x128xbf16> -> vector<8x2x128xbf16>
    %c1_172 = arith.constant 1 : index
    %c0_173 = arith.constant 0 : index
    %c0_174 = arith.constant 0 : index
    %561 = vector.load %arg22[%c1_172, %c0_173, %c0_174] : memref<2x2x128xf32, #tpu.memory_space<vmem>>, vector<1x2x128xf32>
    %562 = vector.shape_cast %561 : vector<1x2x128xf32> to vector<2x128xf32>
    %563 = vector.shape_cast %550 : vector<2x128xf32> to vector<1x2x128xf32>
    tpu.vector_store %arg22[%c1_172, %c0_173, %c0_174], %563 {strides = array<i32>} : memref<2x2x128xf32, #tpu.memory_space<vmem>>, vector<1x2x128xf32>,
    %c1_175 = arith.constant 1 : index
    %c0_176 = arith.constant 0 : index
    %c0_177 = arith.constant 0 : index
    %564 = vector.load %arg23[%c1_175, %c0_176, %c0_177] : memref<2x2x128xf32, #tpu.memory_space<vmem>>, vector<1x2x128xf32>
    %565 = vector.shape_cast %564 : vector<1x2x128xf32> to vector<2x128xf32>
    %566 = vector.shape_cast %548 : vector<2x128xf32> to vector<1x2x128xf32>
    tpu.vector_store %arg23[%c1_175, %c0_176, %c0_177], %566 {strides = array<i32>} : memref<2x2x128xf32, #tpu.memory_space<vmem>>, vector<1x2x128xf32>,
    %567 = vector.shape_cast %560 : vector<8x2x128xbf16> to vector<16x128xbf16>
    %c0_178 = arith.constant 0 : index
    %c0_179 = arith.constant 0 : index
    %568 = vector.load %arg9[%c0_178, %c0_179] : memref<128x128xbf16, #tpu.memory_space<vmem>>, vector<128x128xbf16>
    %cst_180 = arith.constant dense<0.000000e+00> : vector<16x128xf32>
    %569 = tpu.matmul %567, %568, %cst_180 {dimension_numbers = #tpu.dot_dimension_numbers<[1], [0], [0], [1], [0, 0, 1, 1], [], []>} : vector<16x128xbf16>, vector<128x128xbf16>, vector<16x128xf32> -> vector<16x128xf32>
    %c0_181 = arith.constant 0 : index
    %c0_182 = arith.constant 0 : index
    %570 = vector.load %arg10[%c0_181, %c0_182] : memref<1x128xf32, #tpu.memory_space<vmem>>, vector<1x128xf32>
    %571 = vector.broadcast %570 : vector<1x128xf32> to vector<16x128xf32>
    %572 = arith.addf %569, %571 : vector<16x128xf32>
    %cst_183 = arith.constant 0.000000e+00 : f32
    %573 = vector.broadcast %cst_183 : f32 to vector<16x128xf32>
    %574 = arith.cmpf ogt, %572, %573 : vector<16x128xf32>
    %cst_184 = arith.constant 0.00999999977 : f32
    %575 = vector.broadcast %cst_184 : f32 to vector<16x128xf32>
    %576 = arith.mulf %575, %572 : vector<16x128xf32>
    %577 = arith.select %574, %572, %576 : vector<16x128xi1>, vector<16x128xf32>
    %578 = arith.truncf %577 : vector<16x128xf32> to vector<16x128xbf16>
    %c0_185 = arith.constant 0 : index
    %c0_186 = arith.constant 0 : index
    %579 = vector.load %arg11[%c0_185, %c0_186] : memref<128x128xbf16, #tpu.memory_space<vmem>>, vector<128x128xbf16>
    %cst_187 = arith.constant dense<0.000000e+00> : vector<16x128xf32>
    %580 = tpu.matmul %578, %579, %cst_187 {dimension_numbers = #tpu.dot_dimension_numbers<[1], [0], [0], [1], [0, 0, 1, 1], [], []>} : vector<16x128xbf16>, vector<128x128xbf16>, vector<16x128xf32> -> vector<16x128xf32>
    %c0_188 = arith.constant 0 : index
    %c0_189 = arith.constant 0 : index
    %581 = vector.load %arg12[%c0_188, %c0_189] : memref<1x128xf32, #tpu.memory_space<vmem>>, vector<1x128xf32>
    %582 = vector.broadcast %581 : vector<1x128xf32> to vector<16x128xf32>
    %583 = arith.addf %580, %582 : vector<16x128xf32>
    %c0_190 = arith.constant 0 : index
    %c0_191 = arith.constant 0 : index
    %584 = vector.load %arg13[%c0_190, %c0_191] : memref<128x128xbf16, #tpu.memory_space<vmem>>, vector<128x128xbf16>
    %cst_192 = arith.constant dense<0.000000e+00> : vector<16x128xf32>
    %585 = tpu.matmul %578, %584, %cst_192 {dimension_numbers = #tpu.dot_dimension_numbers<[1], [0], [0], [1], [0, 0, 1, 1], [], []>} : vector<16x128xbf16>, vector<128x128xbf16>, vector<16x128xf32> -> vector<16x128xf32>
    %c0_193 = arith.constant 0 : index
    %c0_194 = arith.constant 0 : index
    %586 = vector.load %arg14[%c0_193, %c0_194] : memref<1x128xf32, #tpu.memory_space<vmem>>, vector<1x128xf32>
    %587 = vector.broadcast %586 : vector<1x128xf32> to vector<16x128xf32>
    %588 = arith.addf %585, %587 : vector<16x128xf32>
    %c0_195 = arith.constant 0 : index
    %c0_196 = arith.constant 0 : index
    %589 = vector.load %arg15[%c0_195, %c0_196] : memref<128x128xbf16, #tpu.memory_space<vmem>>, vector<128x128xbf16>
    %cst_197 = arith.constant dense<0.000000e+00> : vector<16x128xf32>
    %590 = tpu.matmul %578, %589, %cst_197 {dimension_numbers = #tpu.dot_dimension_numbers<[1], [0], [0], [1], [0, 0, 1, 1], [], []>} : vector<16x128xbf16>, vector<128x128xbf16>, vector<16x128xf32> -> vector<16x128xf32>
    %c0_198 = arith.constant 0 : index
    %c0_199 = arith.constant 0 : index
    %591 = vector.load %arg16[%c0_198, %c0_199] : memref<1x128xf32, #tpu.memory_space<vmem>>, vector<1x128xf32>
    %592 = vector.broadcast %591 : vector<1x128xf32> to vector<16x128xf32>
    %593 = arith.addf %590, %592 : vector<16x128xf32>
    %cst_200 = arith.constant 0.176776692 : f32
    %594 = vector.broadcast %cst_200 : f32 to vector<16x128xf32>
    %595 = arith.mulf %583, %594 : vector<16x128xf32>
    %596 = arith.truncf %595 : vector<16x128xf32> to vector<16x128xbf16>
    %597 = vector.shape_cast %596 : vector<16x128xbf16> to vector<8x2x128xbf16>
    %598 = arith.truncf %588 : vector<16x128xf32> to vector<16x128xbf16>
    %599 = vector.shape_cast %598 : vector<16x128xbf16> to vector<8x2x128xbf16>
    %600 = arith.truncf %593 : vector<16x128xf32> to vector<16x128xbf16>
    %601 = vector.shape_cast %600 : vector<16x128xbf16> to vector<8x2x128xbf16>
    "tpu.trace_start"() <{level = 10 : i32, message = "tbh,tch->tbc"}> : () -> ()
    %cst_201 = arith.constant dense<0.000000e+00> : vector<8x2x2xf32>
    %602 = tpu.matmul %597, %599, %cst_201 {dimension_numbers = #tpu.dot_dimension_numbers<[2], [2], [1], [1], [0, 0, 0, 1, 1, 1], [0], [0]>} : vector<8x2x128xbf16>, vector<8x2x128xbf16>, vector<8x2x2xf32> -> vector<8x2x2xf32>
    "tpu.trace_stop"() : () -> ()
    %cst_202 = arith.constant dense<0xFF800000> : vector<8x2xf32>
    %603 = vector.multi_reduction <maximumf>, %602, %cst_202 [2] : vector<8x2x2xf32> to vector<8x2xf32>
    %604 = vector.shape_cast %603 : vector<8x2xf32> to vector<8x2x1xf32>
    %605 = vector.broadcast %604 : vector<8x2x1xf32> to vector<8x2x2xf32>
    %606 = arith.subf %602, %605 : vector<8x2x2xf32>
    %607 = math.exp %606 : vector<8x2x2xf32>
    %cst_203 = arith.constant dense<0.000000e+00> : vector<8x2xf32>
    %608 = vector.multi_reduction <add>, %607, %cst_203 [2] : vector<8x2x2xf32> to vector<8x2xf32>
    %609 = vector.shape_cast %608 : vector<8x2xf32> to vector<8x2x1xf32>
    %610 = tpu.reciprocal %609 {approx = true} : vector<8x2x1xf32> -> vector<8x2x1xf32>
    %611 = vector.broadcast %610 : vector<8x2x1xf32> to vector<8x2x2xf32>
    %612 = arith.mulf %607, %611 : vector<8x2x2xf32>
    %613 = arith.truncf %612 : vector<8x2x2xf32> to vector<8x2x2xbf16>
    "tpu.trace_start"() <{level = 10 : i32, message = "tbc,tch->tbh"}> : () -> ()
    %cst_204 = arith.constant dense<0.000000e+00> : vector<8x2x128xf32>
    %614 = tpu.matmul %613, %601, %cst_204 {dimension_numbers = #tpu.dot_dimension_numbers<[2], [1], [1], [2], [0, 0, 0, 1, 1, 2], [0], [0]>} : vector<8x2x2xbf16>, vector<8x2x128xbf16>, vector<8x2x128xf32> -> vector<8x2x128xf32>
    "tpu.trace_stop"() : () -> ()
    %615 = vector.shape_cast %614 : vector<8x2x128xf32> to vector<16x128xf32>
    %616 = arith.truncf %615 : vector<16x128xf32> to vector<16x128xbf16>
    %c0_205 = arith.constant 0 : index
    %c0_206 = arith.constant 0 : index
    %617 = vector.load %arg17[%c0_205, %c0_206] : memref<128x128xbf16, #tpu.memory_space<vmem>>, vector<128x128xbf16>
    %cst_207 = arith.constant dense<0.000000e+00> : vector<16x128xf32>
    %618 = tpu.matmul %616, %617, %cst_207 {dimension_numbers = #tpu.dot_dimension_numbers<[1], [0], [0], [1], [0, 0, 1, 1], [], []>} : vector<16x128xbf16>, vector<128x128xbf16>, vector<16x128xf32> -> vector<16x128xf32>
    %c0_208 = arith.constant 0 : index
    %c0_209 = arith.constant 0 : index
    %619 = vector.load %arg18[%c0_208, %c0_209] : memref<1x128xf32, #tpu.memory_space<vmem>>, vector<1x128xf32>
    %620 = vector.broadcast %619 : vector<1x128xf32> to vector<16x128xf32>
    %621 = arith.addf %618, %620 : vector<16x128xf32>
    %622 = arith.truncf %621 : vector<16x128xf32> to vector<16x128xbf16>
    %c0_210 = arith.constant 0 : index
    %c0_211 = arith.constant 0 : index
    %623 = vector.load %arg19[%c0_210, %c0_211] : memref<128x128xbf16, #tpu.memory_space<vmem>>, vector<128x128xbf16>
    %cst_212 = arith.constant dense<0.000000e+00> : vector<16x128xf32>
    %624 = tpu.matmul %622, %623, %cst_212 {dimension_numbers = #tpu.dot_dimension_numbers<[1], [0], [0], [1], [0, 0, 1, 1], [], []>} : vector<16x128xbf16>, vector<128x128xbf16>, vector<16x128xf32> -> vector<16x128xf32>
    %c0_213 = arith.constant 0 : index
    %c0_214 = arith.constant 0 : index
    %625 = vector.load %arg20[%c0_213, %c0_214] : memref<1x128xf32, #tpu.memory_space<vmem>>, vector<1x128xf32>
    %626 = vector.broadcast %625 : vector<1x128xf32> to vector<16x128xf32>
    %627 = arith.addf %624, %626 : vector<16x128xf32>
    %cst_215 = arith.constant 0.000000e+00 : f32
    %628 = vector.broadcast %cst_215 : f32 to vector<16x128xf32>
    %629 = arith.cmpf ogt, %627, %628 : vector<16x128xf32>
    %cst_216 = arith.constant 0.00999999977 : f32
    %630 = vector.broadcast %cst_216 : f32 to vector<16x128xf32>
    %631 = arith.mulf %630, %627 : vector<16x128xf32>
    %632 = arith.select %629, %627, %631 : vector<16x128xi1>, vector<16x128xf32>
    %633 = vector.shape_cast %632 : vector<16x128xf32> to vector<8x2x128xf32>
    %c0_217 = arith.constant 0 : index
    %c0_218 = arith.constant 0 : index
    %c0_219 = arith.constant 0 : index
    %634 = vector.load %arg21[%c0_217, %c0_218, %c0_219] : memref<8x2x128xf32, #tpu.memory_space<vmem>>, vector<8x2x128xf32>
    tpu.vector_store %arg21[%c0_217, %c0_218, %c0_219], %633 {strides = array<i32>} : memref<8x2x128xf32, #tpu.memory_space<vmem>>, vector<8x2x128xf32>,
    return
  }
}

</mosaic_0001>

<llo_original>
// kernel: tpu_custom_call.1
$region0: #{tpu_custom_call.1}
  #allocation0 [shape = 'u32[]', space=smem, size = 0x4, offset = 0x4, fixed_abs, tag = 'smem constant byte address 0x4 - core index']
  #allocation1 [shape = 'u32[144,128]{1,0:T(1,128)}', space=vmem, size = 0x12000, scoped, tag = 'internal scratch']
  #allocation2 [shape = 'f32[8,2,512]{2,1,0:T(2,128)}', space=vmem, size = 0x8000, scoped, tag = 'scratch operand']
  %s0 = inlined_call_operand.vmem [shape: bf16[8,2,4], index: 0, kind: input, shape index: {}]
  %s1 = inlined_call_operand.hbm [shape: f32[2,2,128], index: 1, kind: input, shape index: {}, may-alias: {1,22}]
  %s2 = inlined_call_operand.hbm [shape: f32[2,2,128], index: 2, kind: input, shape index: {}, may-alias: {2,23}]
  %s3 = inlined_call_operand.vmem [shape: bf16[4,512], index: 3, kind: input, shape index: {}]
  %s4 = inlined_call_operand.hbm [shape: bf16[128,512], index: 4, kind: input, shape index: {}]
  %s5 = inlined_call_operand.vmem [shape: f32[1,512], index: 5, kind: input, shape index: {}]
  %s6 = inlined_call_operand.hbm [shape: bf16[128,512], index: 6, kind: input, shape index: {}]
  %s7 = inlined_call_operand.hbm [shape: bf16[128,512], index: 7, kind: input, shape index: {}]
  %s8 = inlined_call_operand.vmem [shape: f32[1,512], index: 8, kind: input, shape index: {}]
  %s9 = inlined_call_operand.hbm [shape: bf16[128,128], index: 9, kind: input, shape index: {}]
  %s10 = inlined_call_operand.vmem [shape: f32[1,128], index: 10, kind: input, shape index: {}]
  %s11 = inlined_call_operand.hbm [shape: bf16[128,128], index: 11, kind: input, shape index: {}]
  %s12 = inlined_call_operand.vmem [shape: f32[1,128], index: 12, kind: input, shape index: {}]
  %s13 = inlined_call_operand.hbm [shape: bf16[128,128], index: 13, kind: input, shape index: {}]
  %s14 = inlined_call_operand.vmem [shape: f32[1,128], index: 14, kind: input, shape index: {}]
  %s15 = inlined_call_operand.hbm [shape: bf16[128,128], index: 15, kind: input, shape index: {}]
  %s16 = inlined_call_operand.vmem [shape: f32[1,128], index: 16, kind: input, shape index: {}]
  %s17 = inlined_call_operand.hbm [shape: bf16[128,128], index: 17, kind: input, shape index: {}]
  %s18 = inlined_call_operand.vmem [shape: f32[1,128], index: 18, kind: input, shape index: {}]
  %s19 = inlined_call_operand.hbm [shape: bf16[128,128], index: 19, kind: input, shape index: {}]
  %s20 = inlined_call_operand.hbm [shape: f32[1,128], index: 20, kind: input, shape index: {}]
  %s21 = inlined_call_operand.hbm [shape: f32[8,2,128], index: 21, kind: output, shape index: {0}]
  %s22 = inlined_call_operand.hbm [shape: f32[2,2,128], index: 22, kind: output, shape index: {1}, may-alias: {1,22}]
  %s23 = inlined_call_operand.hbm [shape: f32[2,2,128], index: 23, kind: output, shape index: {2}, may-alias: {2,23}]
  %24 = xla_tuple %s21, %s22, %s23
  %s25 = sld [smem:[#allocation0]]
  $region158: #{tpu_custom_call.1} parent=0
    _
  %s27 = ssub.s32 1, %s25
  %s28 = scalar_select 0, %s27, %s25
  $region1: #{tpu_custom_call.1} parent=0
    #allocation3 [shape = 'u8[2048]{0}', space=vmem, size = 0x800, scoped, tag = 'input window, operand 1, single buffered']
    #allocation4 [shape = 's32[1]{0}', space=sflag, size = 0x4, scoped, tag = 'scoped memory for tpu_custom_call.1']
    #allocation5 [shape = 's32[1]{0}', space=sflag, size = 0x4, scoped, tag = 'scoped memory for tpu_custom_call.1']
    #allocation6 [shape = 'u8[2048]{0}', space=vmem, size = 0x800, scoped, tag = 'input window, operand 2, single buffered']
    #allocation7 [shape = 's32[1]{0}', space=sflag, size = 0x4, scoped, tag = 'scoped memory for tpu_custom_call.1']
    #allocation8 [shape = 'u8[131072]{0}', space=vmem, size = 0x20000, scoped, tag = 'input window, operand 4, single buffered']
    #allocation9 [shape = 'u8[131072]{0}', space=vmem, size = 0x20000, scoped, tag = 'input window, operand 6, single buffered']
    #allocation10 [shape = 's32[1]{0}', space=sflag, size = 0x4, scoped, tag = 'scoped memory for tpu_custom_call.1']
    #allocation11 [shape = 'u8[131072]{0}', space=vmem, size = 0x20000, scoped, tag = 'input window, operand 7, single buffered']
    #allocation12 [shape = 'u8[32768]{0}', space=vmem, size = 0x8000, scoped, tag = 'input window, operand 9, single buffered']
    #allocation13 [shape = 's32[1]{0}', space=sflag, size = 0x4, scoped, tag = 'scoped memory for tpu_custom_call.1']
    #allocation14 [shape = 'u8[32768]{0}', space=vmem, size = 0x8000, scoped, tag = 'input window, operand 11, single buffered']
    #allocation15 [shape = 'u8[32768]{0}', space=vmem, size = 0x8000, scoped, tag = 'input window, operand 13, single buffered']
    #allocation16 [shape = 's32[1]{0}', space=sflag, size = 0x4, scoped, tag = 'scoped memory for tpu_custom_call.1']
    #allocation17 [shape = 'u8[32768]{0}', space=vmem, size = 0x8000, scoped, tag = 'input window, operand 15, single buffered']
    #allocation18 [shape = 'u8[32768]{0}', space=vmem, size = 0x8000, scoped, tag = 'input window, operand 17, single buffered']
    #allocation19 [shape = 's32[1]{0}', space=sflag, size = 0x4, scoped, tag = 'scoped memory for tpu_custom_call.1']
    #allocation20 [shape = 'u8[32768]{0}', space=vmem, size = 0x8000, scoped, tag = 'input window, operand 19, single buffered']
    #allocation21 [shape = 'u8[512]{0}', space=vmem, size = 0x400, scoped, tag = 'input window, operand 20, single buffered']
    #allocation22 [shape = 's32[1]{0}', space=sflag, size = 0x4, scoped, tag = 'scoped memory for tpu_custom_call.1']
    #allocation23 [shape = 'u8[8192]{0}', space=vmem, size = 0x2000, scoped, tag = 'output window, operand 0, single buffered']
    #allocation24 [shape = 'u8[2048]{0}', space=vmem, size = 0x800, scoped, tag = 'output window, operand 1, single buffered']
    #allocation25 [shape = 's32[1]{0}', space=sflag, size = 0x4, scoped, tag = 'scoped memory for tpu_custom_call.1']
    #allocation26 [shape = 'u8[2048]{0}', space=vmem, size = 0x800, scoped, tag = 'output window, operand 2, single buffered']
    %29 = vsyncpa [#allocation4], 0
    %30 = vsyncpa [#allocation7], 0
    %31 = vsyncpa [#allocation10], 0
    %32 = vsyncpa [#allocation13], 0
    %33 = vsyncpa [#allocation16], 0
    %34 = vsyncpa [#allocation19], 0
    %35 = vsyncpa [#allocation22], 0
    %36 = vsyncpa [#allocation5], 0
    %37 = vsyncpa [#allocation25], 0
    // Predicated region
    $region2: #{tpu_custom_call.1} parent=1 // pred_check
      _
    $region3: #{tpu_custom_call.1} parent=1 // pred_check_branch
      %39 = sbr.rel (0) target = $region5
    $region4: #{tpu_custom_call.1} parent=1 // pred_region
      _
    $region5: #{tpu_custom_call.1} parent=1 // pred_fallthru
      _
    // Predicated region
    $region6: #{tpu_custom_call.1} parent=1 // pred_check
      _
    $region7: #{tpu_custom_call.1} parent=1 // pred_check_branch
      %41 = sbr.rel (0) target = $region9
    $region8: #{tpu_custom_call.1} parent=1 // pred_region
      %s43 = ssub.s32 64, 64
      %44 = vsyncadd [#allocation4], %s43
      %s45 = sshll.u32 [#allocation3], 4
      %s46 = int_to_ptr.vmem [resolvable:$true] %s45
      %51 = dma.hbm_to_vmem [thread:$0]  %s1, 64, %s46, [#allocation4], 32, 32, 2
    $region9: #{tpu_custom_call.1} parent=1 // pred_fallthru
      _
    // Predicated region
    $region10: #{tpu_custom_call.1} parent=1 // pred_check
      _
    $region11: #{tpu_custom_call.1} parent=1 // pred_check_branch
      %53 = sbr.rel (0) target = $region13
    $region12: #{tpu_custom_call.1} parent=1 // pred_region
      %s55 = ssub.s32 64, 64
      %56 = vsyncadd [#allocation7], %s55
      %s57 = sshll.u32 [#allocation6], 4
      %s58 = int_to_ptr.vmem [resolvable:$true] %s57
      %63 = dma.hbm_to_vmem [thread:$0]  %s2, 64, %s58, [#allocation7], 32, 32, 2
    $region13: #{tpu_custom_call.1} parent=1 // pred_fallthru
      _
    // Predicated region
    $region14: #{tpu_custom_call.1} parent=1 // pred_check
      _
    $region15: #{tpu_custom_call.1} parent=1 // pred_check_branch
      %65 = sbr.rel (0) target = $region17
    $region16: #{tpu_custom_call.1} parent=1 // pred_region
      _
    $region17: #{tpu_custom_call.1} parent=1 // pred_fallthru
      _
    // Predicated region
    $region18: #{tpu_custom_call.1} parent=1 // pred_check
      _
    $region19: #{tpu_custom_call.1} parent=1 // pred_check_branch
      %67 = sbr.rel (0) target = $region21
    $region20: #{tpu_custom_call.1} parent=1 // pred_region
      %s69 = ssub.s32 4096, 4096
      %70 = vsyncadd [#allocation7], %s69
      %s71 = sshll.u32 [#allocation8], 4
      %s72 = int_to_ptr.vmem [resolvable:$true] %s71
      %77 = dma.hbm_to_vmem [thread:$0]  %s4, 4096, %s72, [#allocation7], 256, 256, 16
    $region21: #{tpu_custom_call.1} parent=1 // pred_fallthru
      _
    // Predicated region
    $region22: #{tpu_custom_call.1} parent=1 // pred_check
      _
    $region23: #{tpu_custom_call.1} parent=1 // pred_check_branch
      %79 = sbr.rel (0) target = $region25
    $region24: #{tpu_custom_call.1} parent=1 // pred_region
      _
    $region25: #{tpu_custom_call.1} parent=1 // pred_fallthru
      _
    // Predicated region
    $region26: #{tpu_custom_call.1} parent=1 // pred_check
      _
    $region27: #{tpu_custom_call.1} parent=1 // pred_check_branch
      %81 = sbr.rel (0) target = $region29
    $region28: #{tpu_custom_call.1} parent=1 // pred_region
      %s83 = ssub.s32 4096, 4096
      %84 = vsyncadd [#allocation10], %s83
      %s85 = sshll.u32 [#allocation9], 4
      %s86 = int_to_ptr.vmem [resolvable:$true] %s85
      %91 = dma.hbm_to_vmem [thread:$0]  %s6, 4096, %s86, [#allocation10], 256, 256, 16
    $region29: #{tpu_custom_call.1} parent=1 // pred_fallthru
      _
    // Predicated region
    $region30: #{tpu_custom_call.1} parent=1 // pred_check
      _
    $region31: #{tpu_custom_call.1} parent=1 // pred_check_branch
      %93 = sbr.rel (0) target = $region33
    $region32: #{tpu_custom_call.1} parent=1 // pred_region
      %s95 = ssub.s32 4096, 4096
      %96 = vsyncadd [#allocation10], %s95
      %s97 = sshll.u32 [#allocation11], 4
      %s98 = int_to_ptr.vmem [resolvable:$true] %s97
      %103 = dma.hbm_to_vmem [thread:$0]  %s7, 4096, %s98, [#allocation10], 256, 256, 16
    $region33: #{tpu_custom_call.1} parent=1 // pred_fallthru
      _
    // Predicated region
    $region34: #{tpu_custom_call.1} parent=1 // pred_check
      _
    $region35: #{tpu_custom_call.1} parent=1 // pred_check_branch
      %105 = sbr.rel (0) target = $region37
    $region36: #{tpu_custom_call.1} parent=1 // pred_region
      _
    $region37: #{tpu_custom_call.1} parent=1 // pred_fallthru
      _
    // Predicated region
    $region38: #{tpu_custom_call.1} parent=1 // pred_check
      _
    $region39: #{tpu_custom_call.1} parent=1 // pred_check_branch
      %107 = sbr.rel (0) target = $region41
    $region40: #{tpu_custom_call.1} parent=1 // pred_region
      %s109 = ssub.s32 1024, 1024
      %110 = vsyncadd [#allocation13], %s109
      %s111 = sshll.u32 [#allocation12], 4
      %s112 = int_to_ptr.vmem [resolvable:$true] %s111
      %117 = dma.hbm_to_vmem [thread:$0]  %s9, 1024, %s112, [#allocation13], 64, 64, 4
    $region41: #{tpu_custom_call.1} parent=1 // pred_fallthru
      _
    // Predicated region
    $region42: #{tpu_custom_call.1} parent=1 // pred_check
      _
    $region43: #{tpu_custom_call.1} parent=1 // pred_check_branch
      %119 = sbr.rel (0) target = $region45
    $region44: #{tpu_custom_call.1} parent=1 // pred_region
      _
    $region45: #{tpu_custom_call.1} parent=1 // pred_fallthru
      _
    // Predicated region
    $region46: #{tpu_custom_call.1} parent=1 // pred_check
      _
    $region47: #{tpu_custom_call.1} parent=1 // pred_check_branch
      %121 = sbr.rel (0) target = $region49
    $region48: #{tpu_custom_call.1} parent=1 // pred_region
      %s123 = ssub.s32 1024, 1024
      %124 = vsyncadd [#allocation13], %s123
      %s125 = sshll.u32 [#allocation14], 4
      %s126 = int_to_ptr.vmem [resolvable:$true] %s125
      %131 = dma.hbm_to_vmem [thread:$0]  %s11, 1024, %s126, [#allocation13], 64, 64, 4
    $region49: #{tpu_custom_call.1} parent=1 // pred_fallthru
      _
    // Predicated region
    $region50: #{tpu_custom_call.1} parent=1 // pred_check
      _
    $region51: #{tpu_custom_call.1} parent=1 // pred_check_branch
      %133 = sbr.rel (0) target = $region53
    $region52: #{tpu_custom_call.1} parent=1 // pred_region
      _
    $region53: #{tpu_custom_call.1} parent=1 // pred_fallthru
      _
    // Predicated region
    $region54: #{tpu_custom_call.1} parent=1 // pred_check
      _
    $region55: #{tpu_custom_call.1} parent=1 // pred_check_branch
      %135 = sbr.rel (0) target = $region57
    $region56: #{tpu_custom_call.1} parent=1 // pred_region
      %s137 = ssub.s32 1024, 1024
      %138 = vsyncadd [#allocation16], %s137
      %s139 = sshll.u32 [#allocation15], 4
      %s140 = int_to_ptr.vmem [resolvable:$true] %s139
      %145 = dma.hbm_to_vmem [thread:$0]  %s13, 1024, %s140, [#allocation16], 64, 64, 4
    $region57: #{tpu_custom_call.1} parent=1 // pred_fallthru
      _
    // Predicated region
    $region58: #{tpu_custom_call.1} parent=1 // pred_check
      _
    $region59: #{tpu_custom_call.1} parent=1 // pred_check_branch
      %147 = sbr.rel (0) target = $region61
    $region60: #{tpu_custom_call.1} parent=1 // pred_region
      _
    $region61: #{tpu_custom_call.1} parent=1 // pred_fallthru
      _
    // Predicated region
    $region62: #{tpu_custom_call.1} parent=1 // pred_check
      _
    $region63: #{tpu_custom_call.1} parent=1 // pred_check_branch
      %149 = sbr.rel (0) target = $region65
    $region64: #{tpu_custom_call.1} parent=1 // pred_region
      %s151 = ssub.s32 1024, 1024
      %152 = vsyncadd [#allocation16], %s151
      %s153 = sshll.u32 [#allocation17], 4
      %s154 = int_to_ptr.vmem [resolvable:$true] %s153
      %159 = dma.hbm_to_vmem [thread:$0]  %s15, 1024, %s154, [#allocation16], 64, 64, 4
    $region65: #{tpu_custom_call.1} parent=1 // pred_fallthru
      _
    // Predicated region
    $region66: #{tpu_custom_call.1} parent=1 // pred_check
      _
    $region67: #{tpu_custom_call.1} parent=1 // pred_check_branch
      %161 = sbr.rel (0) target = $region69
    $region68: #{tpu_custom_call.1} parent=1 // pred_region
      _
    $region69: #{tpu_custom_call.1} parent=1 // pred_fallthru
      _
    // Predicated region
    $region70: #{tpu_custom_call.1} parent=1 // pred_check
      _
    $region71: #{tpu_custom_call.1} parent=1 // pred_check_branch
      %163 = sbr.rel (0) target = $region73
    $region72: #{tpu_custom_call.1} parent=1 // pred_region
      %s165 = ssub.s32 1024, 1024
      %166 = vsyncadd [#allocation19], %s165
      %s167 = sshll.u32 [#allocation18], 4
      %s168 = int_to_ptr.vmem [resolvable:$true] %s167
      %173 = dma.hbm_to_vmem [thread:$0]  %s17, 1024, %s168, [#allocation19], 64, 64, 4
    $region73: #{tpu_custom_call.1} parent=1 // pred_fallthru
      _
    // Predicated region
    $region74: #{tpu_custom_call.1} parent=1 // pred_check
      _
    $region75: #{tpu_custom_call.1} parent=1 // pred_check_branch
      %175 = sbr.rel (0) target = $region77
    $region76: #{tpu_custom_call.1} parent=1 // pred_region
      _
    $region77: #{tpu_custom_call.1} parent=1 // pred_fallthru
      _
    // Predicated region
    $region78: #{tpu_custom_call.1} parent=1 // pred_check
      _
    $region79: #{tpu_custom_call.1} parent=1 // pred_check_branch
      %177 = sbr.rel (0) target = $region81
    $region80: #{tpu_custom_call.1} parent=1 // pred_region
      %s179 = ssub.s32 1024, 1024
      %180 = vsyncadd [#allocation19], %s179
      %s181 = sshll.u32 [#allocation20], 4
      %s182 = int_to_ptr.vmem [resolvable:$true] %s181
      %187 = dma.hbm_to_vmem [thread:$0]  %s19, 1024, %s182, [#allocation19], 64, 64, 4
    $region81: #{tpu_custom_call.1} parent=1 // pred_fallthru
      _
    // Predicated region
    $region82: #{tpu_custom_call.1} parent=1 // pred_check
      _
    $region83: #{tpu_custom_call.1} parent=1 // pred_check_branch
      %189 = sbr.rel (0) target = $region85
    $region84: #{tpu_custom_call.1} parent=1 // pred_region
      %s191 = ssub.s32 16, 16
      %192 = vsyncadd [#allocation22], %s191
      %s194 = sshll.u32 [#allocation21], 4
      %s195 = int_to_ptr.vmem [resolvable:$true] %s194
      %197 = dma.hbm_to_vmem [thread:$0]  %s20, 16, %s195, [#allocation22]
    $region85: #{tpu_custom_call.1} parent=1 // pred_fallthru
      _
    // Predicated region
    $region86: #{tpu_custom_call.1} parent=1 // pred_check
      _
    $region87: #{tpu_custom_call.1} parent=1 // pred_check_branch
      %199 = sbr.rel (0) target = $region89
    $region88: #{tpu_custom_call.1} parent=1 // pred_region
      %200 = dma.done [#allocation4], 64
    $region89: #{tpu_custom_call.1} parent=1 // pred_fallthru
      _
    // Predicated region
    $region90: #{tpu_custom_call.1} parent=1 // pred_check
      _
    $region91: #{tpu_custom_call.1} parent=1 // pred_check_branch
      %202 = sbr.rel (0) target = $region93
    $region92: #{tpu_custom_call.1} parent=1 // pred_region
      %203 = dma.done [#allocation7], 64
    $region93: #{tpu_custom_call.1} parent=1 // pred_fallthru
      _
    // Predicated region
    $region94: #{tpu_custom_call.1} parent=1 // pred_check
      _
    $region95: #{tpu_custom_call.1} parent=1 // pred_check_branch
      %205 = sbr.rel (0) target = $region97
    $region96: #{tpu_custom_call.1} parent=1 // pred_region
      %206 = dma.done [#allocation7], 4096
    $region97: #{tpu_custom_call.1} parent=1 // pred_fallthru
      _
    // Predicated region
    $region98: #{tpu_custom_call.1} parent=1 // pred_check
      _
    $region99: #{tpu_custom_call.1} parent=1 // pred_check_branch
      %208 = sbr.rel (0) target = $region101
    $region100: #{tpu_custom_call.1} parent=1 // pred_region
      %209 = dma.done [#allocation10], 4096
    $region101: #{tpu_custom_call.1} parent=1 // pred_fallthru
      _
    // Predicated region
    $region102: #{tpu_custom_call.1} parent=1 // pred_check
      _
    $region103: #{tpu_custom_call.1} parent=1 // pred_check_branch
      %211 = sbr.rel (0) target = $region105
    $region104: #{tpu_custom_call.1} parent=1 // pred_region
      %212 = dma.done [#allocation10], 4096
    $region105: #{tpu_custom_call.1} parent=1 // pred_fallthru
      _
    // Predicated region
    $region106: #{tpu_custom_call.1} parent=1 // pred_check
      _
    $region107: #{tpu_custom_call.1} parent=1 // pred_check_branch
      %214 = sbr.rel (0) target = $region109
    $region108: #{tpu_custom_call.1} parent=1 // pred_region
      %215 = dma.done [#allocation13], 1024
    $region109: #{tpu_custom_call.1} parent=1 // pred_fallthru
      _
    // Predicated region
    $region110: #{tpu_custom_call.1} parent=1 // pred_check
      _
    $region111: #{tpu_custom_call.1} parent=1 // pred_check_branch
      %217 = sbr.rel (0) target = $region113
    $region112: #{tpu_custom_call.1} parent=1 // pred_region
      %218 = dma.done [#allocation13], 1024
    $region113: #{tpu_custom_call.1} parent=1 // pred_fallthru
      _
    // Predicated region
    $region114: #{tpu_custom_call.1} parent=1 // pred_check
      _
    $region115: #{tpu_custom_call.1} parent=1 // pred_check_branch
      %220 = sbr.rel (0) target = $region117
    $region116: #{tpu_custom_call.1} parent=1 // pred_region
      %221 = dma.done [#allocation16], 1024
    $region117: #{tpu_custom_call.1} parent=1 // pred_fallthru
      _
    // Predicated region
    $region118: #{tpu_custom_call.1} parent=1 // pred_check
      _
    $region119: #{tpu_custom_call.1} parent=1 // pred_check_branch
      %223 = sbr.rel (0) target = $region121
    $region120: #{tpu_custom_call.1} parent=1 // pred_region
      %224 = dma.done [#allocation16], 1024
    $region121: #{tpu_custom_call.1} parent=1 // pred_fallthru
      _
    // Predicated region
    $region122: #{tpu_custom_call.1} parent=1 // pred_check
      _
    $region123: #{tpu_custom_call.1} parent=1 // pred_check_branch
      %226 = sbr.rel (0) target = $region125
    $region124: #{tpu_custom_call.1} parent=1 // pred_region
      %227 = dma.done [#allocation19], 1024
    $region125: #{tpu_custom_call.1} parent=1 // pred_fallthru
      _
    // Predicated region
    $region126: #{tpu_custom_call.1} parent=1 // pred_check
      _
    $region127: #{tpu_custom_call.1} parent=1 // pred_check_branch
      %229 = sbr.rel (0) target = $region129
    $region128: #{tpu_custom_call.1} parent=1 // pred_region
      %230 = dma.done [#allocation19], 1024
    $region129: #{tpu_custom_call.1} parent=1 // pred_fallthru
      _
    // Predicated region
    $region130: #{tpu_custom_call.1} parent=1 // pred_check
      _
    $region131: #{tpu_custom_call.1} parent=1 // pred_check_branch
      %232 = sbr.rel (0) target = $region133
    $region132: #{tpu_custom_call.1} parent=1 // pred_region
      %233 = dma.done [#allocation22], 16
    $region133: #{tpu_custom_call.1} parent=1 // pred_fallthru
      _
    %v235 = vld [vmem:[%s0] sm:$0x1]
    %v236 = vld [vmem:[%s0 + $0x1] sm:$0x1]
    %v237 = vld [vmem:[%s0 + $0x2] sm:$0x1]
    %v238 = vld [vmem:[%s0 + $0x3] sm:$0x1]
    %v239 = vld [vmem:[%s0 + $0x4] sm:$0x1]
    %v240 = vld [vmem:[%s0 + $0x5] sm:$0x1]
    %v241 = vld [vmem:[%s0 + $0x6] sm:$0x1]
    %v242 = vld [vmem:[%s0 + $0x7] sm:$0x1]
    %v243 = vld [vmem:[%s3] sm:$0xff]
    %v244 = vld [vmem:[%s5] sm:$0xf]
    %v246 = vlaneseq
    %v247 = vshrl.u32 %v246, 7
    %v248 = vsub.s32 0, %v247
    %v249 = vrot.slane %v244, %v248
    %v250 = vlaneseq
    %v251 = vshrl.u32 %v250, 7
    %v252 = vsub.s32 1, %v251
    %v253 = vrot.slane %v244, %v252
    %v254 = vlaneseq
    %v255 = vshrl.u32 %v254, 7
    %v256 = vsub.s32 2, %v255
    %v257 = vrot.slane %v244, %v256
    %v258 = vlaneseq
    %v259 = vshrl.u32 %v258, 7
    %v260 = vsub.s32 3, %v259
    %v261 = vrot.slane %v244, %v260
    %v274 = vcombine.low %v235, %v236
    %v275 = vcombine.low %v237, %v238
    %v276 = vcombine.low %v239, %v240
    %v277 = vcombine.low %v241, %v242
    %v279 = vunpack.c.l.s4 1966171168
    %v280 = vunpack.c.0.s8 %v279
    %v281 = vlaneseq
    %v282 = vshrl.u32 %v281, 7
    %v283 = vsub.s32 %v280, %v282
    %v284 = vrot.slane %v274, %v283
    %v286 = vunpack.c.l.s4 1966171168
    %v287 = vunpack.c.0.s8 %v286
    %v288 = vlaneseq
    %v289 = vshrl.u32 %v288, 7
    %v290 = vsub.s32 %v287, %v289
    %v291 = vrot.slane %v275, %v290
    %v293 = vunpack.c.l.s4 1966171168
    %v294 = vunpack.c.0.s8 %v293
    %v295 = vlaneseq
    %v296 = vshrl.u32 %v295, 7
    %v297 = vsub.s32 %v294, %v296
    %v298 = vrot.slane %v276, %v297
    %v300 = vunpack.c.l.s4 1966171168
    %v301 = vunpack.c.0.s8 %v300
    %v302 = vlaneseq
    %v303 = vshrl.u32 %v302, 7
    %v304 = vsub.s32 %v301, %v303
    %v305 = vrot.slane %v277, %v304
    %v306 = vcombine.low %v284, %v291
    %v307 = vcombine.low %v298, %v305
    %v309 = vunpack.c.l.s4 1966171168
    %v310 = vunpack.c.0.s8 %v309
    %v311 = vlaneseq
    %v312 = vshrl.u32 %v311, 7
    %v313 = vsub.s32 %v310, %v312
    %v314 = vrot.slane %v306, %v313
    %v316 = vunpack.c.l.s4 1966171168
    %v317 = vunpack.c.0.s8 %v316
    %v318 = vlaneseq
    %v319 = vshrl.u32 %v318, 7
    %v320 = vsub.s32 %v317, %v319
    %v321 = vrot.slane %v307, %v320
    %v322 = vcombine.low %v314, %v321
    %v324 = vcombine.high %v243, %v243
    %v326 = vunpack.c.l.s4 1983009808
    %v327 = vunpack.c.0.s8 %v326
    %v328 = vlaneseq
    %v329 = vshrl.u32 %v328, 7
    %v330 = vsub.s32 %v327, %v329
    %v331 = vrot.slane %v243, %v330
    %v333 = vunpack.c.l.s4 1983009808
    %v334 = vunpack.c.0.s8 %v333
    %v335 = vlaneseq
    %v336 = vshrl.u32 %v335, 7
    %v337 = vsub.s32 %v334, %v336
    %v338 = vrot.slane %v324, %v337
    %v339 = vcombine.high %v331, %v331
    %v340 = vcombine.high %v338, %v338
    %vm341 = vcmask 31744
    %v343 = vsel %vm341, %v322, 0
    %vm345 = vcmask 1041408
    %v347 = vsel %vm345, %v331, 0
    %v350 = vsel %vm345, %v339, 0
    %v353 = vsel %vm345, %v338, 0
    %v356 = vsel %vm345, %v340, 0
    %358 = vmatprep.subr.bf16.mxu0 0
    %359 = vmatpush1.bf16.msra.mxu0 0
    %360 = vmatprep.subr.bf16.mxu0 0
    %361 = vmatpush1.bf16.msra.mxu0 0
    %362 = vmatprep.subr.bf16.mxu0 0
    %363 = vmatpush1.bf16.msra.mxu0 0
    %364 = vmatprep.subr.bf16.mxu0 0
    %365 = vmatpush1.bf16.msra.mxu0 0
    %366 = vmatprep.subr.bf16.mxu0 0
    %367 = vmatpush1.bf16.msra.mxu0 0
    %368 = vmatprep.subr.bf16.mxu0 0
    %369 = vmatpush1.bf16.msra.mxu0 0
    %370 = vmatprep.subr.bf16.mxu0 0
    %371 = vmatpush1.bf16.msra.mxu0 0
    %372 = vmatprep.subr.bf16.mxu0 %v350
    %373 = vmatpush1.bf16.msra.mxu0 %v347
    %374 = vmatprep.subr.bf16.mxu0 0
    %375 = vmatpush2.bf16.msra.mxu0 0
    %376 = vmatprep.subr.bf16.mxu0 0
    %377 = vmatpush2.bf16.msra.mxu0 0
    %378 = vmatprep.subr.bf16.mxu0 0
    %379 = vmatpush2.bf16.msra.mxu0 0
    %380 = vmatprep.subr.bf16.mxu0 0
    %381 = vmatpush2.bf16.msra.mxu0 0
    %382 = vmatprep.subr.bf16.mxu0 0
    %383 = vmatpush2.bf16.msra.mxu0 0
    %384 = vmatprep.subr.bf16.mxu0 0
    %385 = vmatpush2.bf16.msra.mxu0 0
    %386 = vmatprep.subr.bf16.mxu0 0
    %387 = vmatpush2.bf16.msra.mxu0 0
    %388 = vmatprep.subr.bf16.mxu0 0
    %389 = vmatpush2.bf16.msra.mxu0 0
    %390 = vmatprep.mubr.bf16.mxu0 0
    %391 = vmatmul.mubr.bf16.gmra.mxu0 %v343
    %v392 = vpop.f32.mrf.mxu0
    %v393 = vadd.f32 %v249, %v392
    %v394 = vpop.f32.mrf.mxu0
    %v395 = vadd.f32 %v253, %v394
    %v396 = vpop.f32.mrf.mxu0
    %v397 = vadd.f32 %v249, %v396
    %v398 = vpop.f32.mrf.mxu0
    %v399 = vadd.f32 %v253, %v398
    %400 = vdwg.mxu0
    %401 = vmatprep.subr.bf16.mxu0 0
    %402 = vmatpush1.bf16.msra.mxu0 0
    %403 = vmatprep.subr.bf16.mxu0 0
    %404 = vmatpush1.bf16.msra.mxu0 0
    %405 = vmatprep.subr.bf16.mxu0 0
    %406 = vmatpush1.bf16.msra.mxu0 0
    %407 = vmatprep.subr.bf16.mxu0 0
    %408 = vmatpush1.bf16.msra.mxu0 0
    %409 = vmatprep.subr.bf16.mxu0 0
    %410 = vmatpush1.bf16.msra.mxu0 0
    %411 = vmatprep.subr.bf16.mxu0 0
    %412 = vmatpush1.bf16.msra.mxu0 0
    %413 = vmatprep.subr.bf16.mxu0 0
    %414 = vmatpush1.bf16.msra.mxu0 0
    %415 = vmatprep.subr.bf16.mxu0 %v356
    %416 = vmatpush1.bf16.msra.mxu0 %v353
    %417 = vmatprep.subr.bf16.mxu0 0
    %418 = vmatpush2.bf16.msra.mxu0 0
    %419 = vmatprep.subr.bf16.mxu0 0
    %420 = vmatpush2.bf16.msra.mxu0 0
    %421 = vmatprep.subr.bf16.mxu0 0
    %422 = vmatpush2.bf16.msra.mxu0 0
    %423 = vmatprep.subr.bf16.mxu0 0
    %424 = vmatpush2.bf16.msra.mxu0 0
    %425 = vmatprep.subr.bf16.mxu0 0
    %426 = vmatpush2.bf16.msra.mxu0 0
    %427 = vmatprep.subr.bf16.mxu0 0
    %428 = vmatpush2.bf16.msra.mxu0 0
    %429 = vmatprep.subr.bf16.mxu0 0
    %430 = vmatpush2.bf16.msra.mxu0 0
    %431 = vmatprep.subr.bf16.mxu0 0
    %432 = vmatpush2.bf16.msra.mxu0 0
    %433 = vmatprep.mubr.bf16.mxu0 0
    %434 = vmatmul.mubr.bf16.gmra.mxu0 %v343
    %v435 = vpop.f32.mrf.mxu0
    %v436 = vadd.f32 %v257, %v435
    %v437 = vpop.f32.mrf.mxu0
    %v438 = vadd.f32 %v261, %v437
    %v439 = vpop.f32.mrf.mxu0
    %v440 = vadd.f32 %v257, %v439
    %v441 = vpop.f32.mrf.mxu0
    %v442 = vadd.f32 %v261, %v441
    %443 = vdwg.mxu0
    %v452 = vcombine.low %v393, %v395
    %v453 = vcombine.high %v393, %v395
    %v454 = vcombine.low %v436, %v438
    %v455 = vcombine.high %v436, %v438
    %v457 = vunpack.c.l.s4 1983009808
    %v458 = vunpack.c.0.s8 %v457
    %v459 = vlaneseq
    %v460 = vshrl.u32 %v459, 7
    %v461 = vsub.s32 %v458, %v460
    %v462 = vrot.slane %v452, %v461
    %v464 = vunpack.c.l.s4 1983009808
    %v465 = vunpack.c.0.s8 %v464
    %v466 = vlaneseq
    %v467 = vshrl.u32 %v466, 7
    %v468 = vsub.s32 %v465, %v467
    %v469 = vrot.slane %v453, %v468
    %v471 = vunpack.c.l.s4 1983009808
    %v472 = vunpack.c.0.s8 %v471
    %v473 = vlaneseq
    %v474 = vshrl.u32 %v473, 7
    %v475 = vsub.s32 %v472, %v474
    %v476 = vrot.slane %v454, %v475
    %v478 = vunpack.c.l.s4 1983009808
    %v479 = vunpack.c.0.s8 %v478
    %v480 = vlaneseq
    %v481 = vshrl.u32 %v480, 7
    %v482 = vsub.s32 %v479, %v481
    %v483 = vrot.slane %v455, %v482
    %v484 = vcombine.low %v462, %v476
    %v485 = vcombine.high %v462, %v476
    %v486 = vcombine.low %v469, %v483
    %v487 = vcombine.high %v469, %v483
    %v488 = vcombine.low %v397, %v399
    %v489 = vcombine.high %v397, %v399
    %v490 = vcombine.low %v440, %v442
    %v491 = vcombine.high %v440, %v442
    %v493 = vunpack.c.l.s4 1983009808
    %v494 = vunpack.c.0.s8 %v493
    %v495 = vlaneseq
    %v496 = vshrl.u32 %v495, 7
    %v497 = vsub.s32 %v494, %v496
    %v498 = vrot.slane %v488, %v497
    %v500 = vunpack.c.l.s4 1983009808
    %v501 = vunpack.c.0.s8 %v500
    %v502 = vlaneseq
    %v503 = vshrl.u32 %v502, 7
    %v504 = vsub.s32 %v501, %v503
    %v505 = vrot.slane %v489, %v504
    %v507 = vunpack.c.l.s4 1983009808
    %v508 = vunpack.c.0.s8 %v507
    %v509 = vlaneseq
    %v510 = vshrl.u32 %v509, 7
    %v511 = vsub.s32 %v508, %v510
    %v512 = vrot.slane %v490, %v511
    %v514 = vunpack.c.l.s4 1983009808
    %v515 = vunpack.c.0.s8 %v514
    %v516 = vlaneseq
    %v517 = vshrl.u32 %v516, 7
    %v518 = vsub.s32 %v515, %v517
    %v519 = vrot.slane %v491, %v518
    %v520 = vcombine.low %v498, %v512
    %v521 = vcombine.high %v498, %v512
    %v522 = vcombine.low %v505, %v519
    %v523 = vcombine.high %v505, %v519
    %532 = vst [vmem:[#allocation2] sm:$0xff] %v484
    %533 = vst [vmem:[#allocation2 + $0x8] sm:$0xff] %v485
    %534 = vst [vmem:[#allocation2 + $0x10] sm:$0xff] %v486
    %535 = vst [vmem:[#allocation2 + $0x18] sm:$0xff] %v487
    %536 = vst [vmem:[#allocation2 + $0x20] sm:$0xff] %v520
    %537 = vst [vmem:[#allocation2 + $0x28] sm:$0xff] %v521
    %538 = vst [vmem:[#allocation2 + $0x30] sm:$0xff] %v522
    %539 = vst [vmem:[#allocation2 + $0x38] sm:$0xff] %v523
    %v540 = vld [vmem:[#allocation3] sm:$0x3]
    %v541 = vld [vmem:[#allocation6] sm:$0x3]
    %v542 = vld [vmem:[#allocation2] sm:$0xff]
    %v543 = vpack.c.bf16 %v540, %v540
    %v544 = vld [vmem:[#allocation8] sm:$0xff]
    %v545 = vld [vmem:[#allocation8 + $0x8] sm:$0xff]
    %v546 = vld [vmem:[#allocation8 + $0x10] sm:$0xff]
    %v547 = vld [vmem:[#allocation8 + $0x18] sm:$0xff]
    %v548 = vld [vmem:[#allocation8 + $0x20] sm:$0xff]
    %v549 = vld [vmem:[#allocation8 + $0x28] sm:$0xff]
    %v550 = vld [vmem:[#allocation8 + $0x30] sm:$0xff]
    %v551 = vld [vmem:[#allocation8 + $0x38] sm:$0xff]
    %v552 = vld [vmem:[#allocation8 + $0x40] sm:$0xff]
    %v553 = vld [vmem:[#allocation8 + $0x48] sm:$0xff]
    %v554 = vld [vmem:[#allocation8 + $0x50] sm:$0xff]
    %v555 = vld [vmem:[#allocation8 + $0x58] sm:$0xff]
    %v556 = vld [vmem:[#allocation8 + $0x60] sm:$0xff]
    %v557 = vld [vmem:[#allocation8 + $0x68] sm:$0xff]
    %v558 = vld [vmem:[#allocation8 + $0x70] sm:$0xff]
    %v559 = vld [vmem:[#allocation8 + $0x78] sm:$0xff]
    %v560 = vld [vmem:[#allocation8 + $0x80] sm:$0xff]
    %v561 = vld [vmem:[#allocation8 + $0x88] sm:$0xff]
    %v562 = vld [vmem:[#allocation8 + $0x90] sm:$0xff]
    %v563 = vld [vmem:[#allocation8 + $0x98] sm:$0xff]
    %v564 = vld [vmem:[#allocation8 + $0xa0] sm:$0xff]
    %v565 = vld [vmem:[#allocation8 + $0xa8] sm:$0xff]
    %v566 = vld [vmem:[#allocation8 + $0xb0] sm:$0xff]
    %v567 = vld [vmem:[#allocation8 + $0xb8] sm:$0xff]
    %v568 = vld [vmem:[#allocation8 + $0xc0] sm:$0xff]
    %v569 = vld [vmem:[#allocation8 + $0xc8] sm:$0xff]
    %v570 = vld [vmem:[#allocation8 + $0xd0] sm:$0xff]
    %v571 = vld [vmem:[#allocation8 + $0xd8] sm:$0xff]
    %v572 = vld [vmem:[#allocation8 + $0xe0] sm:$0xff]
    %v573 = vld [vmem:[#allocation8 + $0xe8] sm:$0xff]
    %v574 = vld [vmem:[#allocation8 + $0xf0] sm:$0xff]
    %v575 = vld [vmem:[#allocation8 + $0xf8] sm:$0xff]
    %v608 = vunpack.c.l.b16 %v544
    %v609 = vunpack.c.h.b16 %v544
    %v610 = vunpack.c.l.b16 %v545
    %v611 = vunpack.c.h.b16 %v545
    %v612 = vunpack.c.l.b16 %v546
    %v613 = vunpack.c.h.b16 %v546
    %v614 = vunpack.c.l.b16 %v547
    %v615 = vunpack.c.h.b16 %v547
    %v616 = vunpack.c.l.b16 %v548
    %v617 = vunpack.c.h.b16 %v548
    %v618 = vunpack.c.l.b16 %v549
    %v619 = vunpack.c.h.b16 %v549
    %v620 = vunpack.c.l.b16 %v550
    %v621 = vunpack.c.h.b16 %v550
    %v622 = vunpack.c.l.b16 %v551
    %v623 = vunpack.c.h.b16 %v551
    %v624 = vunpack.c.l.b16 %v552
    %v625 = vunpack.c.h.b16 %v552
    %v626 = vunpack.c.l.b16 %v553
    %v627 = vunpack.c.h.b16 %v553
    %v628 = vunpack.c.l.b16 %v554
    %v629 = vunpack.c.h.b16 %v554
    %v630 = vunpack.c.l.b16 %v555
    %v631 = vunpack.c.h.b16 %v555
    %v632 = vunpack.c.l.b16 %v556
    %v633 = vunpack.c.h.b16 %v556
    %v634 = vunpack.c.l.b16 %v557
    %v635 = vunpack.c.h.b16 %v557
    %v636 = vunpack.c.l.b16 %v558
    %v637 = vunpack.c.h.b16 %v558
    %v638 = vunpack.c.l.b16 %v559
    %v639 = vunpack.c.h.b16 %v559
    %v640 = vunpack.c.l.b16 %v560
    %v641 = vunpack.c.h.b16 %v560
    %v642 = vunpack.c.l.b16 %v561
    %v643 = vunpack.c.h.b16 %v561
    %v644 = vunpack.c.l.b16 %v562
    %v645 = vunpack.c.h.b16 %v562
    %v646 = vunpack.c.l.b16 %v563
    %v647 = vunpack.c.h.b16 %v563
    %v648 = vunpack.c.l.b16 %v564
    %v649 = vunpack.c.h.b16 %v564
    %v650 = vunpack.c.l.b16 %v565
    %v651 = vunpack.c.h.b16 %v565
    %v652 = vunpack.c.l.b16 %v566
    %v653 = vunpack.c.h.b16 %v566
    %v654 = vunpack.c.l.b16 %v567
    %v655 = vunpack.c.h.b16 %v567
    %v656 = vunpack.c.l.b16 %v568
    %v657 = vunpack.c.h.b16 %v568
    %v658 = vunpack.c.l.b16 %v569
    %v659 = vunpack.c.h.b16 %v569
    %v660 = vunpack.c.l.b16 %v570
    %v661 = vunpack.c.h.b16 %v570
    %v662 = vunpack.c.l.b16 %v571
    %v663 = vunpack.c.h.b16 %v571
    %v664 = vunpack.c.l.b16 %v572
    %v665 = vunpack.c.h.b16 %v572
    %v666 = vunpack.c.l.b16 %v573
    %v667 = vunpack.c.h.b16 %v573
    %v668 = vunpack.c.l.b16 %v574
    %v669 = vunpack.c.h.b16 %v574
    %v670 = vunpack.c.l.b16 %v575
    %v671 = vunpack.c.h.b16 %v575
    %v672 = vpack.c.b16 %v612, %v608
    %v673 = vpack.c.b16 %v613, %v609
    %v674 = vpack.c.b16 %v614, %v610
    %v675 = vpack.c.b16 %v615, %v611
    %v676 = vpack.c.b16 %v620, %v616
    %v677 = vpack.c.b16 %v621, %v617
    %v678 = vpack.c.b16 %v622, %v618
    %v679 = vpack.c.b16 %v623, %v619
    %v680 = vpack.c.b16 %v628, %v624
    %v681 = vpack.c.b16 %v629, %v625
    %v682 = vpack.c.b16 %v630, %v626
    %v683 = vpack.c.b16 %v631, %v627
    %v684 = vpack.c.b16 %v636, %v632
    %v685 = vpack.c.b16 %v637, %v633
    %v686 = vpack.c.b16 %v638, %v634
    %v687 = vpack.c.b16 %v639, %v635
    %v688 = vpack.c.b16 %v644, %v640
    %v689 = vpack.c.b16 %v645, %v641
    %v690 = vpack.c.b16 %v646, %v642
    %v691 = vpack.c.b16 %v647, %v643
    %v692 = vpack.c.b16 %v652, %v648
    %v693 = vpack.c.b16 %v653, %v649
    %v694 = vpack.c.b16 %v654, %v650
    %v695 = vpack.c.b16 %v655, %v651
    %v696 = vpack.c.b16 %v660, %v656
    %v697 = vpack.c.b16 %v661, %v657
    %v698 = vpack.c.b16 %v662, %v658
    %v699 = vpack.c.b16 %v663, %v659
    %v700 = vpack.c.b16 %v668, %v664
    %v701 = vpack.c.b16 %v669, %v665
    %v702 = vpack.c.b16 %v670, %v666
    %v703 = vpack.c.b16 %v671, %v667
    %736 = vmatprep.subr.bf16.mxu0 %v701
    %737 = vmatpush1.bf16.msra.mxu0 %v700
    %738 = vmatprep.subr.bf16.mxu0 %v697
    %739 = vmatpush1.bf16.msra.mxu0 %v696
    %740 = vmatprep.subr.bf16.mxu0 %v693
    %741 = vmatpush1.bf16.msra.mxu0 %v692
    %742 = vmatprep.subr.bf16.mxu0 %v689
    %743 = vmatpush1.bf16.msra.mxu0 %v688
    %744 = vmatprep.subr.bf16.mxu0 %v685
    %745 = vmatpush1.bf16.msra.mxu0 %v684
    %746 = vmatprep.subr.bf16.mxu0 %v681
    %747 = vmatpush1.bf16.msra.mxu0 %v680
    %748 = vmatprep.subr.bf16.mxu0 %v677
    %749 = vmatpush1.bf16.msra.mxu0 %v676
    %750 = vmatprep.subr.bf16.mxu0 %v673
    %751 = vmatpush1.bf16.msra.mxu0 %v672
    %752 = vmatprep.subr.bf16.mxu0 0
    %753 = vmatpush2.bf16.msra.mxu0 0
    %754 = vmatprep.subr.bf16.mxu0 0
    %755 = vmatpush2.bf16.msra.mxu0 0
    %756 = vmatprep.subr.bf16.mxu0 0
    %757 = vmatpush2.bf16.msra.mxu0 0
    %758 = vmatprep.subr.bf16.mxu0 0
    %759 = vmatpush2.bf16.msra.mxu0 0
    %760 = vmatprep.subr.bf16.mxu0 0
    %761 = vmatpush2.bf16.msra.mxu0 0
    %762 = vmatprep.subr.bf16.mxu0 0
    %763 = vmatpush2.bf16.msra.mxu0 0
    %764 = vmatprep.subr.bf16.mxu0 0
    %765 = vmatpush2.bf16.msra.mxu0 0
    %766 = vmatprep.subr.bf16.mxu0 0
    %767 = vmatpush2.bf16.msra.mxu0 0
    %768 = vmatprep.mubr.bf16.mxu0 0
    %769 = vmatmul.mubr.bf16.gmra.mxu0 %v543
    %v770 = vpop.f32.mrf.mxu0
    %v771 = vadd.f32 0.0, %v770
    %v772 = vpop.f32.mrf.mxu0
    %v773 = vadd.f32 0.0, %v772
    %v774 = vpop.f32.mrf.mxu0
    %v775 = vpop.f32.mrf.mxu0
    %776 = vdwg.mxu0
    %777 = vmatprep.subr.bf16.mxu0 %v703
    %778 = vmatpush1.bf16.msra.mxu0 %v702
    %779 = vmatprep.subr.bf16.mxu0 %v699
    %780 = vmatpush1.bf16.msra.mxu0 %v698
    %781 = vmatprep.subr.bf16.mxu0 %v695
    %782 = vmatpush1.bf16.msra.mxu0 %v694
    %783 = vmatprep.subr.bf16.mxu0 %v691
    %784 = vmatpush1.bf16.msra.mxu0 %v690
    %785 = vmatprep.subr.bf16.mxu0 %v687
    %786 = vmatpush1.bf16.msra.mxu0 %v686
    %787 = vmatprep.subr.bf16.mxu0 %v683
    %788 = vmatpush1.bf16.msra.mxu0 %v682
    %789 = vmatprep.subr.bf16.mxu0 %v679
    %790 = vmatpush1.bf16.msra.mxu0 %v678
    %791 = vmatprep.subr.bf16.mxu0 %v675
    %792 = vmatpush1.bf16.msra.mxu0 %v674
    %793 = vmatprep.subr.bf16.mxu0 0
    %794 = vmatpush2.bf16.msra.mxu0 0
    %795 = vmatprep.subr.bf16.mxu0 0
    %796 = vmatpush2.bf16.msra.mxu0 0
    %797 = vmatprep.subr.bf16.mxu0 0
    %798 = vmatpush2.bf16.msra.mxu0 0
    %799 = vmatprep.subr.bf16.mxu0 0
    %800 = vmatpush2.bf16.msra.mxu0 0
    %801 = vmatprep.subr.bf16.mxu0 0
    %802 = vmatpush2.bf16.msra.mxu0 0
    %803 = vmatprep.subr.bf16.mxu0 0
    %804 = vmatpush2.bf16.msra.mxu0 0
    %805 = vmatprep.subr.bf16.mxu0 0
    %806 = vmatpush2.bf16.msra.mxu0 0
    %807 = vmatprep.subr.bf16.mxu0 0
    %808 = vmatpush2.bf16.msra.mxu0 0
    %809 = vmatprep.mubr.bf16.mxu0 0
    %810 = vmatmul.mubr.bf16.gmra.mxu0 %v543
    %v811 = vpop.f32.mrf.mxu0
    %v812 = vadd.f32 0.0, %v811
    %v813 = vpop.f32.mrf.mxu0
    %v814 = vadd.f32 0.0, %v813
    %v815 = vpop.f32.mrf.mxu0
    %v816 = vpop.f32.mrf.mxu0
    %817 = vdwg.mxu0
    %v822 = vcombine.low %v771, %v773
    %v823 = vcombine.low %v812, %v814
    %v825 = vunpack.c.l.s4 1983009808
    %v826 = vunpack.c.0.s8 %v825
    %v827 = vlaneseq
    %v828 = vshrl.u32 %v827, 7
    %v829 = vsub.s32 %v826, %v828
    %v830 = vrot.slane %v822, %v829
    %v832 = vunpack.c.l.s4 1983009808
    %v833 = vunpack.c.0.s8 %v832
    %v834 = vlaneseq
    %v835 = vshrl.u32 %v834, 7
    %v836 = vsub.s32 %v833, %v835
    %v837 = vrot.slane %v823, %v836
    %v838 = vcombine.low %v830, %v837
    %v840 = vadd.f32 %v542, %v838
    %v841 = vxor.u32 %v840, 2147483648
    %v842 = vmul.f32 %v841, 1.442695
    %v843 = vpow.pop %v842
    %v844 = vadd.f32 %v843, 1.0
    %v845 = vrcp.pop %v844
    %v846 = vmul.f32 1.0, %v845
    %v848 = vrot.slane %v840, 2
    %v850 = vxor.u32 %v848, 2147483648
    %v851 = vmul.f32 %v850, 1.442695
    %v852 = vpow.pop %v851
    %v853 = vadd.f32 %v852, 1.0
    %v854 = vrcp.pop %v853
    %v855 = vmul.f32 1.0, %v854
    %v856 = vrot.slane %v840, 4
    %v858 = vtanh.pop %v856
    %v859 = vrot.slane %v840, 6
    %v861 = vxor.u32 %v859, 2147483648
    %v862 = vmul.f32 %v861, 1.442695
    %v863 = vpow.pop %v862
    %v864 = vadd.f32 %v863, 1.0
    %v865 = vrcp.pop %v864
    %v866 = vmul.f32 1.0, %v865
    %v867 = vmul.f32 %v855, %v541
    %v868 = vmul.f32 %v846, %v858
    %v869 = vadd.f32 %v867, %v868
    %v870 = vtanh.pop %v869
    %v871 = vmul.f32 %v866, %v870
    %v872 = vpack.c.bf16 %v871, %v871
    %s873 = scalar_lea.vmem [#allocation2], 8
    %v874 = vld [vmem:[%s873] sm:$0xff]
    %875 = vmatprep.subr.bf16.mxu0 %v701
    %876 = vmatpush1.bf16.msra.mxu0 %v700
    %877 = vmatprep.subr.bf16.mxu0 %v697
    %878 = vmatpush1.bf16.msra.mxu0 %v696
    %879 = vmatprep.subr.bf16.mxu0 %v693
    %880 = vmatpush1.bf16.msra.mxu0 %v692
    %881 = vmatprep.subr.bf16.mxu0 %v689
    %882 = vmatpush1.bf16.msra.mxu0 %v688
    %883 = vmatprep.subr.bf16.mxu0 %v685
    %884 = vmatpush1.bf16.msra.mxu0 %v684
    %885 = vmatprep.subr.bf16.mxu0 %v681
    %886 = vmatpush1.bf16.msra.mxu0 %v680
    %887 = vmatprep.subr.bf16.mxu0 %v677
    %888 = vmatpush1.bf16.msra.mxu0 %v676
    %889 = vmatprep.subr.bf16.mxu0 %v673
    %890 = vmatpush1.bf16.msra.mxu0 %v672
    %891 = vmatprep.subr.bf16.mxu0 0
    %892 = vmatpush2.bf16.msra.mxu0 0
    %893 = vmatprep.subr.bf16.mxu0 0
    %894 = vmatpush2.bf16.msra.mxu0 0
    %895 = vmatprep.subr.bf16.mxu0 0
    %896 = vmatpush2.bf16.msra.mxu0 0
    %897 = vmatprep.subr.bf16.mxu0 0
    %898 = vmatpush2.bf16.msra.mxu0 0
    %899 = vmatprep.subr.bf16.mxu0 0
    %900 = vmatpush2.bf16.msra.mxu0 0
    %901 = vmatprep.subr.bf16.mxu0 0
    %902 = vmatpush2.bf16.msra.mxu0 0
    %903 = vmatprep.subr.bf16.mxu0 0
    %904 = vmatpush2.bf16.msra.mxu0 0
    %905 = vmatprep.subr.bf16.mxu0 0
    %906 = vmatpush2.bf16.msra.mxu0 0
    %907 = vmatprep.mubr.bf16.mxu0 0
    %908 = vmatmul.mubr.bf16.gmra.mxu0 %v872
    %v909 = vpop.f32.mrf.mxu0
    %v910 = vadd.f32 0.0, %v909
    %v911 = vpop.f32.mrf.mxu0
    %v912 = vadd.f32 0.0, %v911
    %v913 = vpop.f32.mrf.mxu0
    %v914 = vpop.f32.mrf.mxu0
    %915 = vdwg.mxu0
    %916 = vmatprep.subr.bf16.mxu0 %v703
    %917 = vmatpush1.bf16.msra.mxu0 %v702
    %918 = vmatprep.subr.bf16.mxu0 %v699
    %919 = vmatpush1.bf16.msra.mxu0 %v698
    %920 = vmatprep.subr.bf16.mxu0 %v695
    %921 = vmatpush1.bf16.msra.mxu0 %v694
    %922 = vmatprep.subr.bf16.mxu0 %v691
    %923 = vmatpush1.bf16.msra.mxu0 %v690
    %924 = vmatprep.subr.bf16.mxu0 %v687
    %925 = vmatpush1.bf16.msra.mxu0 %v686
    %926 = vmatprep.subr.bf16.mxu0 %v683
    %927 = vmatpush1.bf16.msra.mxu0 %v682
    %928 = vmatprep.subr.bf16.mxu0 %v679
    %929 = vmatpush1.bf16.msra.mxu0 %v678
    %930 = vmatprep.subr.bf16.mxu0 %v675
    %931 = vmatpush1.bf16.msra.mxu0 %v674
    %932 = vmatprep.subr.bf16.mxu0 0
    %933 = vmatpush2.bf16.msra.mxu0 0
    %934 = vmatprep.subr.bf16.mxu0 0
    %935 = vmatpush2.bf16.msra.mxu0 0
    %936 = vmatprep.subr.bf16.mxu0 0
    %937 = vmatpush2.bf16.msra.mxu0 0
    %938 = vmatprep.subr.bf16.mxu0 0
    %939 = vmatpush2.bf16.msra.mxu0 0
    %940 = vmatprep.subr.bf16.mxu0 0
    %941 = vmatpush2.bf16.msra.mxu0 0
    %942 = vmatprep.subr.bf16.mxu0 0
    %943 = vmatpush2.bf16.msra.mxu0 0
    %944 = vmatprep.subr.bf16.mxu0 0
    %945 = vmatpush2.bf16.msra.mxu0 0
    %946 = vmatprep.subr.bf16.mxu0 0
    %947 = vmatpush2.bf16.msra.mxu0 0
    %948 = vmatprep.mubr.bf16.mxu0 0
    %949 = vmatmul.mubr.bf16.gmra.mxu0 %v872
    %v950 = vpop.f32.mrf.mxu0
    %v951 = vadd.f32 0.0, %v950
    %v952 = vpop.f32.mrf.mxu0
    %v953 = vadd.f32 0.0, %v952
    %v954 = vpop.f32.mrf.mxu0
    %v955 = vpop.f32.mrf.mxu0
    %956 = vdwg.mxu0
    %v961 = vcombine.low %v910, %v912
    %v962 = vcombine.low %v951, %v953
    %v964 = vunpack.c.l.s4 1983009808
    %v965 = vunpack.c.0.s8 %v964
    %v966 = vlaneseq
    %v967 = vshrl.u32 %v966, 7
    %v968 = vsub.s32 %v965, %v967
    %v969 = vrot.slane %v961, %v968
    %v971 = vunpack.c.l.s4 1983009808
    %v972 = vunpack.c.0.s8 %v971
    %v973 = vlaneseq
    %v974 = vshrl.u32 %v973, 7
    %v975 = vsub.s32 %v972, %v974
    %v976 = vrot.slane %v962, %v975
    %v977 = vcombine.low %v969, %v976
    %v979 = vadd.f32 %v874, %v977
    %v980 = vxor.u32 %v979, 2147483648
    %v981 = vmul.f32 %v980, 1.442695
    %v982 = vpow.pop %v981
    %v983 = vadd.f32 %v982, 1.0
    %v984 = vrcp.pop %v983
    %v985 = vmul.f32 1.0, %v984
    %v987 = vrot.slane %v979, 2
    %v989 = vxor.u32 %v987, 2147483648
    %v990 = vmul.f32 %v989, 1.442695
    %v991 = vpow.pop %v990
    %v992 = vadd.f32 %v991, 1.0
    %v993 = vrcp.pop %v992
    %v994 = vmul.f32 1.0, %v993
    %v995 = vrot.slane %v979, 4
    %v997 = vtanh.pop %v995
    %v998 = vrot.slane %v979, 6
    %v1000 = vxor.u32 %v998, 2147483648
    %v1001 = vmul.f32 %v1000, 1.442695
    %v1002 = vpow.pop %v1001
    %v1003 = vadd.f32 %v1002, 1.0
    %v1004 = vrcp.pop %v1003
    %v1005 = vmul.f32 1.0, %v1004
    %v1006 = vmul.f32 %v994, %v869
    %v1007 = vmul.f32 %v985, %v997
    %v1008 = vadd.f32 %v1006, %v1007
    %v1009 = vtanh.pop %v1008
    %v1010 = vmul.f32 %v1005, %v1009
    %v1011 = vpack.c.bf16 %v1010, %v1010
    %s1012 = scalar_lea.vmem [#allocation2], 16
    %v1013 = vld [vmem:[%s1012] sm:$0xff]
    %1014 = vmatprep.subr.bf16.mxu0 %v701
    %1015 = vmatpush1.bf16.msra.mxu0 %v700
    %1016 = vmatprep.subr.bf16.mxu0 %v697
    %1017 = vmatpush1.bf16.msra.mxu0 %v696
    %1018 = vmatprep.subr.bf16.mxu0 %v693
    %1019 = vmatpush1.bf16.msra.mxu0 %v692
    %1020 = vmatprep.subr.bf16.mxu0 %v689
    %1021 = vmatpush1.bf16.msra.mxu0 %v688
    %1022 = vmatprep.subr.bf16.mxu0 %v685
    %1023 = vmatpush1.bf16.msra.mxu0 %v684
    %1024 = vmatprep.subr.bf16.mxu0 %v681
    %1025 = vmatpush1.bf16.msra.mxu0 %v680
    %1026 = vmatprep.subr.bf16.mxu0 %v677
    %1027 = vmatpush1.bf16.msra.mxu0 %v676
    %1028 = vmatprep.subr.bf16.mxu0 %v673
    %1029 = vmatpush1.bf16.msra.mxu0 %v672
    %1030 = vmatprep.subr.bf16.mxu0 0
    %1031 = vmatpush2.bf16.msra.mxu0 0
    %1032 = vmatprep.subr.bf16.mxu0 0
    %1033 = vmatpush2.bf16.msra.mxu0 0
    %1034 = vmatprep.subr.bf16.mxu0 0
    %1035 = vmatpush2.bf16.msra.mxu0 0
    %1036 = vmatprep.subr.bf16.mxu0 0
    %1037 = vmatpush2.bf16.msra.mxu0 0
    %1038 = vmatprep.subr.bf16.mxu0 0
    %1039 = vmatpush2.bf16.msra.mxu0 0
    %1040 = vmatprep.subr.bf16.mxu0 0
    %1041 = vmatpush2.bf16.msra.mxu0 0
    %1042 = vmatprep.subr.bf16.mxu0 0
    %1043 = vmatpush2.bf16.msra.mxu0 0
    %1044 = vmatprep.subr.bf16.mxu0 0
    %1045 = vmatpush2.bf16.msra.mxu0 0
    %1046 = vmatprep.mubr.bf16.mxu0 0
    %1047 = vmatmul.mubr.bf16.gmra.mxu0 %v1011
    %v1048 = vpop.f32.mrf.mxu0
    %v1049 = vadd.f32 0.0, %v1048
    %v1050 = vpop.f32.mrf.mxu0
    %v1051 = vadd.f32 0.0, %v1050
    %v1052 = vpop.f32.mrf.mxu0
    %v1053 = vpop.f32.mrf.mxu0
    %1054 = vdwg.mxu0
    %1055 = vmatprep.subr.bf16.mxu0 %v703
    %1056 = vmatpush1.bf16.msra.mxu0 %v702
    %1057 = vmatprep.subr.bf16.mxu0 %v699
    %1058 = vmatpush1.bf16.msra.mxu0 %v698
    %1059 = vmatprep.subr.bf16.mxu0 %v695
    %1060 = vmatpush1.bf16.msra.mxu0 %v694
    %1061 = vmatprep.subr.bf16.mxu0 %v691
    %1062 = vmatpush1.bf16.msra.mxu0 %v690
    %1063 = vmatprep.subr.bf16.mxu0 %v687
    %1064 = vmatpush1.bf16.msra.mxu0 %v686
    %1065 = vmatprep.subr.bf16.mxu0 %v683
    %1066 = vmatpush1.bf16.msra.mxu0 %v682
    %1067 = vmatprep.subr.bf16.mxu0 %v679
    %1068 = vmatpush1.bf16.msra.mxu0 %v678
    %1069 = vmatprep.subr.bf16.mxu0 %v675
    %1070 = vmatpush1.bf16.msra.mxu0 %v674
    %1071 = vmatprep.subr.bf16.mxu0 0
    %1072 = vmatpush2.bf16.msra.mxu0 0
    %1073 = vmatprep.subr.bf16.mxu0 0
    %1074 = vmatpush2.bf16.msra.mxu0 0
    %1075 = vmatprep.subr.bf16.mxu0 0
    %1076 = vmatpush2.bf16.msra.mxu0 0
    %1077 = vmatprep.subr.bf16.mxu0 0
    %1078 = vmatpush2.bf16.msra.mxu0 0
    %1079 = vmatprep.subr.bf16.mxu0 0
    %1080 = vmatpush2.bf16.msra.mxu0 0
    %1081 = vmatprep.subr.bf16.mxu0 0
    %1082 = vmatpush2.bf16.msra.mxu0 0
    %1083 = vmatprep.subr.bf16.mxu0 0
    %1084 = vmatpush2.bf16.msra.mxu0 0
    %1085 = vmatprep.subr.bf16.mxu0 0
    %1086 = vmatpush2.bf16.msra.mxu0 0
    %1087 = vmatprep.mubr.bf16.mxu0 0
    %1088 = vmatmul.mubr.bf16.gmra.mxu0 %v1011
    %v1089 = vpop.f32.mrf.mxu0
    %v1090 = vadd.f32 0.0, %v1089
    %v1091 = vpop.f32.mrf.mxu0
    %v1092 = vadd.f32 0.0, %v1091
    %v1093 = vpop.f32.mrf.mxu0
    %v1094 = vpop.f32.mrf.mxu0
    %1095 = vdwg.mxu0
    %v1100 = vcombine.low %v1049, %v1051
    %v1101 = vcombine.low %v1090, %v1092
    %v1103 = vunpack.c.l.s4 1983009808
    %v1104 = vunpack.c.0.s8 %v1103
    %v1105 = vlaneseq
    %v1106 = vshrl.u32 %v1105, 7
    %v1107 = vsub.s32 %v1104, %v1106
    %v1108 = vrot.slane %v1100, %v1107
    %v1110 = vunpack.c.l.s4 1983009808
    %v1111 = vunpack.c.0.s8 %v1110
    %v1112 = vlaneseq
    %v1113 = vshrl.u32 %v1112, 7
    %v1114 = vsub.s32 %v1111, %v1113
    %v1115 = vrot.slane %v1101, %v1114
    %v1116 = vcombine.low %v1108, %v1115
    %v1118 = vadd.f32 %v1013, %v1116
    %v1119 = vxor.u32 %v1118, 2147483648
    %v1120 = vmul.f32 %v1119, 1.442695
    %v1121 = vpow.pop %v1120
    %v1122 = vadd.f32 %v1121, 1.0
    %v1123 = vrcp.pop %v1122
    %v1124 = vmul.f32 1.0, %v1123
    %v1126 = vrot.slane %v1118, 2
    %v1128 = vxor.u32 %v1126, 2147483648
    %v1129 = vmul.f32 %v1128, 1.442695
    %v1130 = vpow.pop %v1129
    %v1131 = vadd.f32 %v1130, 1.0
    %v1132 = vrcp.pop %v1131
    %v1133 = vmul.f32 1.0, %v1132
    %v1134 = vrot.slane %v1118, 4
    %v1136 = vtanh.pop %v1134
    %v1137 = vrot.slane %v1118, 6
    %v1139 = vxor.u32 %v1137, 2147483648
    %v1140 = vmul.f32 %v1139, 1.442695
    %v1141 = vpow.pop %v1140
    %v1142 = vadd.f32 %v1141, 1.0
    %v1143 = vrcp.pop %v1142
    %v1144 = vmul.f32 1.0, %v1143
    %v1145 = vmul.f32 %v1133, %v1008
    %v1146 = vmul.f32 %v1124, %v1136
    %v1147 = vadd.f32 %v1145, %v1146
    %v1148 = vtanh.pop %v1147
    %v1149 = vmul.f32 %v1144, %v1148
    %v1150 = vpack.c.bf16 %v1149, %v1149
    %s1151 = scalar_lea.vmem [#allocation2], 24
    %v1152 = vld [vmem:[%s1151] sm:$0xff]
    %1153 = vmatprep.subr.bf16.mxu0 %v701
    %1154 = vmatpush1.bf16.msra.mxu0 %v700
    %1155 = vmatprep.subr.bf16.mxu0 %v697
    %1156 = vmatpush1.bf16.msra.mxu0 %v696
    %1157 = vmatprep.subr.bf16.mxu0 %v693
    %1158 = vmatpush1.bf16.msra.mxu0 %v692
    %1159 = vmatprep.subr.bf16.mxu0 %v689
    %1160 = vmatpush1.bf16.msra.mxu0 %v688
    %1161 = vmatprep.subr.bf16.mxu0 %v685
    %1162 = vmatpush1.bf16.msra.mxu0 %v684
    %1163 = vmatprep.subr.bf16.mxu0 %v681
    %1164 = vmatpush1.bf16.msra.mxu0 %v680
    %1165 = vmatprep.subr.bf16.mxu0 %v677
    %1166 = vmatpush1.bf16.msra.mxu0 %v676
    %1167 = vmatprep.subr.bf16.mxu0 %v673
    %1168 = vmatpush1.bf16.msra.mxu0 %v672
    %1169 = vmatprep.subr.bf16.mxu0 0
    %1170 = vmatpush2.bf16.msra.mxu0 0
    %1171 = vmatprep.subr.bf16.mxu0 0
    %1172 = vmatpush2.bf16.msra.mxu0 0
    %1173 = vmatprep.subr.bf16.mxu0 0
    %1174 = vmatpush2.bf16.msra.mxu0 0
    %1175 = vmatprep.subr.bf16.mxu0 0
    %1176 = vmatpush2.bf16.msra.mxu0 0
    %1177 = vmatprep.subr.bf16.mxu0 0
    %1178 = vmatpush2.bf16.msra.mxu0 0
    %1179 = vmatprep.subr.bf16.mxu0 0
    %1180 = vmatpush2.bf16.msra.mxu0 0
    %1181 = vmatprep.subr.bf16.mxu0 0
    %1182 = vmatpush2.bf16.msra.mxu0 0
    %1183 = vmatprep.subr.bf16.mxu0 0
    %1184 = vmatpush2.bf16.msra.mxu0 0
    %1185 = vmatprep.mubr.bf16.mxu0 0
    %1186 = vmatmul.mubr.bf16.gmra.mxu0 %v1150
    %v1187 = vpop.f32.mrf.mxu0
    %v1188 = vadd.f32 0.0, %v1187
    %v1189 = vpop.f32.mrf.mxu0
    %v1190 = vadd.f32 0.0, %v1189
    %v1191 = vpop.f32.mrf.mxu0
    %v1192 = vpop.f32.mrf.mxu0
    %1193 = vdwg.mxu0
    %1194 = vmatprep.subr.bf16.mxu0 %v703
    %1195 = vmatpush1.bf16.msra.mxu0 %v702
    %1196 = vmatprep.subr.bf16.mxu0 %v699
    %1197 = vmatpush1.bf16.msra.mxu0 %v698
    %1198 = vmatprep.subr.bf16.mxu0 %v695
    %1199 = vmatpush1.bf16.msra.mxu0 %v694
    %1200 = vmatprep.subr.bf16.mxu0 %v691
    %1201 = vmatpush1.bf16.msra.mxu0 %v690
    %1202 = vmatprep.subr.bf16.mxu0 %v687
    %1203 = vmatpush1.bf16.msra.mxu0 %v686
    %1204 = vmatprep.subr.bf16.mxu0 %v683
    %1205 = vmatpush1.bf16.msra.mxu0 %v682
    %1206 = vmatprep.subr.bf16.mxu0 %v679
    %1207 = vmatpush1.bf16.msra.mxu0 %v678
    %1208 = vmatprep.subr.bf16.mxu0 %v675
    %1209 = vmatpush1.bf16.msra.mxu0 %v674
    %1210 = vmatprep.subr.bf16.mxu0 0
    %1211 = vmatpush2.bf16.msra.mxu0 0
    %1212 = vmatprep.subr.bf16.mxu0 0
    %1213 = vmatpush2.bf16.msra.mxu0 0
    %1214 = vmatprep.subr.bf16.mxu0 0
    %1215 = vmatpush2.bf16.msra.mxu0 0
    %1216 = vmatprep.subr.bf16.mxu0 0
    %1217 = vmatpush2.bf16.msra.mxu0 0
    %1218 = vmatprep.subr.bf16.mxu0 0
    %1219 = vmatpush2.bf16.msra.mxu0 0
    %1220 = vmatprep.subr.bf16.mxu0 0
    %1221 = vmatpush2.bf16.msra.mxu0 0
    %1222 = vmatprep.subr.bf16.mxu0 0
    %1223 = vmatpush2.bf16.msra.mxu0 0
    %1224 = vmatprep.subr.bf16.mxu0 0
    %1225 = vmatpush2.bf16.msra.mxu0 0
    %1226 = vmatprep.mubr.bf16.mxu0 0
    %1227 = vmatmul.mubr.bf16.gmra.mxu0 %v1150
    %v1228 = vpop.f32.mrf.mxu0
    %v1229 = vadd.f32 0.0, %v1228
    %v1230 = vpop.f32.mrf.mxu0
    %v1231 = vadd.f32 0.0, %v1230
    %v1232 = vpop.f32.mrf.mxu0
    %v1233 = vpop.f32.mrf.mxu0
    %1234 = vdwg.mxu0
    %v1239 = vcombine.low %v1188, %v1190
    %v1240 = vcombine.low %v1229, %v1231
    %v1242 = vunpack.c.l.s4 1983009808
    %v1243 = vunpack.c.0.s8 %v1242
    %v1244 = vlaneseq
    %v1245 = vshrl.u32 %v1244, 7
    %v1246 = vsub.s32 %v1243, %v1245
    %v1247 = vrot.slane %v1239, %v1246
    %v1249 = vunpack.c.l.s4 1983009808
    %v1250 = vunpack.c.0.s8 %v1249
    %v1251 = vlaneseq
    %v1252 = vshrl.u32 %v1251, 7
    %v1253 = vsub.s32 %v1250, %v1252
    %v1254 = vrot.slane %v1240, %v1253
    %v1255 = vcombine.low %v1247, %v1254
    %v1257 = vadd.f32 %v1152, %v1255
    %v1258 = vxor.u32 %v1257, 2147483648
    %v1259 = vmul.f32 %v1258, 1.442695
    %v1260 = vpow.pop %v1259
    %v1261 = vadd.f32 %v1260, 1.0
    %v1262 = vrcp.pop %v1261
    %v1263 = vmul.f32 1.0, %v1262
    %v1265 = vrot.slane %v1257, 2
    %v1267 = vxor.u32 %v1265, 2147483648
    %v1268 = vmul.f32 %v1267, 1.442695
    %v1269 = vpow.pop %v1268
    %v1270 = vadd.f32 %v1269, 1.0
    %v1271 = vrcp.pop %v1270
    %v1272 = vmul.f32 1.0, %v1271
    %v1273 = vrot.slane %v1257, 4
    %v1275 = vtanh.pop %v1273
    %v1276 = vrot.slane %v1257, 6
    %v1278 = vxor.u32 %v1276, 2147483648
    %v1279 = vmul.f32 %v1278, 1.442695
    %v1280 = vpow.pop %v1279
    %v1281 = vadd.f32 %v1280, 1.0
    %v1282 = vrcp.pop %v1281
    %v1283 = vmul.f32 1.0, %v1282
    %v1284 = vmul.f32 %v1272, %v1147
    %v1285 = vmul.f32 %v1263, %v1275
    %v1286 = vadd.f32 %v1284, %v1285
    %v1287 = vtanh.pop %v1286
    %v1288 = vmul.f32 %v1283, %v1287
    %v1289 = vpack.c.bf16 %v1288, %v1288
    %s1290 = scalar_lea.vmem [#allocation2], 32
    %v1291 = vld [vmem:[%s1290] sm:$0xff]
    %1292 = vmatprep.subr.bf16.mxu0 %v701
    %1293 = vmatpush1.bf16.msra.mxu0 %v700
    %1294 = vmatprep.subr.bf16.mxu0 %v697
    %1295 = vmatpush1.bf16.msra.mxu0 %v696
    %1296 = vmatprep.subr.bf16.mxu0 %v693
    %1297 = vmatpush1.bf16.msra.mxu0 %v692
    %1298 = vmatprep.subr.bf16.mxu0 %v689
    %1299 = vmatpush1.bf16.msra.mxu0 %v688
    %1300 = vmatprep.subr.bf16.mxu0 %v685
    %1301 = vmatpush1.bf16.msra.mxu0 %v684
    %1302 = vmatprep.subr.bf16.mxu0 %v681
    %1303 = vmatpush1.bf16.msra.mxu0 %v680
    %1304 = vmatprep.subr.bf16.mxu0 %v677
    %1305 = vmatpush1.bf16.msra.mxu0 %v676
    %1306 = vmatprep.subr.bf16.mxu0 %v673
    %1307 = vmatpush1.bf16.msra.mxu0 %v672
    %1308 = vmatprep.subr.bf16.mxu0 0
    %1309 = vmatpush2.bf16.msra.mxu0 0
    %1310 = vmatprep.subr.bf16.mxu0 0
    %1311 = vmatpush2.bf16.msra.mxu0 0
    %1312 = vmatprep.subr.bf16.mxu0 0
    %1313 = vmatpush2.bf16.msra.mxu0 0
    %1314 = vmatprep.subr.bf16.mxu0 0
    %1315 = vmatpush2.bf16.msra.mxu0 0
    %1316 = vmatprep.subr.bf16.mxu0 0
    %1317 = vmatpush2.bf16.msra.mxu0 0
    %1318 = vmatprep.subr.bf16.mxu0 0
    %1319 = vmatpush2.bf16.msra.mxu0 0
    %1320 = vmatprep.subr.bf16.mxu0 0
    %1321 = vmatpush2.bf16.msra.mxu0 0
    %1322 = vmatprep.subr.bf16.mxu0 0
    %1323 = vmatpush2.bf16.msra.mxu0 0
    %1324 = vmatprep.mubr.bf16.mxu0 0
    %1325 = vmatmul.mubr.bf16.gmra.mxu0 %v1289
    %v1326 = vpop.f32.mrf.mxu0
    %v1327 = vadd.f32 0.0, %v1326
    %v1328 = vpop.f32.mrf.mxu0
    %v1329 = vadd.f32 0.0, %v1328
    %v1330 = vpop.f32.mrf.mxu0
    %v1331 = vpop.f32.mrf.mxu0
    %1332 = vdwg.mxu0
    %1333 = vmatprep.subr.bf16.mxu0 %v703
    %1334 = vmatpush1.bf16.msra.mxu0 %v702
    %1335 = vmatprep.subr.bf16.mxu0 %v699
    %1336 = vmatpush1.bf16.msra.mxu0 %v698
    %1337 = vmatprep.subr.bf16.mxu0 %v695
    %1338 = vmatpush1.bf16.msra.mxu0 %v694
    %1339 = vmatprep.subr.bf16.mxu0 %v691
    %1340 = vmatpush1.bf16.msra.mxu0 %v690
    %1341 = vmatprep.subr.bf16.mxu0 %v687
    %1342 = vmatpush1.bf16.msra.mxu0 %v686
    %1343 = vmatprep.subr.bf16.mxu0 %v683
    %1344 = vmatpush1.bf16.msra.mxu0 %v682
    %1345 = vmatprep.subr.bf16.mxu0 %v679
    %1346 = vmatpush1.bf16.msra.mxu0 %v678
    %1347 = vmatprep.subr.bf16.mxu0 %v675
    %1348 = vmatpush1.bf16.msra.mxu0 %v674
    %1349 = vmatprep.subr.bf16.mxu0 0
    %1350 = vmatpush2.bf16.msra.mxu0 0
    %1351 = vmatprep.subr.bf16.mxu0 0
    %1352 = vmatpush2.bf16.msra.mxu0 0
    %1353 = vmatprep.subr.bf16.mxu0 0
    %1354 = vmatpush2.bf16.msra.mxu0 0
    %1355 = vmatprep.subr.bf16.mxu0 0
    %1356 = vmatpush2.bf16.msra.mxu0 0
    %1357 = vmatprep.subr.bf16.mxu0 0
    %1358 = vmatpush2.bf16.msra.mxu0 0
    %1359 = vmatprep.subr.bf16.mxu0 0
    %1360 = vmatpush2.bf16.msra.mxu0 0
    %1361 = vmatprep.subr.bf16.mxu0 0
    %1362 = vmatpush2.bf16.msra.mxu0 0
    %1363 = vmatprep.subr.bf16.mxu0 0
    %1364 = vmatpush2.bf16.msra.mxu0 0
    %1365 = vmatprep.mubr.bf16.mxu0 0
    %1366 = vmatmul.mubr.bf16.gmra.mxu0 %v1289
    %v1367 = vpop.f32.mrf.mxu0
    %v1368 = vadd.f32 0.0, %v1367
    %v1369 = vpop.f32.mrf.mxu0
    %v1370 = vadd.f32 0.0, %v1369
    %v1371 = vpop.f32.mrf.mxu0
    %v1372 = vpop.f32.mrf.mxu0
    %1373 = vdwg.mxu0
    %v1378 = vcombine.low %v1327, %v1329
    %v1379 = vcombine.low %v1368, %v1370
    %v1381 = vunpack.c.l.s4 1983009808
    %v1382 = vunpack.c.0.s8 %v1381
    %v1383 = vlaneseq
    %v1384 = vshrl.u32 %v1383, 7
    %v1385 = vsub.s32 %v1382, %v1384
    %v1386 = vrot.slane %v1378, %v1385
    %v1388 = vunpack.c.l.s4 1983009808
    %v1389 = vunpack.c.0.s8 %v1388
    %v1390 = vlaneseq
    %v1391 = vshrl.u32 %v1390, 7
    %v1392 = vsub.s32 %v1389, %v1391
    %v1393 = vrot.slane %v1379, %v1392
    %v1394 = vcombine.low %v1386, %v1393
    %v1396 = vadd.f32 %v1291, %v1394
    %v1397 = vxor.u32 %v1396, 2147483648
    %v1398 = vmul.f32 %v1397, 1.442695
    %v1399 = vpow.pop %v1398
    %v1400 = vadd.f32 %v1399, 1.0
    %v1401 = vrcp.pop %v1400
    %v1402 = vmul.f32 1.0, %v1401
    %v1404 = vrot.slane %v1396, 2
    %v1406 = vxor.u32 %v1404, 2147483648
    %v1407 = vmul.f32 %v1406, 1.442695
    %v1408 = vpow.pop %v1407
    %v1409 = vadd.f32 %v1408, 1.0
    %v1410 = vrcp.pop %v1409
    %v1411 = vmul.f32 1.0, %v1410
    %v1412 = vrot.slane %v1396, 4
    %v1414 = vtanh.pop %v1412
    %v1415 = vrot.slane %v1396, 6
    %v1417 = vxor.u32 %v1415, 2147483648
    %v1418 = vmul.f32 %v1417, 1.442695
    %v1419 = vpow.pop %v1418
    %v1420 = vadd.f32 %v1419, 1.0
    %v1421 = vrcp.pop %v1420
    %v1422 = vmul.f32 1.0, %v1421
    %v1423 = vmul.f32 %v1411, %v1286
    %v1424 = vmul.f32 %v1402, %v1414
    %v1425 = vadd.f32 %v1423, %v1424
    %v1426 = vtanh.pop %v1425
    %v1427 = vmul.f32 %v1422, %v1426
    %v1428 = vpack.c.bf16 %v1427, %v1427
    %s1429 = scalar_lea.vmem [#allocation2], 40
    %v1430 = vld [vmem:[%s1429] sm:$0xff]
    %1431 = vmatprep.subr.bf16.mxu0 %v701
    %1432 = vmatpush1.bf16.msra.mxu0 %v700
    %1433 = vmatprep.subr.bf16.mxu0 %v697
    %1434 = vmatpush1.bf16.msra.mxu0 %v696
    %1435 = vmatprep.subr.bf16.mxu0 %v693
    %1436 = vmatpush1.bf16.msra.mxu0 %v692
    %1437 = vmatprep.subr.bf16.mxu0 %v689
    %1438 = vmatpush1.bf16.msra.mxu0 %v688
    %1439 = vmatprep.subr.bf16.mxu0 %v685
    %1440 = vmatpush1.bf16.msra.mxu0 %v684
    %1441 = vmatprep.subr.bf16.mxu0 %v681
    %1442 = vmatpush1.bf16.msra.mxu0 %v680
    %1443 = vmatprep.subr.bf16.mxu0 %v677
    %1444 = vmatpush1.bf16.msra.mxu0 %v676
    %1445 = vmatprep.subr.bf16.mxu0 %v673
    %1446 = vmatpush1.bf16.msra.mxu0 %v672
    %1447 = vmatprep.subr.bf16.mxu0 0
    %1448 = vmatpush2.bf16.msra.mxu0 0
    %1449 = vmatprep.subr.bf16.mxu0 0
    %1450 = vmatpush2.bf16.msra.mxu0 0
    %1451 = vmatprep.subr.bf16.mxu0 0
    %1452 = vmatpush2.bf16.msra.mxu0 0
    %1453 = vmatprep.subr.bf16.mxu0 0
    %1454 = vmatpush2.bf16.msra.mxu0 0
    %1455 = vmatprep.subr.bf16.mxu0 0
    %1456 = vmatpush2.bf16.msra.mxu0 0
    %1457 = vmatprep.subr.bf16.mxu0 0
    %1458 = vmatpush2.bf16.msra.mxu0 0
    %1459 = vmatprep.subr.bf16.mxu0 0
    %1460 = vmatpush2.bf16.msra.mxu0 0
    %1461 = vmatprep.subr.bf16.mxu0 0
    %1462 = vmatpush2.bf16.msra.mxu0 0
    %1463 = vmatprep.mubr.bf16.mxu0 0
    %1464 = vmatmul.mubr.bf16.gmra.mxu0 %v1428
    %v1465 = vpop.f32.mrf.mxu0
    %v1466 = vadd.f32 0.0, %v1465
    %v1467 = vpop.f32.mrf.mxu0
    %v1468 = vadd.f32 0.0, %v1467
    %v1469 = vpop.f32.mrf.mxu0
    %v1470 = vpop.f32.mrf.mxu0
    %1471 = vdwg.mxu0
    %1472 = vmatprep.subr.bf16.mxu0 %v703
    %1473 = vmatpush1.bf16.msra.mxu0 %v702
    %1474 = vmatprep.subr.bf16.mxu0 %v699
    %1475 = vmatpush1.bf16.msra.mxu0 %v698
    %1476 = vmatprep.subr.bf16.mxu0 %v695
    %1477 = vmatpush1.bf16.msra.mxu0 %v694
    %1478 = vmatprep.subr.bf16.mxu0 %v691
    %1479 = vmatpush1.bf16.msra.mxu0 %v690
    %1480 = vmatprep.subr.bf16.mxu0 %v687
    %1481 = vmatpush1.bf16.msra.mxu0 %v686
    %1482 = vmatprep.subr.bf16.mxu0 %v683
    %1483 = vmatpush1.bf16.msra.mxu0 %v682
    %1484 = vmatprep.subr.bf16.mxu0 %v679
    %1485 = vmatpush1.bf16.msra.mxu0 %v678
    %1486 = vmatprep.subr.bf16.mxu0 %v675
    %1487 = vmatpush1.bf16.msra.mxu0 %v674
    %1488 = vmatprep.subr.bf16.mxu0 0
    %1489 = vmatpush2.bf16.msra.mxu0 0
    %1490 = vmatprep.subr.bf16.mxu0 0
    %1491 = vmatpush2.bf16.msra.mxu0 0
    %1492 = vmatprep.subr.bf16.mxu0 0
    %1493 = vmatpush2.bf16.msra.mxu0 0
    %1494 = vmatprep.subr.bf16.mxu0 0
    %1495 = vmatpush2.bf16.msra.mxu0 0
    %1496 = vmatprep.subr.bf16.mxu0 0
    %1497 = vmatpush2.bf16.msra.mxu0 0
    %1498 = vmatprep.subr.bf16.mxu0 0
    %1499 = vmatpush2.bf16.msra.mxu0 0
    %1500 = vmatprep.subr.bf16.mxu0 0
    %1501 = vmatpush2.bf16.msra.mxu0 0
    %1502 = vmatprep.subr.bf16.mxu0 0
    %1503 = vmatpush2.bf16.msra.mxu0 0
    %1504 = vmatprep.mubr.bf16.mxu0 0
    %1505 = vmatmul.mubr.bf16.gmra.mxu0 %v1428
    %v1506 = vpop.f32.mrf.mxu0
    %v1507 = vadd.f32 0.0, %v1506
    %v1508 = vpop.f32.mrf.mxu0
    %v1509 = vadd.f32 0.0, %v1508
    %v1510 = vpop.f32.mrf.mxu0
    %v1511 = vpop.f32.mrf.mxu0
    %1512 = vdwg.mxu0
    %v1517 = vcombine.low %v1466, %v1468
    %v1518 = vcombine.low %v1507, %v1509
    %v1520 = vunpack.c.l.s4 1983009808
    %v1521 = vunpack.c.0.s8 %v1520
    %v1522 = vlaneseq
    %v1523 = vshrl.u32 %v1522, 7
    %v1524 = vsub.s32 %v1521, %v1523
    %v1525 = vrot.slane %v1517, %v1524
    %v1527 = vunpack.c.l.s4 1983009808
    %v1528 = vunpack.c.0.s8 %v1527
    %v1529 = vlaneseq
    %v1530 = vshrl.u32 %v1529, 7
    %v1531 = vsub.s32 %v1528, %v1530
    %v1532 = vrot.slane %v1518, %v1531
    %v1533 = vcombine.low %v1525, %v1532
    %v1535 = vadd.f32 %v1430, %v1533
    %v1536 = vxor.u32 %v1535, 2147483648
    %v1537 = vmul.f32 %v1536, 1.442695
    %v1538 = vpow.pop %v1537
    %v1539 = vadd.f32 %v1538, 1.0
    %v1540 = vrcp.pop %v1539
    %v1541 = vmul.f32 1.0, %v1540
    %v1543 = vrot.slane %v1535, 2
    %v1545 = vxor.u32 %v1543, 2147483648
    %v1546 = vmul.f32 %v1545, 1.442695
    %v1547 = vpow.pop %v1546
    %v1548 = vadd.f32 %v1547, 1.0
    %v1549 = vrcp.pop %v1548
    %v1550 = vmul.f32 1.0, %v1549
    %v1551 = vrot.slane %v1535, 4
    %v1553 = vtanh.pop %v1551
    %v1554 = vrot.slane %v1535, 6
    %v1556 = vxor.u32 %v1554, 2147483648
    %v1557 = vmul.f32 %v1556, 1.442695
    %v1558 = vpow.pop %v1557
    %v1559 = vadd.f32 %v1558, 1.0
    %v1560 = vrcp.pop %v1559
    %v1561 = vmul.f32 1.0, %v1560
    %v1562 = vmul.f32 %v1550, %v1425
    %v1563 = vmul.f32 %v1541, %v1553
    %v1564 = vadd.f32 %v1562, %v1563
    %v1565 = vtanh.pop %v1564
    %v1566 = vmul.f32 %v1561, %v1565
    %v1567 = vpack.c.bf16 %v1566, %v1566
    %s1568 = scalar_lea.vmem [#allocation2], 48
    %v1569 = vld [vmem:[%s1568] sm:$0xff]
    %1570 = vmatprep.subr.bf16.mxu0 %v701
    %1571 = vmatpush1.bf16.msra.mxu0 %v700
    %1572 = vmatprep.subr.bf16.mxu0 %v697
    %1573 = vmatpush1.bf16.msra.mxu0 %v696
    %1574 = vmatprep.subr.bf16.mxu0 %v693
    %1575 = vmatpush1.bf16.msra.mxu0 %v692
    %1576 = vmatprep.subr.bf16.mxu0 %v689
    %1577 = vmatpush1.bf16.msra.mxu0 %v688
    %1578 = vmatprep.subr.bf16.mxu0 %v685
    %1579 = vmatpush1.bf16.msra.mxu0 %v684
    %1580 = vmatprep.subr.bf16.mxu0 %v681
    %1581 = vmatpush1.bf16.msra.mxu0 %v680
    %1582 = vmatprep.subr.bf16.mxu0 %v677
    %1583 = vmatpush1.bf16.msra.mxu0 %v676
    %1584 = vmatprep.subr.bf16.mxu0 %v673
    %1585 = vmatpush1.bf16.msra.mxu0 %v672
    %1586 = vmatprep.subr.bf16.mxu0 0
    %1587 = vmatpush2.bf16.msra.mxu0 0
    %1588 = vmatprep.subr.bf16.mxu0 0
    %1589 = vmatpush2.bf16.msra.mxu0 0
    %1590 = vmatprep.subr.bf16.mxu0 0
    %1591 = vmatpush2.bf16.msra.mxu0 0
    %1592 = vmatprep.subr.bf16.mxu0 0
    %1593 = vmatpush2.bf16.msra.mxu0 0
    %1594 = vmatprep.subr.bf16.mxu0 0
    %1595 = vmatpush2.bf16.msra.mxu0 0
    %1596 = vmatprep.subr.bf16.mxu0 0
    %1597 = vmatpush2.bf16.msra.mxu0 0
    %1598 = vmatprep.subr.bf16.mxu0 0
    %1599 = vmatpush2.bf16.msra.mxu0 0
    %1600 = vmatprep.subr.bf16.mxu0 0
    %1601 = vmatpush2.bf16.msra.mxu0 0
    %1602 = vmatprep.mubr.bf16.mxu0 0
    %1603 = vmatmul.mubr.bf16.gmra.mxu0 %v1567
    %v1604 = vpop.f32.mrf.mxu0
    %v1605 = vadd.f32 0.0, %v1604
    %v1606 = vpop.f32.mrf.mxu0
    %v1607 = vadd.f32 0.0, %v1606
    %v1608 = vpop.f32.mrf.mxu0
    %v1609 = vpop.f32.mrf.mxu0
    %1610 = vdwg.mxu0
    %1611 = vmatprep.subr.bf16.mxu0 %v703
    %1612 = vmatpush1.bf16.msra.mxu0 %v702
    %1613 = vmatprep.subr.bf16.mxu0 %v699
    %1614 = vmatpush1.bf16.msra.mxu0 %v698
    %1615 = vmatprep.subr.bf16.mxu0 %v695
    %1616 = vmatpush1.bf16.msra.mxu0 %v694
    %1617 = vmatprep.subr.bf16.mxu0 %v691
    %1618 = vmatpush1.bf16.msra.mxu0 %v690
    %1619 = vmatprep.subr.bf16.mxu0 %v687
    %1620 = vmatpush1.bf16.msra.mxu0 %v686
    %1621 = vmatprep.subr.bf16.mxu0 %v683
    %1622 = vmatpush1.bf16.msra.mxu0 %v682
    %1623 = vmatprep.subr.bf16.mxu0 %v679
    %1624 = vmatpush1.bf16.msra.mxu0 %v678
    %1625 = vmatprep.subr.bf16.mxu0 %v675
    %1626 = vmatpush1.bf16.msra.mxu0 %v674
    %1627 = vmatprep.subr.bf16.mxu0 0
    %1628 = vmatpush2.bf16.msra.mxu0 0
    %1629 = vmatprep.subr.bf16.mxu0 0
    %1630 = vmatpush2.bf16.msra.mxu0 0
    %1631 = vmatprep.subr.bf16.mxu0 0
    %1632 = vmatpush2.bf16.msra.mxu0 0
    %1633 = vmatprep.subr.bf16.mxu0 0
    %1634 = vmatpush2.bf16.msra.mxu0 0
    %1635 = vmatprep.subr.bf16.mxu0 0
    %1636 = vmatpush2.bf16.msra.mxu0 0
    %1637 = vmatprep.subr.bf16.mxu0 0
    %1638 = vmatpush2.bf16.msra.mxu0 0
    %1639 = vmatprep.subr.bf16.mxu0 0
    %1640 = vmatpush2.bf16.msra.mxu0 0
    %1641 = vmatprep.subr.bf16.mxu0 0
    %1642 = vmatpush2.bf16.msra.mxu0 0
    %1643 = vmatprep.mubr.bf16.mxu0 0
    %1644 = vmatmul.mubr.bf16.gmra.mxu0 %v1567
    %v1645 = vpop.f32.mrf.mxu0
    %v1646 = vadd.f32 0.0, %v1645
    %v1647 = vpop.f32.mrf.mxu0
    %v1648 = vadd.f32 0.0, %v1647
    %v1649 = vpop.f32.mrf.mxu0
    %v1650 = vpop.f32.mrf.mxu0
    %1651 = vdwg.mxu0
    %v1656 = vcombine.low %v1605, %v1607
    %v1657 = vcombine.low %v1646, %v1648
    %v1659 = vunpack.c.l.s4 1983009808
    %v1660 = vunpack.c.0.s8 %v1659
    %v1661 = vlaneseq
    %v1662 = vshrl.u32 %v1661, 7
    %v1663 = vsub.s32 %v1660, %v1662
    %v1664 = vrot.slane %v1656, %v1663
    %v1666 = vunpack.c.l.s4 1983009808
    %v1667 = vunpack.c.0.s8 %v1666
    %v1668 = vlaneseq
    %v1669 = vshrl.u32 %v1668, 7
    %v1670 = vsub.s32 %v1667, %v1669
    %v1671 = vrot.slane %v1657, %v1670
    %v1672 = vcombine.low %v1664, %v1671
    %v1674 = vadd.f32 %v1569, %v1672
    %v1675 = vxor.u32 %v1674, 2147483648
    %v1676 = vmul.f32 %v1675, 1.442695
    %v1677 = vpow.pop %v1676
    %v1678 = vadd.f32 %v1677, 1.0
    %v1679 = vrcp.pop %v1678
    %v1680 = vmul.f32 1.0, %v1679
    %v1682 = vrot.slane %v1674, 2
    %v1684 = vxor.u32 %v1682, 2147483648
    %v1685 = vmul.f32 %v1684, 1.442695
    %v1686 = vpow.pop %v1685
    %v1687 = vadd.f32 %v1686, 1.0
    %v1688 = vrcp.pop %v1687
    %v1689 = vmul.f32 1.0, %v1688
    %v1690 = vrot.slane %v1674, 4
    %v1692 = vtanh.pop %v1690
    %v1693 = vrot.slane %v1674, 6
    %v1695 = vxor.u32 %v1693, 2147483648
    %v1696 = vmul.f32 %v1695, 1.442695
    %v1697 = vpow.pop %v1696
    %v1698 = vadd.f32 %v1697, 1.0
    %v1699 = vrcp.pop %v1698
    %v1700 = vmul.f32 1.0, %v1699
    %v1701 = vmul.f32 %v1689, %v1564
    %v1702 = vmul.f32 %v1680, %v1692
    %v1703 = vadd.f32 %v1701, %v1702
    %v1704 = vtanh.pop %v1703
    %v1705 = vmul.f32 %v1700, %v1704
    %v1706 = vpack.c.bf16 %v1705, %v1705
    %s1707 = scalar_lea.vmem [#allocation2], 56
    %v1708 = vld [vmem:[%s1707] sm:$0xff]
    %1709 = vmatprep.subr.bf16.mxu0 %v701
    %1710 = vmatpush1.bf16.msra.mxu0 %v700
    %1711 = vmatprep.subr.bf16.mxu0 %v697
    %1712 = vmatpush1.bf16.msra.mxu0 %v696
    %1713 = vmatprep.subr.bf16.mxu0 %v693
    %1714 = vmatpush1.bf16.msra.mxu0 %v692
    %1715 = vmatprep.subr.bf16.mxu0 %v689
    %1716 = vmatpush1.bf16.msra.mxu0 %v688
    %1717 = vmatprep.subr.bf16.mxu0 %v685
    %1718 = vmatpush1.bf16.msra.mxu0 %v684
    %1719 = vmatprep.subr.bf16.mxu0 %v681
    %1720 = vmatpush1.bf16.msra.mxu0 %v680
    %1721 = vmatprep.subr.bf16.mxu0 %v677
    %1722 = vmatpush1.bf16.msra.mxu0 %v676
    %1723 = vmatprep.subr.bf16.mxu0 %v673
    %1724 = vmatpush1.bf16.msra.mxu0 %v672
    %1725 = vmatprep.subr.bf16.mxu0 0
    %1726 = vmatpush2.bf16.msra.mxu0 0
    %1727 = vmatprep.subr.bf16.mxu0 0
    %1728 = vmatpush2.bf16.msra.mxu0 0
    %1729 = vmatprep.subr.bf16.mxu0 0
    %1730 = vmatpush2.bf16.msra.mxu0 0
    %1731 = vmatprep.subr.bf16.mxu0 0
    %1732 = vmatpush2.bf16.msra.mxu0 0
    %1733 = vmatprep.subr.bf16.mxu0 0
    %1734 = vmatpush2.bf16.msra.mxu0 0
    %1735 = vmatprep.subr.bf16.mxu0 0
    %1736 = vmatpush2.bf16.msra.mxu0 0
    %1737 = vmatprep.subr.bf16.mxu0 0
    %1738 = vmatpush2.bf16.msra.mxu0 0
    %1739 = vmatprep.subr.bf16.mxu0 0
    %1740 = vmatpush2.bf16.msra.mxu0 0
    %1741 = vmatprep.mubr.bf16.mxu0 0
    %1742 = vmatmul.mubr.bf16.gmra.mxu0 %v1706
    %v1743 = vpop.f32.mrf.mxu0
    %v1744 = vadd.f32 0.0, %v1743
    %v1745 = vpop.f32.mrf.mxu0
    %v1746 = vadd.f32 0.0, %v1745
    %v1747 = vpop.f32.mrf.mxu0
    %v1748 = vpop.f32.mrf.mxu0
    %1749 = vdwg.mxu0
    %1750 = vmatprep.subr.bf16.mxu0 %v703
    %1751 = vmatpush1.bf16.msra.mxu0 %v702
    %1752 = vmatprep.subr.bf16.mxu0 %v699
    %1753 = vmatpush1.bf16.msra.mxu0 %v698
    %1754 = vmatprep.subr.bf16.mxu0 %v695
    %1755 = vmatpush1.bf16.msra.mxu0 %v694
    %1756 = vmatprep.subr.bf16.mxu0 %v691
    %1757 = vmatpush1.bf16.msra.mxu0 %v690
    %1758 = vmatprep.subr.bf16.mxu0 %v687
    %1759 = vmatpush1.bf16.msra.mxu0 %v686
    %1760 = vmatprep.subr.bf16.mxu0 %v683
    %1761 = vmatpush1.bf16.msra.mxu0 %v682
    %1762 = vmatprep.subr.bf16.mxu0 %v679
    %1763 = vmatpush1.bf16.msra.mxu0 %v678
    %1764 = vmatprep.subr.bf16.mxu0 %v675
    %1765 = vmatpush1.bf16.msra.mxu0 %v674
    %1766 = vmatprep.subr.bf16.mxu0 0
    %1767 = vmatpush2.bf16.msra.mxu0 0
    %1768 = vmatprep.subr.bf16.mxu0 0
    %1769 = vmatpush2.bf16.msra.mxu0 0
    %1770 = vmatprep.subr.bf16.mxu0 0
    %1771 = vmatpush2.bf16.msra.mxu0 0
    %1772 = vmatprep.subr.bf16.mxu0 0
    %1773 = vmatpush2.bf16.msra.mxu0 0
    %1774 = vmatprep.subr.bf16.mxu0 0
    %1775 = vmatpush2.bf16.msra.mxu0 0
    %1776 = vmatprep.subr.bf16.mxu0 0
    %1777 = vmatpush2.bf16.msra.mxu0 0
    %1778 = vmatprep.subr.bf16.mxu0 0
    %1779 = vmatpush2.bf16.msra.mxu0 0
    %1780 = vmatprep.subr.bf16.mxu0 0
    %1781 = vmatpush2.bf16.msra.mxu0 0
    %1782 = vmatprep.mubr.bf16.mxu0 0
    %1783 = vmatmul.mubr.bf16.gmra.mxu0 %v1706
    %v1784 = vpop.f32.mrf.mxu0
    %v1785 = vadd.f32 0.0, %v1784
    %v1786 = vpop.f32.mrf.mxu0
    %v1787 = vadd.f32 0.0, %v1786
    %v1788 = vpop.f32.mrf.mxu0
    %v1789 = vpop.f32.mrf.mxu0
    %1790 = vdwg.mxu0
    %v1795 = vcombine.low %v1744, %v1746
    %v1796 = vcombine.low %v1785, %v1787
    %v1798 = vunpack.c.l.s4 1983009808
    %v1799 = vunpack.c.0.s8 %v1798
    %v1800 = vlaneseq
    %v1801 = vshrl.u32 %v1800, 7
    %v1802 = vsub.s32 %v1799, %v1801
    %v1803 = vrot.slane %v1795, %v1802
    %v1805 = vunpack.c.l.s4 1983009808
    %v1806 = vunpack.c.0.s8 %v1805
    %v1807 = vlaneseq
    %v1808 = vshrl.u32 %v1807, 7
    %v1809 = vsub.s32 %v1806, %v1808
    %v1810 = vrot.slane %v1796, %v1809
    %v1811 = vcombine.low %v1803, %v1810
    %v1813 = vadd.f32 %v1708, %v1811
    %v1814 = vxor.u32 %v1813, 2147483648
    %v1815 = vmul.f32 %v1814, 1.442695
    %v1816 = vpow.pop %v1815
    %v1817 = vadd.f32 %v1816, 1.0
    %v1818 = vrcp.pop %v1817
    %v1819 = vmul.f32 1.0, %v1818
    %v1821 = vrot.slane %v1813, 2
    %v1823 = vxor.u32 %v1821, 2147483648
    %v1824 = vmul.f32 %v1823, 1.442695
    %v1825 = vpow.pop %v1824
    %v1826 = vadd.f32 %v1825, 1.0
    %v1827 = vrcp.pop %v1826
    %v1828 = vmul.f32 1.0, %v1827
    %v1829 = vrot.slane %v1813, 4
    %v1831 = vtanh.pop %v1829
    %v1832 = vrot.slane %v1813, 6
    %v1834 = vxor.u32 %v1832, 2147483648
    %v1835 = vmul.f32 %v1834, 1.442695
    %v1836 = vpow.pop %v1835
    %v1837 = vadd.f32 %v1836, 1.0
    %v1838 = vrcp.pop %v1837
    %v1839 = vmul.f32 1.0, %v1838
    %v1840 = vmul.f32 %v1828, %v1703
    %v1841 = vmul.f32 %v1819, %v1831
    %v1842 = vadd.f32 %v1840, %v1841
    %v1843 = vtanh.pop %v1842
    %v1844 = vmul.f32 %v1839, %v1843
    %v1845 = vpack.c.bf16 %v1844, %v1844
    %1846 = vst [vmem:[#allocation24] sm:$0x3] %v1844
    %1847 = vst [vmem:[#allocation26] sm:$0x3] %v1842
    %v1848 = vld [vmem:[#allocation9] sm:$0xff]
    %v1849 = vld [vmem:[#allocation9 + $0x8] sm:$0xff]
    %v1850 = vld [vmem:[#allocation9 + $0x10] sm:$0xff]
    %v1851 = vld [vmem:[#allocation9 + $0x18] sm:$0xff]
    %v1852 = vld [vmem:[#allocation9 + $0x20] sm:$0xff]
    %v1853 = vld [vmem:[#allocation9 + $0x28] sm:$0xff]
    %v1854 = vld [vmem:[#allocation9 + $0x30] sm:$0xff]
    %v1855 = vld [vmem:[#allocation9 + $0x38] sm:$0xff]
    %v1856 = vld [vmem:[#allocation9 + $0x40] sm:$0xff]
    %v1857 = vld [vmem:[#allocation9 + $0x48] sm:$0xff]
    %v1858 = vld [vmem:[#allocation9 + $0x50] sm:$0xff]
    %v1859 = vld [vmem:[#allocation9 + $0x58] sm:$0xff]
    %v1860 = vld [vmem:[#allocation9 + $0x60] sm:$0xff]
    %v1861 = vld [vmem:[#allocation9 + $0x68] sm:$0xff]
    %v1862 = vld [vmem:[#allocation9 + $0x70] sm:$0xff]
    %v1863 = vld [vmem:[#allocation9 + $0x78] sm:$0xff]
    %v1864 = vld [vmem:[#allocation9 + $0x80] sm:$0xff]
    %v1865 = vld [vmem:[#allocation9 + $0x88] sm:$0xff]
    %v1866 = vld [vmem:[#allocation9 + $0x90] sm:$0xff]
    %v1867 = vld [vmem:[#allocation9 + $0x98] sm:$0xff]
    %v1868 = vld [vmem:[#allocation9 + $0xa0] sm:$0xff]
    %v1869 = vld [vmem:[#allocation9 + $0xa8] sm:$0xff]
    %v1870 = vld [vmem:[#allocation9 + $0xb0] sm:$0xff]
    %v1871 = vld [vmem:[#allocation9 + $0xb8] sm:$0xff]
    %v1872 = vld [vmem:[#allocation9 + $0xc0] sm:$0xff]
    %v1873 = vld [vmem:[#allocation9 + $0xc8] sm:$0xff]
    %v1874 = vld [vmem:[#allocation9 + $0xd0] sm:$0xff]
    %v1875 = vld [vmem:[#allocation9 + $0xd8] sm:$0xff]
    %v1876 = vld [vmem:[#allocation9 + $0xe0] sm:$0xff]
    %v1877 = vld [vmem:[#allocation9 + $0xe8] sm:$0xff]
    %v1878 = vld [vmem:[#allocation9 + $0xf0] sm:$0xff]
    %v1879 = vld [vmem:[#allocation9 + $0xf8] sm:$0xff]
    %v1880 = vld [vmem:[%s8] sm:$0xf]
    %v1882 = vlaneseq
    %v1883 = vshrl.u32 %v1882, 7
    %v1884 = vsub.s32 0, %v1883
    %v1885 = vrot.slane %v1880, %v1884
    %v1886 = vlaneseq
    %v1887 = vshrl.u32 %v1886, 7
    %v1888 = vsub.s32 1, %v1887
    %v1889 = vrot.slane %v1880, %v1888
    %v1890 = vlaneseq
    %v1891 = vshrl.u32 %v1890, 7
    %v1892 = vsub.s32 2, %v1891
    %v1893 = vrot.slane %v1880, %v1892
    %v1894 = vlaneseq
    %v1895 = vshrl.u32 %v1894, 7
    %v1896 = vsub.s32 3, %v1895
    %v1897 = vrot.slane %v1880, %v1896
    %v1910 = vcombine.low %v872, %v1011
    %v1911 = vcombine.low %v1150, %v1289
    %v1912 = vcombine.low %v1428, %v1567
    %v1913 = vcombine.low %v1706, %v1845
    %v1915 = vunpack.c.l.s4 1966171168
    %v1916 = vunpack.c.0.s8 %v1915
    %v1917 = vlaneseq
    %v1918 = vshrl.u32 %v1917, 7
    %v1919 = vsub.s32 %v1916, %v1918
    %v1920 = vrot.slane %v1910, %v1919
    %v1922 = vunpack.c.l.s4 1966171168
    %v1923 = vunpack.c.0.s8 %v1922
    %v1924 = vlaneseq
    %v1925 = vshrl.u32 %v1924, 7
    %v1926 = vsub.s32 %v1923, %v1925
    %v1927 = vrot.slane %v1911, %v1926
    %v1929 = vunpack.c.l.s4 1966171168
    %v1930 = vunpack.c.0.s8 %v1929
    %v1931 = vlaneseq
    %v1932 = vshrl.u32 %v1931, 7
    %v1933 = vsub.s32 %v1930, %v1932
    %v1934 = vrot.slane %v1912, %v1933
    %v1936 = vunpack.c.l.s4 1966171168
    %v1937 = vunpack.c.0.s8 %v1936
    %v1938 = vlaneseq
    %v1939 = vshrl.u32 %v1938, 7
    %v1940 = vsub.s32 %v1937, %v1939
    %v1941 = vrot.slane %v1913, %v1940
    %v1942 = vcombine.low %v1920, %v1927
    %v1943 = vcombine.low %v1934, %v1941
    %v1945 = vunpack.c.l.s4 1966171168
    %v1946 = vunpack.c.0.s8 %v1945
    %v1947 = vlaneseq
    %v1948 = vshrl.u32 %v1947, 7
    %v1949 = vsub.s32 %v1946, %v1948
    %v1950 = vrot.slane %v1942, %v1949
    %v1952 = vunpack.c.l.s4 1966171168
    %v1953 = vunpack.c.0.s8 %v1952
    %v1954 = vlaneseq
    %v1955 = vshrl.u32 %v1954, 7
    %v1956 = vsub.s32 %v1953, %v1955
    %v1957 = vrot.slane %v1943, %v1956
    %v1958 = vcombine.low %v1950, %v1957
    %v1992 = vunpack.c.l.b16 %v1848
    %v1993 = vunpack.c.h.b16 %v1848
    %v1994 = vunpack.c.l.b16 %v1849
    %v1995 = vunpack.c.h.b16 %v1849
    %v1996 = vunpack.c.l.b16 %v1850
    %v1997 = vunpack.c.h.b16 %v1850
    %v1998 = vunpack.c.l.b16 %v1851
    %v1999 = vunpack.c.h.b16 %v1851
    %v2000 = vunpack.c.l.b16 %v1852
    %v2001 = vunpack.c.h.b16 %v1852
    %v2002 = vunpack.c.l.b16 %v1853
    %v2003 = vunpack.c.h.b16 %v1853
    %v2004 = vunpack.c.l.b16 %v1854
    %v2005 = vunpack.c.h.b16 %v1854
    %v2006 = vunpack.c.l.b16 %v1855
    %v2007 = vunpack.c.h.b16 %v1855
    %v2008 = vunpack.c.l.b16 %v1856
    %v2009 = vunpack.c.h.b16 %v1856
    %v2010 = vunpack.c.l.b16 %v1857
    %v2011 = vunpack.c.h.b16 %v1857
    %v2012 = vunpack.c.l.b16 %v1858
    %v2013 = vunpack.c.h.b16 %v1858
    %v2014 = vunpack.c.l.b16 %v1859
    %v2015 = vunpack.c.h.b16 %v1859
    %v2016 = vunpack.c.l.b16 %v1860
    %v2017 = vunpack.c.h.b16 %v1860
    %v2018 = vunpack.c.l.b16 %v1861
    %v2019 = vunpack.c.h.b16 %v1861
    %v2020 = vunpack.c.l.b16 %v1862
    %v2021 = vunpack.c.h.b16 %v1862
    %v2022 = vunpack.c.l.b16 %v1863
    %v2023 = vunpack.c.h.b16 %v1863
    %v2024 = vunpack.c.l.b16 %v1864
    %v2025 = vunpack.c.h.b16 %v1864
    %v2026 = vunpack.c.l.b16 %v1865
    %v2027 = vunpack.c.h.b16 %v1865
    %v2028 = vunpack.c.l.b16 %v1866
    %v2029 = vunpack.c.h.b16 %v1866
    %v2030 = vunpack.c.l.b16 %v1867
    %v2031 = vunpack.c.h.b16 %v1867
    %v2032 = vunpack.c.l.b16 %v1868
    %v2033 = vunpack.c.h.b16 %v1868
    %v2034 = vunpack.c.l.b16 %v1869
    %v2035 = vunpack.c.h.b16 %v1869
    %v2036 = vunpack.c.l.b16 %v1870
    %v2037 = vunpack.c.h.b16 %v1870
    %v2038 = vunpack.c.l.b16 %v1871
    %v2039 = vunpack.c.h.b16 %v1871
    %v2040 = vunpack.c.l.b16 %v1872
    %v2041 = vunpack.c.h.b16 %v1872
    %v2042 = vunpack.c.l.b16 %v1873
    %v2043 = vunpack.c.h.b16 %v1873
    %v2044 = vunpack.c.l.b16 %v1874
    %v2045 = vunpack.c.h.b16 %v1874
    %v2046 = vunpack.c.l.b16 %v1875
    %v2047 = vunpack.c.h.b16 %v1875
    %v2048 = vunpack.c.l.b16 %v1876
    %v2049 = vunpack.c.h.b16 %v1876
    %v2050 = vunpack.c.l.b16 %v1877
    %v2051 = vunpack.c.h.b16 %v1877
    %v2052 = vunpack.c.l.b16 %v1878
    %v2053 = vunpack.c.h.b16 %v1878
    %v2054 = vunpack.c.l.b16 %v1879
    %v2055 = vunpack.c.h.b16 %v1879
    %v2056 = vpack.c.b16 %v1996, %v1992
    %v2057 = vpack.c.b16 %v1997, %v1993
    %v2058 = vpack.c.b16 %v1998, %v1994
    %v2059 = vpack.c.b16 %v1999, %v1995
    %v2060 = vpack.c.b16 %v2004, %v2000
    %v2061 = vpack.c.b16 %v2005, %v2001
    %v2062 = vpack.c.b16 %v2006, %v2002
    %v2063 = vpack.c.b16 %v2007, %v2003
    %v2064 = vpack.c.b16 %v2012, %v2008
    %v2065 = vpack.c.b16 %v2013, %v2009
    %v2066 = vpack.c.b16 %v2014, %v2010
    %v2067 = vpack.c.b16 %v2015, %v2011
    %v2068 = vpack.c.b16 %v2020, %v2016
    %v2069 = vpack.c.b16 %v2021, %v2017
    %v2070 = vpack.c.b16 %v2022, %v2018
    %v2071 = vpack.c.b16 %v2023, %v2019
    %v2072 = vpack.c.b16 %v2028, %v2024
    %v2073 = vpack.c.b16 %v2029, %v2025
    %v2074 = vpack.c.b16 %v2030, %v2026
    %v2075 = vpack.c.b16 %v2031, %v2027
    %v2076 = vpack.c.b16 %v2036, %v2032
    %v2077 = vpack.c.b16 %v2037, %v2033
    %v2078 = vpack.c.b16 %v2038, %v2034
    %v2079 = vpack.c.b16 %v2039, %v2035
    %v2080 = vpack.c.b16 %v2044, %v2040
    %v2081 = vpack.c.b16 %v2045, %v2041
    %v2082 = vpack.c.b16 %v2046, %v2042
    %v2083 = vpack.c.b16 %v2047, %v2043
    %v2084 = vpack.c.b16 %v2052, %v2048
    %v2085 = vpack.c.b16 %v2053, %v2049
    %v2086 = vpack.c.b16 %v2054, %v2050
    %v2087 = vpack.c.b16 %v2055, %v2051
    %2120 = vmatprep.subr.bf16.mxu0 %v2085
    %2121 = vmatpush1.bf16.msra.mxu0 %v2084
    %2122 = vmatprep.subr.bf16.mxu0 %v2081
    %2123 = vmatpush1.bf16.msra.mxu0 %v2080
    %2124 = vmatprep.subr.bf16.mxu0 %v2077
    %2125 = vmatpush1.bf16.msra.mxu0 %v2076
    %2126 = vmatprep.subr.bf16.mxu0 %v2073
    %2127 = vmatpush1.bf16.msra.mxu0 %v2072
    %2128 = vmatprep.subr.bf16.mxu0 %v2069
    %2129 = vmatpush1.bf16.msra.mxu0 %v2068
    %2130 = vmatprep.subr.bf16.mxu0 %v2065
    %2131 = vmatpush1.bf16.msra.mxu0 %v2064
    %2132 = vmatprep.subr.bf16.mxu0 %v2061
    %2133 = vmatpush1.bf16.msra.mxu0 %v2060
    %2134 = vmatprep.subr.bf16.mxu0 %v2057
    %2135 = vmatpush1.bf16.msra.mxu0 %v2056
    %2136 = vmatprep.subr.bf16.mxu0 0
    %2137 = vmatpush2.bf16.msra.mxu0 0
    %2138 = vmatprep.subr.bf16.mxu0 0
    %2139 = vmatpush2.bf16.msra.mxu0 0
    %2140 = vmatprep.subr.bf16.mxu0 0
    %2141 = vmatpush2.bf16.msra.mxu0 0
    %2142 = vmatprep.subr.bf16.mxu0 0
    %2143 = vmatpush2.bf16.msra.mxu0 0
    %2144 = vmatprep.subr.bf16.mxu0 0
    %2145 = vmatpush2.bf16.msra.mxu0 0
    %2146 = vmatprep.subr.bf16.mxu0 0
    %2147 = vmatpush2.bf16.msra.mxu0 0
    %2148 = vmatprep.subr.bf16.mxu0 0
    %2149 = vmatpush2.bf16.msra.mxu0 0
    %2150 = vmatprep.subr.bf16.mxu0 0
    %2151 = vmatpush2.bf16.msra.mxu0 0
    %2152 = vmatprep.mubr.bf16.mxu0 0
    %2153 = vmatmul.mubr.bf16.gmra.mxu0 %v1958
    %v2154 = vpop.f32.mrf.mxu0
    %v2155 = vadd.f32 %v1885, %v2154
    %v2156 = vpop.f32.mrf.mxu0
    %v2157 = vadd.f32 %v1889, %v2156
    %v2158 = vpop.f32.mrf.mxu0
    %v2159 = vadd.f32 %v1885, %v2158
    %v2160 = vpop.f32.mrf.mxu0
    %v2161 = vadd.f32 %v1889, %v2160
    %2162 = vdwg.mxu0
    %2163 = vmatprep.subr.bf16.mxu0 %v2087
    %2164 = vmatpush1.bf16.msra.mxu0 %v2086
    %2165 = vmatprep.subr.bf16.mxu0 %v2083
    %2166 = vmatpush1.bf16.msra.mxu0 %v2082
    %2167 = vmatprep.subr.bf16.mxu0 %v2079
    %2168 = vmatpush1.bf16.msra.mxu0 %v2078
    %2169 = vmatprep.subr.bf16.mxu0 %v2075
    %2170 = vmatpush1.bf16.msra.mxu0 %v2074
    %2171 = vmatprep.subr.bf16.mxu0 %v2071
    %2172 = vmatpush1.bf16.msra.mxu0 %v2070
    %2173 = vmatprep.subr.bf16.mxu0 %v2067
    %2174 = vmatpush1.bf16.msra.mxu0 %v2066
    %2175 = vmatprep.subr.bf16.mxu0 %v2063
    %2176 = vmatpush1.bf16.msra.mxu0 %v2062
    %2177 = vmatprep.subr.bf16.mxu0 %v2059
    %2178 = vmatpush1.bf16.msra.mxu0 %v2058
    %2179 = vmatprep.subr.bf16.mxu0 0
    %2180 = vmatpush2.bf16.msra.mxu0 0
    %2181 = vmatprep.subr.bf16.mxu0 0
    %2182 = vmatpush2.bf16.msra.mxu0 0
    %2183 = vmatprep.subr.bf16.mxu0 0
    %2184 = vmatpush2.bf16.msra.mxu0 0
    %2185 = vmatprep.subr.bf16.mxu0 0
    %2186 = vmatpush2.bf16.msra.mxu0 0
    %2187 = vmatprep.subr.bf16.mxu0 0
    %2188 = vmatpush2.bf16.msra.mxu0 0
    %2189 = vmatprep.subr.bf16.mxu0 0
    %2190 = vmatpush2.bf16.msra.mxu0 0
    %2191 = vmatprep.subr.bf16.mxu0 0
    %2192 = vmatpush2.bf16.msra.mxu0 0
    %2193 = vmatprep.subr.bf16.mxu0 0
    %2194 = vmatpush2.bf16.msra.mxu0 0
    %2195 = vmatprep.mubr.bf16.mxu0 0
    %2196 = vmatmul.mubr.bf16.gmra.mxu0 %v1958
    %v2197 = vpop.f32.mrf.mxu0
    %v2198 = vadd.f32 %v1893, %v2197
    %v2199 = vpop.f32.mrf.mxu0
    %v2200 = vadd.f32 %v1897, %v2199
    %v2201 = vpop.f32.mrf.mxu0
    %v2202 = vadd.f32 %v1893, %v2201
    %v2203 = vpop.f32.mrf.mxu0
    %v2204 = vadd.f32 %v1897, %v2203
    %2205 = vdwg.mxu0
    %v2214 = vcombine.low %v2155, %v2157
    %v2215 = vcombine.high %v2155, %v2157
    %v2216 = vcombine.low %v2198, %v2200
    %v2217 = vcombine.high %v2198, %v2200
    %v2219 = vunpack.c.l.s4 1983009808
    %v2220 = vunpack.c.0.s8 %v2219
    %v2221 = vlaneseq
    %v2222 = vshrl.u32 %v2221, 7
    %v2223 = vsub.s32 %v2220, %v2222
    %v2224 = vrot.slane %v2214, %v2223
    %v2226 = vunpack.c.l.s4 1983009808
    %v2227 = vunpack.c.0.s8 %v2226
    %v2228 = vlaneseq
    %v2229 = vshrl.u32 %v2228, 7
    %v2230 = vsub.s32 %v2227, %v2229
    %v2231 = vrot.slane %v2215, %v2230
    %v2233 = vunpack.c.l.s4 1983009808
    %v2234 = vunpack.c.0.s8 %v2233
    %v2235 = vlaneseq
    %v2236 = vshrl.u32 %v2235, 7
    %v2237 = vsub.s32 %v2234, %v2236
    %v2238 = vrot.slane %v2216, %v2237
    %v2240 = vunpack.c.l.s4 1983009808
    %v2241 = vunpack.c.0.s8 %v2240
    %v2242 = vlaneseq
    %v2243 = vshrl.u32 %v2242, 7
    %v2244 = vsub.s32 %v2241, %v2243
    %v2245 = vrot.slane %v2217, %v2244
    %v2246 = vcombine.low %v2224, %v2238
    %v2247 = vcombine.high %v2224, %v2238
    %v2248 = vcombine.low %v2231, %v2245
    %v2249 = vcombine.high %v2231, %v2245
    %v2250 = vcombine.low %v2159, %v2161
    %v2251 = vcombine.high %v2159, %v2161
    %v2252 = vcombine.low %v2202, %v2204
    %v2253 = vcombine.high %v2202, %v2204
    %v2255 = vunpack.c.l.s4 1983009808
    %v2256 = vunpack.c.0.s8 %v2255
    %v2257 = vlaneseq
    %v2258 = vshrl.u32 %v2257, 7
    %v2259 = vsub.s32 %v2256, %v2258
    %v2260 = vrot.slane %v2250, %v2259
    %v2262 = vunpack.c.l.s4 1983009808
    %v2263 = vunpack.c.0.s8 %v2262
    %v2264 = vlaneseq
    %v2265 = vshrl.u32 %v2264, 7
    %v2266 = vsub.s32 %v2263, %v2265
    %v2267 = vrot.slane %v2251, %v2266
    %v2269 = vunpack.c.l.s4 1983009808
    %v2270 = vunpack.c.0.s8 %v2269
    %v2271 = vlaneseq
    %v2272 = vshrl.u32 %v2271, 7
    %v2273 = vsub.s32 %v2270, %v2272
    %v2274 = vrot.slane %v2252, %v2273
    %v2276 = vunpack.c.l.s4 1983009808
    %v2277 = vunpack.c.0.s8 %v2276
    %v2278 = vlaneseq
    %v2279 = vshrl.u32 %v2278, 7
    %v2280 = vsub.s32 %v2277, %v2279
    %v2281 = vrot.slane %v2253, %v2280
    %v2282 = vcombine.low %v2260, %v2274
    %v2283 = vcombine.high %v2260, %v2274
    %v2284 = vcombine.low %v2267, %v2281
    %v2285 = vcombine.high %v2267, %v2281
    %2294 = vst [vmem:[#allocation2] sm:$0xff] %v2246
    %2295 = vst [vmem:[#allocation2 + $0x8] sm:$0xff] %v2247
    %2296 = vst [vmem:[#allocation2 + $0x10] sm:$0xff] %v2248
    %2297 = vst [vmem:[#allocation2 + $0x18] sm:$0xff] %v2249
    %2298 = vst [vmem:[#allocation2 + $0x20] sm:$0xff] %v2282
    %2299 = vst [vmem:[#allocation2 + $0x28] sm:$0xff] %v2283
    %2300 = vst [vmem:[#allocation2 + $0x30] sm:$0xff] %v2284
    %2301 = vst [vmem:[#allocation2 + $0x38] sm:$0xff] %v2285
    %s2302 = scalar_lea.vmem [#allocation3], 2
    %v2303 = vld [vmem:[%s2302] sm:$0x3]
    %s2304 = scalar_lea.vmem [#allocation6], 2
    %v2305 = vld [vmem:[%s2304] sm:$0x3]
    %v2306 = vld [vmem:[#allocation2] sm:$0xff]
    %v2307 = vpack.c.bf16 %v2303, %v2303
    %v2308 = vld [vmem:[#allocation11] sm:$0xff]
    %v2309 = vld [vmem:[#allocation11 + $0x8] sm:$0xff]
    %v2310 = vld [vmem:[#allocation11 + $0x10] sm:$0xff]
    %v2311 = vld [vmem:[#allocation11 + $0x18] sm:$0xff]
    %v2312 = vld [vmem:[#allocation11 + $0x20] sm:$0xff]
    %v2313 = vld [vmem:[#allocation11 + $0x28] sm:$0xff]
    %v2314 = vld [vmem:[#allocation11 + $0x30] sm:$0xff]
    %v2315 = vld [vmem:[#allocation11 + $0x38] sm:$0xff]
    %v2316 = vld [vmem:[#allocation11 + $0x40] sm:$0xff]
    %v2317 = vld [vmem:[#allocation11 + $0x48] sm:$0xff]
    %v2318 = vld [vmem:[#allocation11 + $0x50] sm:$0xff]
    %v2319 = vld [vmem:[#allocation11 + $0x58] sm:$0xff]
    %v2320 = vld [vmem:[#allocation11 + $0x60] sm:$0xff]
    %v2321 = vld [vmem:[#allocation11 + $0x68] sm:$0xff]
    %v2322 = vld [vmem:[#allocation11 + $0x70] sm:$0xff]
    %v2323 = vld [vmem:[#allocation11 + $0x78] sm:$0xff]
    %v2324 = vld [vmem:[#allocation11 + $0x80] sm:$0xff]
    %v2325 = vld [vmem:[#allocation11 + $0x88] sm:$0xff]
    %v2326 = vld [vmem:[#allocation11 + $0x90] sm:$0xff]
    %v2327 = vld [vmem:[#allocation11 + $0x98] sm:$0xff]
    %v2328 = vld [vmem:[#allocation11 + $0xa0] sm:$0xff]
    %v2329 = vld [vmem:[#allocation11 + $0xa8] sm:$0xff]
    %v2330 = vld [vmem:[#allocation11 + $0xb0] sm:$0xff]
    %v2331 = vld [vmem:[#allocation11 + $0xb8] sm:$0xff]
    %v2332 = vld [vmem:[#allocation11 + $0xc0] sm:$0xff]
    %v2333 = vld [vmem:[#allocation11 + $0xc8] sm:$0xff]
    %v2334 = vld [vmem:[#allocation11 + $0xd0] sm:$0xff]
    %v2335 = vld [vmem:[#allocation11 + $0xd8] sm:$0xff]
    %v2336 = vld [vmem:[#allocation11 + $0xe0] sm:$0xff]
    %v2337 = vld [vmem:[#allocation11 + $0xe8] sm:$0xff]
    %v2338 = vld [vmem:[#allocation11 + $0xf0] sm:$0xff]
    %v2339 = vld [vmem:[#allocation11 + $0xf8] sm:$0xff]
    %v2372 = vunpack.c.l.b16 %v2308
    %v2373 = vunpack.c.h.b16 %v2308
    %v2374 = vunpack.c.l.b16 %v2309
    %v2375 = vunpack.c.h.b16 %v2309
    %v2376 = vunpack.c.l.b16 %v2310
    %v2377 = vunpack.c.h.b16 %v2310
    %v2378 = vunpack.c.l.b16 %v2311
    %v2379 = vunpack.c.h.b16 %v2311
    %v2380 = vunpack.c.l.b16 %v2312
    %v2381 = vunpack.c.h.b16 %v2312
    %v2382 = vunpack.c.l.b16 %v2313
    %v2383 = vunpack.c.h.b16 %v2313
    %v2384 = vunpack.c.l.b16 %v2314
    %v2385 = vunpack.c.h.b16 %v2314
    %v2386 = vunpack.c.l.b16 %v2315
    %v2387 = vunpack.c.h.b16 %v2315
    %v2388 = vunpack.c.l.b16 %v2316
    %v2389 = vunpack.c.h.b16 %v2316
    %v2390 = vunpack.c.l.b16 %v2317
    %v2391 = vunpack.c.h.b16 %v2317
    %v2392 = vunpack.c.l.b16 %v2318
    %v2393 = vunpack.c.h.b16 %v2318
    %v2394 = vunpack.c.l.b16 %v2319
    %v2395 = vunpack.c.h.b16 %v2319
    %v2396 = vunpack.c.l.b16 %v2320
    %v2397 = vunpack.c.h.b16 %v2320
    %v2398 = vunpack.c.l.b16 %v2321
    %v2399 = vunpack.c.h.b16 %v2321
    %v2400 = vunpack.c.l.b16 %v2322
    %v2401 = vunpack.c.h.b16 %v2322
    %v2402 = vunpack.c.l.b16 %v2323
    %v2403 = vunpack.c.h.b16 %v2323
    %v2404 = vunpack.c.l.b16 %v2324
    %v2405 = vunpack.c.h.b16 %v2324
    %v2406 = vunpack.c.l.b16 %v2325
    %v2407 = vunpack.c.h.b16 %v2325
    %v2408 = vunpack.c.l.b16 %v2326
    %v2409 = vunpack.c.h.b16 %v2326
    %v2410 = vunpack.c.l.b16 %v2327
    %v2411 = vunpack.c.h.b16 %v2327
    %v2412 = vunpack.c.l.b16 %v2328
    %v2413 = vunpack.c.h.b16 %v2328
    %v2414 = vunpack.c.l.b16 %v2329
    %v2415 = vunpack.c.h.b16 %v2329
    %v2416 = vunpack.c.l.b16 %v2330
    %v2417 = vunpack.c.h.b16 %v2330
    %v2418 = vunpack.c.l.b16 %v2331
    %v2419 = vunpack.c.h.b16 %v2331
    %v2420 = vunpack.c.l.b16 %v2332
    %v2421 = vunpack.c.h.b16 %v2332
    %v2422 = vunpack.c.l.b16 %v2333
    %v2423 = vunpack.c.h.b16 %v2333
    %v2424 = vunpack.c.l.b16 %v2334
    %v2425 = vunpack.c.h.b16 %v2334
    %v2426 = vunpack.c.l.b16 %v2335
    %v2427 = vunpack.c.h.b16 %v2335
    %v2428 = vunpack.c.l.b16 %v2336
    %v2429 = vunpack.c.h.b16 %v2336
    %v2430 = vunpack.c.l.b16 %v2337
    %v2431 = vunpack.c.h.b16 %v2337
    %v2432 = vunpack.c.l.b16 %v2338
    %v2433 = vunpack.c.h.b16 %v2338
    %v2434 = vunpack.c.l.b16 %v2339
    %v2435 = vunpack.c.h.b16 %v2339
    %v2436 = vpack.c.b16 %v2376, %v2372
    %v2437 = vpack.c.b16 %v2377, %v2373
    %v2438 = vpack.c.b16 %v2378, %v2374
    %v2439 = vpack.c.b16 %v2379, %v2375
    %v2440 = vpack.c.b16 %v2384, %v2380
    %v2441 = vpack.c.b16 %v2385, %v2381
    %v2442 = vpack.c.b16 %v2386, %v2382
    %v2443 = vpack.c.b16 %v2387, %v2383
    %v2444 = vpack.c.b16 %v2392, %v2388
    %v2445 = vpack.c.b16 %v2393, %v2389
    %v2446 = vpack.c.b16 %v2394, %v2390
    %v2447 = vpack.c.b16 %v2395, %v2391
    %v2448 = vpack.c.b16 %v2400, %v2396
    %v2449 = vpack.c.b16 %v2401, %v2397
    %v2450 = vpack.c.b16 %v2402, %v2398
    %v2451 = vpack.c.b16 %v2403, %v2399
    %v2452 = vpack.c.b16 %v2408, %v2404
    %v2453 = vpack.c.b16 %v2409, %v2405
    %v2454 = vpack.c.b16 %v2410, %v2406
    %v2455 = vpack.c.b16 %v2411, %v2407
    %v2456 = vpack.c.b16 %v2416, %v2412
    %v2457 = vpack.c.b16 %v2417, %v2413
    %v2458 = vpack.c.b16 %v2418, %v2414
    %v2459 = vpack.c.b16 %v2419, %v2415
    %v2460 = vpack.c.b16 %v2424, %v2420
    %v2461 = vpack.c.b16 %v2425, %v2421
    %v2462 = vpack.c.b16 %v2426, %v2422
    %v2463 = vpack.c.b16 %v2427, %v2423
    %v2464 = vpack.c.b16 %v2432, %v2428
    %v2465 = vpack.c.b16 %v2433, %v2429
    %v2466 = vpack.c.b16 %v2434, %v2430
    %v2467 = vpack.c.b16 %v2435, %v2431
    %2500 = vmatprep.subr.bf16.mxu0 %v2465
    %2501 = vmatpush1.bf16.msra.mxu0 %v2464
    %2502 = vmatprep.subr.bf16.mxu0 %v2461
    %2503 = vmatpush1.bf16.msra.mxu0 %v2460
    %2504 = vmatprep.subr.bf16.mxu0 %v2457
    %2505 = vmatpush1.bf16.msra.mxu0 %v2456
    %2506 = vmatprep.subr.bf16.mxu0 %v2453
    %2507 = vmatpush1.bf16.msra.mxu0 %v2452
    %2508 = vmatprep.subr.bf16.mxu0 %v2449
    %2509 = vmatpush1.bf16.msra.mxu0 %v2448
    %2510 = vmatprep.subr.bf16.mxu0 %v2445
    %2511 = vmatpush1.bf16.msra.mxu0 %v2444
    %2512 = vmatprep.subr.bf16.mxu0 %v2441
    %2513 = vmatpush1.bf16.msra.mxu0 %v2440
    %2514 = vmatprep.subr.bf16.mxu0 %v2437
    %2515 = vmatpush1.bf16.msra.mxu0 %v2436
    %2516 = vmatprep.subr.bf16.mxu0 0
    %2517 = vmatpush2.bf16.msra.mxu0 0
    %2518 = vmatprep.subr.bf16.mxu0 0
    %2519 = vmatpush2.bf16.msra.mxu0 0
    %2520 = vmatprep.subr.bf16.mxu0 0
    %2521 = vmatpush2.bf16.msra.mxu0 0
    %2522 = vmatprep.subr.bf16.mxu0 0
    %2523 = vmatpush2.bf16.msra.mxu0 0
    %2524 = vmatprep.subr.bf16.mxu0 0
    %2525 = vmatpush2.bf16.msra.mxu0 0
    %2526 = vmatprep.subr.bf16.mxu0 0
    %2527 = vmatpush2.bf16.msra.mxu0 0
    %2528 = vmatprep.subr.bf16.mxu0 0
    %2529 = vmatpush2.bf16.msra.mxu0 0
    %2530 = vmatprep.subr.bf16.mxu0 0
    %2531 = vmatpush2.bf16.msra.mxu0 0
    %2532 = vmatprep.mubr.bf16.mxu0 0
    %2533 = vmatmul.mubr.bf16.gmra.mxu0 %v2307
    %v2534 = vpop.f32.mrf.mxu0
    %v2535 = vadd.f32 0.0, %v2534
    %v2536 = vpop.f32.mrf.mxu0
    %v2537 = vadd.f32 0.0, %v2536
    %v2538 = vpop.f32.mrf.mxu0
    %v2539 = vpop.f32.mrf.mxu0
    %2540 = vdwg.mxu0
    %2541 = vmatprep.subr.bf16.mxu0 %v2467
    %2542 = vmatpush1.bf16.msra.mxu0 %v2466
    %2543 = vmatprep.subr.bf16.mxu0 %v2463
    %2544 = vmatpush1.bf16.msra.mxu0 %v2462
    %2545 = vmatprep.subr.bf16.mxu0 %v2459
    %2546 = vmatpush1.bf16.msra.mxu0 %v2458
    %2547 = vmatprep.subr.bf16.mxu0 %v2455
    %2548 = vmatpush1.bf16.msra.mxu0 %v2454
    %2549 = vmatprep.subr.bf16.mxu0 %v2451
    %2550 = vmatpush1.bf16.msra.mxu0 %v2450
    %2551 = vmatprep.subr.bf16.mxu0 %v2447
    %2552 = vmatpush1.bf16.msra.mxu0 %v2446
    %2553 = vmatprep.subr.bf16.mxu0 %v2443
    %2554 = vmatpush1.bf16.msra.mxu0 %v2442
    %2555 = vmatprep.subr.bf16.mxu0 %v2439
    %2556 = vmatpush1.bf16.msra.mxu0 %v2438
    %2557 = vmatprep.subr.bf16.mxu0 0
    %2558 = vmatpush2.bf16.msra.mxu0 0
    %2559 = vmatprep.subr.bf16.mxu0 0
    %2560 = vmatpush2.bf16.msra.mxu0 0
    %2561 = vmatprep.subr.bf16.mxu0 0
    %2562 = vmatpush2.bf16.msra.mxu0 0
    %2563 = vmatprep.subr.bf16.mxu0 0
    %2564 = vmatpush2.bf16.msra.mxu0 0
    %2565 = vmatprep.subr.bf16.mxu0 0
    %2566 = vmatpush2.bf16.msra.mxu0 0
    %2567 = vmatprep.subr.bf16.mxu0 0
    %2568 = vmatpush2.bf16.msra.mxu0 0
    %2569 = vmatprep.subr.bf16.mxu0 0
    %2570 = vmatpush2.bf16.msra.mxu0 0
    %2571 = vmatprep.subr.bf16.mxu0 0
    %2572 = vmatpush2.bf16.msra.mxu0 0
    %2573 = vmatprep.mubr.bf16.mxu0 0
    %2574 = vmatmul.mubr.bf16.gmra.mxu0 %v2307
    %v2575 = vpop.f32.mrf.mxu0
    %v2576 = vadd.f32 0.0, %v2575
    %v2577 = vpop.f32.mrf.mxu0
    %v2578 = vadd.f32 0.0, %v2577
    %v2579 = vpop.f32.mrf.mxu0
    %v2580 = vpop.f32.mrf.mxu0
    %2581 = vdwg.mxu0
    %v2586 = vcombine.low %v2535, %v2537
    %v2587 = vcombine.low %v2576, %v2578
    %v2589 = vunpack.c.l.s4 1983009808
    %v2590 = vunpack.c.0.s8 %v2589
    %v2591 = vlaneseq
    %v2592 = vshrl.u32 %v2591, 7
    %v2593 = vsub.s32 %v2590, %v2592
    %v2594 = vrot.slane %v2586, %v2593
    %v2596 = vunpack.c.l.s4 1983009808
    %v2597 = vunpack.c.0.s8 %v2596
    %v2598 = vlaneseq
    %v2599 = vshrl.u32 %v2598, 7
    %v2600 = vsub.s32 %v2597, %v2599
    %v2601 = vrot.slane %v2587, %v2600
    %v2602 = vcombine.low %v2594, %v2601
    %v2604 = vadd.f32 %v2306, %v2602
    %v2605 = vxor.u32 %v2604, 2147483648
    %v2606 = vmul.f32 %v2605, 1.442695
    %v2607 = vpow.pop %v2606
    %v2608 = vadd.f32 %v2607, 1.0
    %v2609 = vrcp.pop %v2608
    %v2610 = vmul.f32 1.0, %v2609
    %v2612 = vrot.slane %v2604, 2
    %v2614 = vxor.u32 %v2612, 2147483648
    %v2615 = vmul.f32 %v2614, 1.442695
    %v2616 = vpow.pop %v2615
    %v2617 = vadd.f32 %v2616, 1.0
    %v2618 = vrcp.pop %v2617
    %v2619 = vmul.f32 1.0, %v2618
    %v2620 = vrot.slane %v2604, 4
    %v2622 = vtanh.pop %v2620
    %v2623 = vrot.slane %v2604, 6
    %v2625 = vxor.u32 %v2623, 2147483648
    %v2626 = vmul.f32 %v2625, 1.442695
    %v2627 = vpow.pop %v2626
    %v2628 = vadd.f32 %v2627, 1.0
    %v2629 = vrcp.pop %v2628
    %v2630 = vmul.f32 1.0, %v2629
    %v2631 = vmul.f32 %v2619, %v2305
    %v2632 = vmul.f32 %v2610, %v2622
    %v2633 = vadd.f32 %v2631, %v2632
    %v2634 = vtanh.pop %v2633
    %v2635 = vmul.f32 %v2630, %v2634
    %v2636 = vpack.c.bf16 %v2635, %v2635
    %v2637 = vld [vmem:[%s873] sm:$0xff]
    %2638 = vmatprep.subr.bf16.mxu0 %v2465
    %2639 = vmatpush1.bf16.msra.mxu0 %v2464
    %2640 = vmatprep.subr.bf16.mxu0 %v2461
    %2641 = vmatpush1.bf16.msra.mxu0 %v2460
    %2642 = vmatprep.subr.bf16.mxu0 %v2457
    %2643 = vmatpush1.bf16.msra.mxu0 %v2456
    %2644 = vmatprep.subr.bf16.mxu0 %v2453
    %2645 = vmatpush1.bf16.msra.mxu0 %v2452
    %2646 = vmatprep.subr.bf16.mxu0 %v2449
    %2647 = vmatpush1.bf16.msra.mxu0 %v2448
    %2648 = vmatprep.subr.bf16.mxu0 %v2445
    %2649 = vmatpush1.bf16.msra.mxu0 %v2444
    %2650 = vmatprep.subr.bf16.mxu0 %v2441
    %2651 = vmatpush1.bf16.msra.mxu0 %v2440
    %2652 = vmatprep.subr.bf16.mxu0 %v2437
    %2653 = vmatpush1.bf16.msra.mxu0 %v2436
    %2654 = vmatprep.subr.bf16.mxu0 0
    %2655 = vmatpush2.bf16.msra.mxu0 0
    %2656 = vmatprep.subr.bf16.mxu0 0
    %2657 = vmatpush2.bf16.msra.mxu0 0
    %2658 = vmatprep.subr.bf16.mxu0 0
    %2659 = vmatpush2.bf16.msra.mxu0 0
    %2660 = vmatprep.subr.bf16.mxu0 0
    %2661 = vmatpush2.bf16.msra.mxu0 0
    %2662 = vmatprep.subr.bf16.mxu0 0
    %2663 = vmatpush2.bf16.msra.mxu0 0
    %2664 = vmatprep.subr.bf16.mxu0 0
    %2665 = vmatpush2.bf16.msra.mxu0 0
    %2666 = vmatprep.subr.bf16.mxu0 0
    %2667 = vmatpush2.bf16.msra.mxu0 0
    %2668 = vmatprep.subr.bf16.mxu0 0
    %2669 = vmatpush2.bf16.msra.mxu0 0
    %2670 = vmatprep.mubr.bf16.mxu0 0
    %2671 = vmatmul.mubr.bf16.gmra.mxu0 %v2636
    %v2672 = vpop.f32.mrf.mxu0
    %v2673 = vadd.f32 0.0, %v2672
    %v2674 = vpop.f32.mrf.mxu0
    %v2675 = vadd.f32 0.0, %v2674
    %v2676 = vpop.f32.mrf.mxu0
    %v2677 = vpop.f32.mrf.mxu0
    %2678 = vdwg.mxu0
    %2679 = vmatprep.subr.bf16.mxu0 %v2467
    %2680 = vmatpush1.bf16.msra.mxu0 %v2466
    %2681 = vmatprep.subr.bf16.mxu0 %v2463
    %2682 = vmatpush1.bf16.msra.mxu0 %v2462
    %2683 = vmatprep.subr.bf16.mxu0 %v2459
    %2684 = vmatpush1.bf16.msra.mxu0 %v2458
    %2685 = vmatprep.subr.bf16.mxu0 %v2455
    %2686 = vmatpush1.bf16.msra.mxu0 %v2454
    %2687 = vmatprep.subr.bf16.mxu0 %v2451
    %2688 = vmatpush1.bf16.msra.mxu0 %v2450
    %2689 = vmatprep.subr.bf16.mxu0 %v2447
    %2690 = vmatpush1.bf16.msra.mxu0 %v2446
    %2691 = vmatprep.subr.bf16.mxu0 %v2443
    %2692 = vmatpush1.bf16.msra.mxu0 %v2442
    %2693 = vmatprep.subr.bf16.mxu0 %v2439
    %2694 = vmatpush1.bf16.msra.mxu0 %v2438
    %2695 = vmatprep.subr.bf16.mxu0 0
    %2696 = vmatpush2.bf16.msra.mxu0 0
    %2697 = vmatprep.subr.bf16.mxu0 0
    %2698 = vmatpush2.bf16.msra.mxu0 0
    %2699 = vmatprep.subr.bf16.mxu0 0
    %2700 = vmatpush2.bf16.msra.mxu0 0
    %2701 = vmatprep.subr.bf16.mxu0 0
    %2702 = vmatpush2.bf16.msra.mxu0 0
    %2703 = vmatprep.subr.bf16.mxu0 0
    %2704 = vmatpush2.bf16.msra.mxu0 0
    %2705 = vmatprep.subr.bf16.mxu0 0
    %2706 = vmatpush2.bf16.msra.mxu0 0
    %2707 = vmatprep.subr.bf16.mxu0 0
    %2708 = vmatpush2.bf16.msra.mxu0 0
    %2709 = vmatprep.subr.bf16.mxu0 0
    %2710 = vmatpush2.bf16.msra.mxu0 0
    %2711 = vmatprep.mubr.bf16.mxu0 0
    %2712 = vmatmul.mubr.bf16.gmra.mxu0 %v2636
    %v2713 = vpop.f32.mrf.mxu0
    %v2714 = vadd.f32 0.0, %v2713
    %v2715 = vpop.f32.mrf.mxu0
    %v2716 = vadd.f32 0.0, %v2715
    %v2717 = vpop.f32.mrf.mxu0
    %v2718 = vpop.f32.mrf.mxu0
    %2719 = vdwg.mxu0
    %v2724 = vcombine.low %v2673, %v2675
    %v2725 = vcombine.low %v2714, %v2716
    %v2727 = vunpack.c.l.s4 1983009808
    %v2728 = vunpack.c.0.s8 %v2727
    %v2729 = vlaneseq
    %v2730 = vshrl.u32 %v2729, 7
    %v2731 = vsub.s32 %v2728, %v2730
    %v2732 = vrot.slane %v2724, %v2731
    %v2734 = vunpack.c.l.s4 1983009808
    %v2735 = vunpack.c.0.s8 %v2734
    %v2736 = vlaneseq
    %v2737 = vshrl.u32 %v2736, 7
    %v2738 = vsub.s32 %v2735, %v2737
    %v2739 = vrot.slane %v2725, %v2738
    %v2740 = vcombine.low %v2732, %v2739
    %v2742 = vadd.f32 %v2637, %v2740
    %v2743 = vxor.u32 %v2742, 2147483648
    %v2744 = vmul.f32 %v2743, 1.442695
    %v2745 = vpow.pop %v2744
    %v2746 = vadd.f32 %v2745, 1.0
    %v2747 = vrcp.pop %v2746
    %v2748 = vmul.f32 1.0, %v2747
    %v2750 = vrot.slane %v2742, 2
    %v2752 = vxor.u32 %v2750, 2147483648
    %v2753 = vmul.f32 %v2752, 1.442695
    %v2754 = vpow.pop %v2753
    %v2755 = vadd.f32 %v2754, 1.0
    %v2756 = vrcp.pop %v2755
    %v2757 = vmul.f32 1.0, %v2756
    %v2758 = vrot.slane %v2742, 4
    %v2760 = vtanh.pop %v2758
    %v2761 = vrot.slane %v2742, 6
    %v2763 = vxor.u32 %v2761, 2147483648
    %v2764 = vmul.f32 %v2763, 1.442695
    %v2765 = vpow.pop %v2764
    %v2766 = vadd.f32 %v2765, 1.0
    %v2767 = vrcp.pop %v2766
    %v2768 = vmul.f32 1.0, %v2767
    %v2769 = vmul.f32 %v2757, %v2633
    %v2770 = vmul.f32 %v2748, %v2760
    %v2771 = vadd.f32 %v2769, %v2770
    %v2772 = vtanh.pop %v2771
    %v2773 = vmul.f32 %v2768, %v2772
    %v2774 = vpack.c.bf16 %v2773, %v2773
    %v2775 = vld [vmem:[%s1012] sm:$0xff]
    %2776 = vmatprep.subr.bf16.mxu0 %v2465
    %2777 = vmatpush1.bf16.msra.mxu0 %v2464
    %2778 = vmatprep.subr.bf16.mxu0 %v2461
    %2779 = vmatpush1.bf16.msra.mxu0 %v2460
    %2780 = vmatprep.subr.bf16.mxu0 %v2457
    %2781 = vmatpush1.bf16.msra.mxu0 %v2456
    %2782 = vmatprep.subr.bf16.mxu0 %v2453
    %2783 = vmatpush1.bf16.msra.mxu0 %v2452
    %2784 = vmatprep.subr.bf16.mxu0 %v2449
    %2785 = vmatpush1.bf16.msra.mxu0 %v2448
    %2786 = vmatprep.subr.bf16.mxu0 %v2445
    %2787 = vmatpush1.bf16.msra.mxu0 %v2444
    %2788 = vmatprep.subr.bf16.mxu0 %v2441
    %2789 = vmatpush1.bf16.msra.mxu0 %v2440
    %2790 = vmatprep.subr.bf16.mxu0 %v2437
    %2791 = vmatpush1.bf16.msra.mxu0 %v2436
    %2792 = vmatprep.subr.bf16.mxu0 0
    %2793 = vmatpush2.bf16.msra.mxu0 0
    %2794 = vmatprep.subr.bf16.mxu0 0
    %2795 = vmatpush2.bf16.msra.mxu0 0
    %2796 = vmatprep.subr.bf16.mxu0 0
    %2797 = vmatpush2.bf16.msra.mxu0 0
    %2798 = vmatprep.subr.bf16.mxu0 0
    %2799 = vmatpush2.bf16.msra.mxu0 0
    %2800 = vmatprep.subr.bf16.mxu0 0
    %2801 = vmatpush2.bf16.msra.mxu0 0
    %2802 = vmatprep.subr.bf16.mxu0 0
    %2803 = vmatpush2.bf16.msra.mxu0 0
    %2804 = vmatprep.subr.bf16.mxu0 0
    %2805 = vmatpush2.bf16.msra.mxu0 0
    %2806 = vmatprep.subr.bf16.mxu0 0
    %2807 = vmatpush2.bf16.msra.mxu0 0
    %2808 = vmatprep.mubr.bf16.mxu0 0
    %2809 = vmatmul.mubr.bf16.gmra.mxu0 %v2774
    %v2810 = vpop.f32.mrf.mxu0
    %v2811 = vadd.f32 0.0, %v2810
    %v2812 = vpop.f32.mrf.mxu0
    %v2813 = vadd.f32 0.0, %v2812
    %v2814 = vpop.f32.mrf.mxu0
    %v2815 = vpop.f32.mrf.mxu0
    %2816 = vdwg.mxu0
    %2817 = vmatprep.subr.bf16.mxu0 %v2467
    %2818 = vmatpush1.bf16.msra.mxu0 %v2466
    %2819 = vmatprep.subr.bf16.mxu0 %v2463
    %2820 = vmatpush1.bf16.msra.mxu0 %v2462
    %2821 = vmatprep.subr.bf16.mxu0 %v2459
    %2822 = vmatpush1.bf16.msra.mxu0 %v2458
    %2823 = vmatprep.subr.bf16.mxu0 %v2455
    %2824 = vmatpush1.bf16.msra.mxu0 %v2454
    %2825 = vmatprep.subr.bf16.mxu0 %v2451
    %2826 = vmatpush1.bf16.msra.mxu0 %v2450
    %2827 = vmatprep.subr.bf16.mxu0 %v2447
    %2828 = vmatpush1.bf16.msra.mxu0 %v2446
    %2829 = vmatprep.subr.bf16.mxu0 %v2443
    %2830 = vmatpush1.bf16.msra.mxu0 %v2442
    %2831 = vmatprep.subr.bf16.mxu0 %v2439
    %2832 = vmatpush1.bf16.msra.mxu0 %v2438
    %2833 = vmatprep.subr.bf16.mxu0 0
    %2834 = vmatpush2.bf16.msra.mxu0 0
    %2835 = vmatprep.subr.bf16.mxu0 0
    %2836 = vmatpush2.bf16.msra.mxu0 0
    %2837 = vmatprep.subr.bf16.mxu0 0
    %2838 = vmatpush2.bf16.msra.mxu0 0
    %2839 = vmatprep.subr.bf16.mxu0 0
    %2840 = vmatpush2.bf16.msra.mxu0 0
    %2841 = vmatprep.subr.bf16.mxu0 0
    %2842 = vmatpush2.bf16.msra.mxu0 0
    %2843 = vmatprep.subr.bf16.mxu0 0
    %2844 = vmatpush2.bf16.msra.mxu0 0
    %2845 = vmatprep.subr.bf16.mxu0 0
    %2846 = vmatpush2.bf16.msra.mxu0 0
    %2847 = vmatprep.subr.bf16.mxu0 0
    %2848 = vmatpush2.bf16.msra.mxu0 0
    %2849 = vmatprep.mubr.bf16.mxu0 0
    %2850 = vmatmul.mubr.bf16.gmra.mxu0 %v2774
    %v2851 = vpop.f32.mrf.mxu0
    %v2852 = vadd.f32 0.0, %v2851
    %v2853 = vpop.f32.mrf.mxu0
    %v2854 = vadd.f32 0.0, %v2853
    %v2855 = vpop.f32.mrf.mxu0
    %v2856 = vpop.f32.mrf.mxu0
    %2857 = vdwg.mxu0
    %v2862 = vcombine.low %v2811, %v2813
    %v2863 = vcombine.low %v2852, %v2854
    %v2865 = vunpack.c.l.s4 1983009808
    %v2866 = vunpack.c.0.s8 %v2865
    %v2867 = vlaneseq
    %v2868 = vshrl.u32 %v2867, 7
    %v2869 = vsub.s32 %v2866, %v2868
    %v2870 = vrot.slane %v2862, %v2869
    %v2872 = vunpack.c.l.s4 1983009808
    %v2873 = vunpack.c.0.s8 %v2872
    %v2874 = vlaneseq
    %v2875 = vshrl.u32 %v2874, 7
    %v2876 = vsub.s32 %v2873, %v2875
    %v2877 = vrot.slane %v2863, %v2876
    %v2878 = vcombine.low %v2870, %v2877
    %v2880 = vadd.f32 %v2775, %v2878
    %v2881 = vxor.u32 %v2880, 2147483648
    %v2882 = vmul.f32 %v2881, 1.442695
    %v2883 = vpow.pop %v2882
    %v2884 = vadd.f32 %v2883, 1.0
    %v2885 = vrcp.pop %v2884
    %v2886 = vmul.f32 1.0, %v2885
    %v2888 = vrot.slane %v2880, 2
    %v2890 = vxor.u32 %v2888, 2147483648
    %v2891 = vmul.f32 %v2890, 1.442695
    %v2892 = vpow.pop %v2891
    %v2893 = vadd.f32 %v2892, 1.0
    %v2894 = vrcp.pop %v2893
    %v2895 = vmul.f32 1.0, %v2894
    %v2896 = vrot.slane %v2880, 4
    %v2898 = vtanh.pop %v2896
    %v2899 = vrot.slane %v2880, 6
    %v2901 = vxor.u32 %v2899, 2147483648
    %v2902 = vmul.f32 %v2901, 1.442695
    %v2903 = vpow.pop %v2902
    %v2904 = vadd.f32 %v2903, 1.0
    %v2905 = vrcp.pop %v2904
    %v2906 = vmul.f32 1.0, %v2905
    %v2907 = vmul.f32 %v2895, %v2771
    %v2908 = vmul.f32 %v2886, %v2898
    %v2909 = vadd.f32 %v2907, %v2908
    %v2910 = vtanh.pop %v2909
    %v2911 = vmul.f32 %v2906, %v2910
    %v2912 = vpack.c.bf16 %v2911, %v2911
    %v2913 = vld [vmem:[%s1151] sm:$0xff]
    %2914 = vmatprep.subr.bf16.mxu0 %v2465
    %2915 = vmatpush1.bf16.msra.mxu0 %v2464
    %2916 = vmatprep.subr.bf16.mxu0 %v2461
    %2917 = vmatpush1.bf16.msra.mxu0 %v2460
    %2918 = vmatprep.subr.bf16.mxu0 %v2457
    %2919 = vmatpush1.bf16.msra.mxu0 %v2456
    %2920 = vmatprep.subr.bf16.mxu0 %v2453
    %2921 = vmatpush1.bf16.msra.mxu0 %v2452
    %2922 = vmatprep.subr.bf16.mxu0 %v2449
    %2923 = vmatpush1.bf16.msra.mxu0 %v2448
    %2924 = vmatprep.subr.bf16.mxu0 %v2445
    %2925 = vmatpush1.bf16.msra.mxu0 %v2444
    %2926 = vmatprep.subr.bf16.mxu0 %v2441
    %2927 = vmatpush1.bf16.msra.mxu0 %v2440
    %2928 = vmatprep.subr.bf16.mxu0 %v2437
    %2929 = vmatpush1.bf16.msra.mxu0 %v2436
    %2930 = vmatprep.subr.bf16.mxu0 0
    %2931 = vmatpush2.bf16.msra.mxu0 0
    %2932 = vmatprep.subr.bf16.mxu0 0
    %2933 = vmatpush2.bf16.msra.mxu0 0
    %2934 = vmatprep.subr.bf16.mxu0 0
    %2935 = vmatpush2.bf16.msra.mxu0 0
    %2936 = vmatprep.subr.bf16.mxu0 0
    %2937 = vmatpush2.bf16.msra.mxu0 0
    %2938 = vmatprep.subr.bf16.mxu0 0
    %2939 = vmatpush2.bf16.msra.mxu0 0
    %2940 = vmatprep.subr.bf16.mxu0 0
    %2941 = vmatpush2.bf16.msra.mxu0 0
    %2942 = vmatprep.subr.bf16.mxu0 0
    %2943 = vmatpush2.bf16.msra.mxu0 0
    %2944 = vmatprep.subr.bf16.mxu0 0
    %2945 = vmatpush2.bf16.msra.mxu0 0
    %2946 = vmatprep.mubr.bf16.mxu0 0
    %2947 = vmatmul.mubr.bf16.gmra.mxu0 %v2912
    %v2948 = vpop.f32.mrf.mxu0
    %v2949 = vadd.f32 0.0, %v2948
    %v2950 = vpop.f32.mrf.mxu0
    %v2951 = vadd.f32 0.0, %v2950
    %v2952 = vpop.f32.mrf.mxu0
    %v2953 = vpop.f32.mrf.mxu0
    %2954 = vdwg.mxu0
    %2955 = vmatprep.subr.bf16.mxu0 %v2467
    %2956 = vmatpush1.bf16.msra.mxu0 %v2466
    %2957 = vmatprep.subr.bf16.mxu0 %v2463
    %2958 = vmatpush1.bf16.msra.mxu0 %v2462
    %2959 = vmatprep.subr.bf16.mxu0 %v2459
    %2960 = vmatpush1.bf16.msra.mxu0 %v2458
    %2961 = vmatprep.subr.bf16.mxu0 %v2455
    %2962 = vmatpush1.bf16.msra.mxu0 %v2454
    %2963 = vmatprep.subr.bf16.mxu0 %v2451
    %2964 = vmatpush1.bf16.msra.mxu0 %v2450
    %2965 = vmatprep.subr.bf16.mxu0 %v2447
    %2966 = vmatpush1.bf16.msra.mxu0 %v2446
    %2967 = vmatprep.subr.bf16.mxu0 %v2443
    %2968 = vmatpush1.bf16.msra.mxu0 %v2442
    %2969 = vmatprep.subr.bf16.mxu0 %v2439
    %2970 = vmatpush1.bf16.msra.mxu0 %v2438
    %2971 = vmatprep.subr.bf16.mxu0 0
    %2972 = vmatpush2.bf16.msra.mxu0 0
    %2973 = vmatprep.subr.bf16.mxu0 0
    %2974 = vmatpush2.bf16.msra.mxu0 0
    %2975 = vmatprep.subr.bf16.mxu0 0
    %2976 = vmatpush2.bf16.msra.mxu0 0
    %2977 = vmatprep.subr.bf16.mxu0 0
    %2978 = vmatpush2.bf16.msra.mxu0 0
    %2979 = vmatprep.subr.bf16.mxu0 0
    %2980 = vmatpush2.bf16.msra.mxu0 0
    %2981 = vmatprep.subr.bf16.mxu0 0
    %2982 = vmatpush2.bf16.msra.mxu0 0
    %2983 = vmatprep.subr.bf16.mxu0 0
    %2984 = vmatpush2.bf16.msra.mxu0 0
    %2985 = vmatprep.subr.bf16.mxu0 0
    %2986 = vmatpush2.bf16.msra.mxu0 0
    %2987 = vmatprep.mubr.bf16.mxu0 0
    %2988 = vmatmul.mubr.bf16.gmra.mxu0 %v2912
    %v2989 = vpop.f32.mrf.mxu0
    %v2990 = vadd.f32 0.0, %v2989
    %v2991 = vpop.f32.mrf.mxu0
    %v2992 = vadd.f32 0.0, %v2991
    %v2993 = vpop.f32.mrf.mxu0
    %v2994 = vpop.f32.mrf.mxu0
    %2995 = vdwg.mxu0
    %v3000 = vcombine.low %v2949, %v2951
    %v3001 = vcombine.low %v2990, %v2992
    %v3003 = vunpack.c.l.s4 1983009808
    %v3004 = vunpack.c.0.s8 %v3003
    %v3005 = vlaneseq
    %v3006 = vshrl.u32 %v3005, 7
    %v3007 = vsub.s32 %v3004, %v3006
    %v3008 = vrot.slane %v3000, %v3007
    %v3010 = vunpack.c.l.s4 1983009808
    %v3011 = vunpack.c.0.s8 %v3010
    %v3012 = vlaneseq
    %v3013 = vshrl.u32 %v3012, 7
    %v3014 = vsub.s32 %v3011, %v3013
    %v3015 = vrot.slane %v3001, %v3014
    %v3016 = vcombine.low %v3008, %v3015
    %v3018 = vadd.f32 %v2913, %v3016
    %v3019 = vxor.u32 %v3018, 2147483648
    %v3020 = vmul.f32 %v3019, 1.442695
    %v3021 = vpow.pop %v3020
    %v3022 = vadd.f32 %v3021, 1.0
    %v3023 = vrcp.pop %v3022
    %v3024 = vmul.f32 1.0, %v3023
    %v3026 = vrot.slane %v3018, 2
    %v3028 = vxor.u32 %v3026, 2147483648
    %v3029 = vmul.f32 %v3028, 1.442695
    %v3030 = vpow.pop %v3029
    %v3031 = vadd.f32 %v3030, 1.0
    %v3032 = vrcp.pop %v3031
    %v3033 = vmul.f32 1.0, %v3032
    %v3034 = vrot.slane %v3018, 4
    %v3036 = vtanh.pop %v3034
    %v3037 = vrot.slane %v3018, 6
    %v3039 = vxor.u32 %v3037, 2147483648
    %v3040 = vmul.f32 %v3039, 1.442695
    %v3041 = vpow.pop %v3040
    %v3042 = vadd.f32 %v3041, 1.0
    %v3043 = vrcp.pop %v3042
    %v3044 = vmul.f32 1.0, %v3043
    %v3045 = vmul.f32 %v3033, %v2909
    %v3046 = vmul.f32 %v3024, %v3036
    %v3047 = vadd.f32 %v3045, %v3046
    %v3048 = vtanh.pop %v3047
    %v3049 = vmul.f32 %v3044, %v3048
    %v3050 = vpack.c.bf16 %v3049, %v3049
    %v3051 = vld [vmem:[%s1290] sm:$0xff]
    %3052 = vmatprep.subr.bf16.mxu0 %v2465
    %3053 = vmatpush1.bf16.msra.mxu0 %v2464
    %3054 = vmatprep.subr.bf16.mxu0 %v2461
    %3055 = vmatpush1.bf16.msra.mxu0 %v2460
    %3056 = vmatprep.subr.bf16.mxu0 %v2457
    %3057 = vmatpush1.bf16.msra.mxu0 %v2456
    %3058 = vmatprep.subr.bf16.mxu0 %v2453
    %3059 = vmatpush1.bf16.msra.mxu0 %v2452
    %3060 = vmatprep.subr.bf16.mxu0 %v2449
    %3061 = vmatpush1.bf16.msra.mxu0 %v2448
    %3062 = vmatprep.subr.bf16.mxu0 %v2445
    %3063 = vmatpush1.bf16.msra.mxu0 %v2444
    %3064 = vmatprep.subr.bf16.mxu0 %v2441
    %3065 = vmatpush1.bf16.msra.mxu0 %v2440
    %3066 = vmatprep.subr.bf16.mxu0 %v2437
    %3067 = vmatpush1.bf16.msra.mxu0 %v2436
    %3068 = vmatprep.subr.bf16.mxu0 0
    %3069 = vmatpush2.bf16.msra.mxu0 0
    %3070 = vmatprep.subr.bf16.mxu0 0
    %3071 = vmatpush2.bf16.msra.mxu0 0
    %3072 = vmatprep.subr.bf16.mxu0 0
    %3073 = vmatpush2.bf16.msra.mxu0 0
    %3074 = vmatprep.subr.bf16.mxu0 0
    %3075 = vmatpush2.bf16.msra.mxu0 0
    %3076 = vmatprep.subr.bf16.mxu0 0
    %3077 = vmatpush2.bf16.msra.mxu0 0
    %3078 = vmatprep.subr.bf16.mxu0 0
    %3079 = vmatpush2.bf16.msra.mxu0 0
    %3080 = vmatprep.subr.bf16.mxu0 0
    %3081 = vmatpush2.bf16.msra.mxu0 0
    %3082 = vmatprep.subr.bf16.mxu0 0
    %3083 = vmatpush2.bf16.msra.mxu0 0
    %3084 = vmatprep.mubr.bf16.mxu0 0
    %3085 = vmatmul.mubr.bf16.gmra.mxu0 %v3050
    %v3086 = vpop.f32.mrf.mxu0
    %v3087 = vadd.f32 0.0, %v3086
    %v3088 = vpop.f32.mrf.mxu0
    %v3089 = vadd.f32 0.0, %v3088
    %v3090 = vpop.f32.mrf.mxu0
    %v3091 = vpop.f32.mrf.mxu0
    %3092 = vdwg.mxu0
    %3093 = vmatprep.subr.bf16.mxu0 %v2467
    %3094 = vmatpush1.bf16.msra.mxu0 %v2466
    %3095 = vmatprep.subr.bf16.mxu0 %v2463
    %3096 = vmatpush1.bf16.msra.mxu0 %v2462
    %3097 = vmatprep.subr.bf16.mxu0 %v2459
    %3098 = vmatpush1.bf16.msra.mxu0 %v2458
    %3099 = vmatprep.subr.bf16.mxu0 %v2455
    %3100 = vmatpush1.bf16.msra.mxu0 %v2454
    %3101 = vmatprep.subr.bf16.mxu0 %v2451
    %3102 = vmatpush1.bf16.msra.mxu0 %v2450
    %3103 = vmatprep.subr.bf16.mxu0 %v2447
    %3104 = vmatpush1.bf16.msra.mxu0 %v2446
    %3105 = vmatprep.subr.bf16.mxu0 %v2443
    %3106 = vmatpush1.bf16.msra.mxu0 %v2442
    %3107 = vmatprep.subr.bf16.mxu0 %v2439
    %3108 = vmatpush1.bf16.msra.mxu0 %v2438
    %3109 = vmatprep.subr.bf16.mxu0 0
    %3110 = vmatpush2.bf16.msra.mxu0 0
    %3111 = vmatprep.subr.bf16.mxu0 0
    %3112 = vmatpush2.bf16.msra.mxu0 0
    %3113 = vmatprep.subr.bf16.mxu0 0
    %3114 = vmatpush2.bf16.msra.mxu0 0
    %3115 = vmatprep.subr.bf16.mxu0 0
    %3116 = vmatpush2.bf16.msra.mxu0 0
    %3117 = vmatprep.subr.bf16.mxu0 0
    %3118 = vmatpush2.bf16.msra.mxu0 0
    %3119 = vmatprep.subr.bf16.mxu0 0
    %3120 = vmatpush2.bf16.msra.mxu0 0
    %3121 = vmatprep.subr.bf16.mxu0 0
    %3122 = vmatpush2.bf16.msra.mxu0 0
    %3123 = vmatprep.subr.bf16.mxu0 0
    %3124 = vmatpush2.bf16.msra.mxu0 0
    %3125 = vmatprep.mubr.bf16.mxu0 0
    %3126 = vmatmul.mubr.bf16.gmra.mxu0 %v3050
    %v3127 = vpop.f32.mrf.mxu0
    %v3128 = vadd.f32 0.0, %v3127
    %v3129 = vpop.f32.mrf.mxu0
    %v3130 = vadd.f32 0.0, %v3129
    %v3131 = vpop.f32.mrf.mxu0
    %v3132 = vpop.f32.mrf.mxu0
    %3133 = vdwg.mxu0
    %v3138 = vcombine.low %v3087, %v3089
    %v3139 = vcombine.low %v3128, %v3130
    %v3141 = vunpack.c.l.s4 1983009808
    %v3142 = vunpack.c.0.s8 %v3141
    %v3143 = vlaneseq
    %v3144 = vshrl.u32 %v3143, 7
    %v3145 = vsub.s32 %v3142, %v3144
    %v3146 = vrot.slane %v3138, %v3145
    %v3148 = vunpack.c.l.s4 1983009808
    %v3149 = vunpack.c.0.s8 %v3148
    %v3150 = vlaneseq
    %v3151 = vshrl.u32 %v3150, 7
    %v3152 = vsub.s32 %v3149, %v3151
    %v3153 = vrot.slane %v3139, %v3152
    %v3154 = vcombine.low %v3146, %v3153
    %v3156 = vadd.f32 %v3051, %v3154
    %v3157 = vxor.u32 %v3156, 2147483648
    %v3158 = vmul.f32 %v3157, 1.442695
    %v3159 = vpow.pop %v3158
    %v3160 = vadd.f32 %v3159, 1.0
    %v3161 = vrcp.pop %v3160
    %v3162 = vmul.f32 1.0, %v3161
    %v3164 = vrot.slane %v3156, 2
    %v3166 = vxor.u32 %v3164, 2147483648
    %v3167 = vmul.f32 %v3166, 1.442695
    %v3168 = vpow.pop %v3167
    %v3169 = vadd.f32 %v3168, 1.0
    %v3170 = vrcp.pop %v3169
    %v3171 = vmul.f32 1.0, %v3170
    %v3172 = vrot.slane %v3156, 4
    %v3174 = vtanh.pop %v3172
    %v3175 = vrot.slane %v3156, 6
    %v3177 = vxor.u32 %v3175, 2147483648
    %v3178 = vmul.f32 %v3177, 1.442695
    %v3179 = vpow.pop %v3178
    %v3180 = vadd.f32 %v3179, 1.0
    %v3181 = vrcp.pop %v3180
    %v3182 = vmul.f32 1.0, %v3181
    %v3183 = vmul.f32 %v3171, %v3047
    %v3184 = vmul.f32 %v3162, %v3174
    %v3185 = vadd.f32 %v3183, %v3184
    %v3186 = vtanh.pop %v3185
    %v3187 = vmul.f32 %v3182, %v3186
    %v3188 = vpack.c.bf16 %v3187, %v3187
    %v3189 = vld [vmem:[%s1429] sm:$0xff]
    %3190 = vmatprep.subr.bf16.mxu0 %v2465
    %3191 = vmatpush1.bf16.msra.mxu0 %v2464
    %3192 = vmatprep.subr.bf16.mxu0 %v2461
    %3193 = vmatpush1.bf16.msra.mxu0 %v2460
    %3194 = vmatprep.subr.bf16.mxu0 %v2457
    %3195 = vmatpush1.bf16.msra.mxu0 %v2456
    %3196 = vmatprep.subr.bf16.mxu0 %v2453
    %3197 = vmatpush1.bf16.msra.mxu0 %v2452
    %3198 = vmatprep.subr.bf16.mxu0 %v2449
    %3199 = vmatpush1.bf16.msra.mxu0 %v2448
    %3200 = vmatprep.subr.bf16.mxu0 %v2445
    %3201 = vmatpush1.bf16.msra.mxu0 %v2444
    %3202 = vmatprep.subr.bf16.mxu0 %v2441
    %3203 = vmatpush1.bf16.msra.mxu0 %v2440
    %3204 = vmatprep.subr.bf16.mxu0 %v2437
    %3205 = vmatpush1.bf16.msra.mxu0 %v2436
    %3206 = vmatprep.subr.bf16.mxu0 0
    %3207 = vmatpush2.bf16.msra.mxu0 0
    %3208 = vmatprep.subr.bf16.mxu0 0
    %3209 = vmatpush2.bf16.msra.mxu0 0
    %3210 = vmatprep.subr.bf16.mxu0 0
    %3211 = vmatpush2.bf16.msra.mxu0 0
    %3212 = vmatprep.subr.bf16.mxu0 0
    %3213 = vmatpush2.bf16.msra.mxu0 0
    %3214 = vmatprep.subr.bf16.mxu0 0
    %3215 = vmatpush2.bf16.msra.mxu0 0
    %3216 = vmatprep.subr.bf16.mxu0 0
    %3217 = vmatpush2.bf16.msra.mxu0 0
    %3218 = vmatprep.subr.bf16.mxu0 0
    %3219 = vmatpush2.bf16.msra.mxu0 0
    %3220 = vmatprep.subr.bf16.mxu0 0
    %3221 = vmatpush2.bf16.msra.mxu0 0
    %3222 = vmatprep.mubr.bf16.mxu0 0
    %3223 = vmatmul.mubr.bf16.gmra.mxu0 %v3188
    %v3224 = vpop.f32.mrf.mxu0
    %v3225 = vadd.f32 0.0, %v3224
    %v3226 = vpop.f32.mrf.mxu0
    %v3227 = vadd.f32 0.0, %v3226
    %v3228 = vpop.f32.mrf.mxu0
    %v3229 = vpop.f32.mrf.mxu0
    %3230 = vdwg.mxu0
    %3231 = vmatprep.subr.bf16.mxu0 %v2467
    %3232 = vmatpush1.bf16.msra.mxu0 %v2466
    %3233 = vmatprep.subr.bf16.mxu0 %v2463
    %3234 = vmatpush1.bf16.msra.mxu0 %v2462
    %3235 = vmatprep.subr.bf16.mxu0 %v2459
    %3236 = vmatpush1.bf16.msra.mxu0 %v2458
    %3237 = vmatprep.subr.bf16.mxu0 %v2455
    %3238 = vmatpush1.bf16.msra.mxu0 %v2454
    %3239 = vmatprep.subr.bf16.mxu0 %v2451
    %3240 = vmatpush1.bf16.msra.mxu0 %v2450
    %3241 = vmatprep.subr.bf16.mxu0 %v2447
    %3242 = vmatpush1.bf16.msra.mxu0 %v2446
    %3243 = vmatprep.subr.bf16.mxu0 %v2443
    %3244 = vmatpush1.bf16.msra.mxu0 %v2442
    %3245 = vmatprep.subr.bf16.mxu0 %v2439
    %3246 = vmatpush1.bf16.msra.mxu0 %v2438
    %3247 = vmatprep.subr.bf16.mxu0 0
    %3248 = vmatpush2.bf16.msra.mxu0 0
    %3249 = vmatprep.subr.bf16.mxu0 0
    %3250 = vmatpush2.bf16.msra.mxu0 0
    %3251 = vmatprep.subr.bf16.mxu0 0
    %3252 = vmatpush2.bf16.msra.mxu0 0
    %3253 = vmatprep.subr.bf16.mxu0 0
    %3254 = vmatpush2.bf16.msra.mxu0 0
    %3255 = vmatprep.subr.bf16.mxu0 0
    %3256 = vmatpush2.bf16.msra.mxu0 0
    %3257 = vmatprep.subr.bf16.mxu0 0
    %3258 = vmatpush2.bf16.msra.mxu0 0
    %3259 = vmatprep.subr.bf16.mxu0 0
    %3260 = vmatpush2.bf16.msra.mxu0 0
    %3261 = vmatprep.subr.bf16.mxu0 0
    %3262 = vmatpush2.bf16.msra.mxu0 0
    %3263 = vmatprep.mubr.bf16.mxu0 0
    %3264 = vmatmul.mubr.bf16.gmra.mxu0 %v3188
    %v3265 = vpop.f32.mrf.mxu0
    %v3266 = vadd.f32 0.0, %v3265
    %v3267 = vpop.f32.mrf.mxu0
    %v3268 = vadd.f32 0.0, %v3267
    %v3269 = vpop.f32.mrf.mxu0
    %v3270 = vpop.f32.mrf.mxu0
    %3271 = vdwg.mxu0
    %v3276 = vcombine.low %v3225, %v3227
    %v3277 = vcombine.low %v3266, %v3268
    %v3279 = vunpack.c.l.s4 1983009808
    %v3280 = vunpack.c.0.s8 %v3279
    %v3281 = vlaneseq
    %v3282 = vshrl.u32 %v3281, 7
    %v3283 = vsub.s32 %v3280, %v3282
    %v3284 = vrot.slane %v3276, %v3283
    %v3286 = vunpack.c.l.s4 1983009808
    %v3287 = vunpack.c.0.s8 %v3286
    %v3288 = vlaneseq
    %v3289 = vshrl.u32 %v3288, 7
    %v3290 = vsub.s32 %v3287, %v3289
    %v3291 = vrot.slane %v3277, %v3290
    %v3292 = vcombine.low %v3284, %v3291
    %v3294 = vadd.f32 %v3189, %v3292
    %v3295 = vxor.u32 %v3294, 2147483648
    %v3296 = vmul.f32 %v3295, 1.442695
    %v3297 = vpow.pop %v3296
    %v3298 = vadd.f32 %v3297, 1.0
    %v3299 = vrcp.pop %v3298
    %v3300 = vmul.f32 1.0, %v3299
    %v3302 = vrot.slane %v3294, 2
    %v3304 = vxor.u32 %v3302, 2147483648
    %v3305 = vmul.f32 %v3304, 1.442695
    %v3306 = vpow.pop %v3305
    %v3307 = vadd.f32 %v3306, 1.0
    %v3308 = vrcp.pop %v3307
    %v3309 = vmul.f32 1.0, %v3308
    %v3310 = vrot.slane %v3294, 4
    %v3312 = vtanh.pop %v3310
    %v3313 = vrot.slane %v3294, 6
    %v3315 = vxor.u32 %v3313, 2147483648
    %v3316 = vmul.f32 %v3315, 1.442695
    %v3317 = vpow.pop %v3316
    %v3318 = vadd.f32 %v3317, 1.0
    %v3319 = vrcp.pop %v3318
    %v3320 = vmul.f32 1.0, %v3319
    %v3321 = vmul.f32 %v3309, %v3185
    %v3322 = vmul.f32 %v3300, %v3312
    %v3323 = vadd.f32 %v3321, %v3322
    %v3324 = vtanh.pop %v3323
    %v3325 = vmul.f32 %v3320, %v3324
    %v3326 = vpack.c.bf16 %v3325, %v3325
    %v3327 = vld [vmem:[%s1568] sm:$0xff]
    %3328 = vmatprep.subr.bf16.mxu0 %v2465
    %3329 = vmatpush1.bf16.msra.mxu0 %v2464
    %3330 = vmatprep.subr.bf16.mxu0 %v2461
    %3331 = vmatpush1.bf16.msra.mxu0 %v2460
    %3332 = vmatprep.subr.bf16.mxu0 %v2457
    %3333 = vmatpush1.bf16.msra.mxu0 %v2456
    %3334 = vmatprep.subr.bf16.mxu0 %v2453
    %3335 = vmatpush1.bf16.msra.mxu0 %v2452
    %3336 = vmatprep.subr.bf16.mxu0 %v2449
    %3337 = vmatpush1.bf16.msra.mxu0 %v2448
    %3338 = vmatprep.subr.bf16.mxu0 %v2445
    %3339 = vmatpush1.bf16.msra.mxu0 %v2444
    %3340 = vmatprep.subr.bf16.mxu0 %v2441
    %3341 = vmatpush1.bf16.msra.mxu0 %v2440
    %3342 = vmatprep.subr.bf16.mxu0 %v2437
    %3343 = vmatpush1.bf16.msra.mxu0 %v2436
    %3344 = vmatprep.subr.bf16.mxu0 0
    %3345 = vmatpush2.bf16.msra.mxu0 0
    %3346 = vmatprep.subr.bf16.mxu0 0
    %3347 = vmatpush2.bf16.msra.mxu0 0
    %3348 = vmatprep.subr.bf16.mxu0 0
    %3349 = vmatpush2.bf16.msra.mxu0 0
    %3350 = vmatprep.subr.bf16.mxu0 0
    %3351 = vmatpush2.bf16.msra.mxu0 0
    %3352 = vmatprep.subr.bf16.mxu0 0
    %3353 = vmatpush2.bf16.msra.mxu0 0
    %3354 = vmatprep.subr.bf16.mxu0 0
    %3355 = vmatpush2.bf16.msra.mxu0 0
    %3356 = vmatprep.subr.bf16.mxu0 0
    %3357 = vmatpush2.bf16.msra.mxu0 0
    %3358 = vmatprep.subr.bf16.mxu0 0
    %3359 = vmatpush2.bf16.msra.mxu0 0
    %3360 = vmatprep.mubr.bf16.mxu0 0
    %3361 = vmatmul.mubr.bf16.gmra.mxu0 %v3326
    %v3362 = vpop.f32.mrf.mxu0
    %v3363 = vadd.f32 0.0, %v3362
    %v3364 = vpop.f32.mrf.mxu0
    %v3365 = vadd.f32 0.0, %v3364
    %v3366 = vpop.f32.mrf.mxu0
    %v3367 = vpop.f32.mrf.mxu0
    %3368 = vdwg.mxu0
    %3369 = vmatprep.subr.bf16.mxu0 %v2467
    %3370 = vmatpush1.bf16.msra.mxu0 %v2466
    %3371 = vmatprep.subr.bf16.mxu0 %v2463
    %3372 = vmatpush1.bf16.msra.mxu0 %v2462
    %3373 = vmatprep.subr.bf16.mxu0 %v2459
    %3374 = vmatpush1.bf16.msra.mxu0 %v2458
    %3375 = vmatprep.subr.bf16.mxu0 %v2455
    %3376 = vmatpush1.bf16.msra.mxu0 %v2454
    %3377 = vmatprep.subr.bf16.mxu0 %v2451
    %3378 = vmatpush1.bf16.msra.mxu0 %v2450
    %3379 = vmatprep.subr.bf16.mxu0 %v2447
    %3380 = vmatpush1.bf16.msra.mxu0 %v2446
    %3381 = vmatprep.subr.bf16.mxu0 %v2443
    %3382 = vmatpush1.bf16.msra.mxu0 %v2442
    %3383 = vmatprep.subr.bf16.mxu0 %v2439
    %3384 = vmatpush1.bf16.msra.mxu0 %v2438
    %3385 = vmatprep.subr.bf16.mxu0 0
    %3386 = vmatpush2.bf16.msra.mxu0 0
    %3387 = vmatprep.subr.bf16.mxu0 0
    %3388 = vmatpush2.bf16.msra.mxu0 0
    %3389 = vmatprep.subr.bf16.mxu0 0
    %3390 = vmatpush2.bf16.msra.mxu0 0
    %3391 = vmatprep.subr.bf16.mxu0 0
    %3392 = vmatpush2.bf16.msra.mxu0 0
    %3393 = vmatprep.subr.bf16.mxu0 0
    %3394 = vmatpush2.bf16.msra.mxu0 0
    %3395 = vmatprep.subr.bf16.mxu0 0
    %3396 = vmatpush2.bf16.msra.mxu0 0
    %3397 = vmatprep.subr.bf16.mxu0 0
    %3398 = vmatpush2.bf16.msra.mxu0 0
    %3399 = vmatprep.subr.bf16.mxu0 0
    %3400 = vmatpush2.bf16.msra.mxu0 0
    %3401 = vmatprep.mubr.bf16.mxu0 0
    %3402 = vmatmul.mubr.bf16.gmra.mxu0 %v3326
    %v3403 = vpop.f32.mrf.mxu0
    %v3404 = vadd.f32 0.0, %v3403
    %v3405 = vpop.f32.mrf.mxu0
    %v3406 = vadd.f32 0.0, %v3405
    %v3407 = vpop.f32.mrf.mxu0
    %v3408 = vpop.f32.mrf.mxu0
    %3409 = vdwg.mxu0
    %v3414 = vcombine.low %v3363, %v3365
    %v3415 = vcombine.low %v3404, %v3406
    %v3417 = vunpack.c.l.s4 1983009808
    %v3418 = vunpack.c.0.s8 %v3417
    %v3419 = vlaneseq
    %v3420 = vshrl.u32 %v3419, 7
    %v3421 = vsub.s32 %v3418, %v3420
    %v3422 = vrot.slane %v3414, %v3421
    %v3424 = vunpack.c.l.s4 1983009808
    %v3425 = vunpack.c.0.s8 %v3424
    %v3426 = vlaneseq
    %v3427 = vshrl.u32 %v3426, 7
    %v3428 = vsub.s32 %v3425, %v3427
    %v3429 = vrot.slane %v3415, %v3428
    %v3430 = vcombine.low %v3422, %v3429
    %v3432 = vadd.f32 %v3327, %v3430
    %v3433 = vxor.u32 %v3432, 2147483648
    %v3434 = vmul.f32 %v3433, 1.442695
    %v3435 = vpow.pop %v3434
    %v3436 = vadd.f32 %v3435, 1.0
    %v3437 = vrcp.pop %v3436
    %v3438 = vmul.f32 1.0, %v3437
    %v3440 = vrot.slane %v3432, 2
    %v3442 = vxor.u32 %v3440, 2147483648
    %v3443 = vmul.f32 %v3442, 1.442695
    %v3444 = vpow.pop %v3443
    %v3445 = vadd.f32 %v3444, 1.0
    %v3446 = vrcp.pop %v3445
    %v3447 = vmul.f32 1.0, %v3446
    %v3448 = vrot.slane %v3432, 4
    %v3450 = vtanh.pop %v3448
    %v3451 = vrot.slane %v3432, 6
    %v3453 = vxor.u32 %v3451, 2147483648
    %v3454 = vmul.f32 %v3453, 1.442695
    %v3455 = vpow.pop %v3454
    %v3456 = vadd.f32 %v3455, 1.0
    %v3457 = vrcp.pop %v3456
    %v3458 = vmul.f32 1.0, %v3457
    %v3459 = vmul.f32 %v3447, %v3323
    %v3460 = vmul.f32 %v3438, %v3450
    %v3461 = vadd.f32 %v3459, %v3460
    %v3462 = vtanh.pop %v3461
    %v3463 = vmul.f32 %v3458, %v3462
    %v3464 = vpack.c.bf16 %v3463, %v3463
    %v3465 = vld [vmem:[%s1707] sm:$0xff]
    %3466 = vmatprep.subr.bf16.mxu0 %v2465
    %3467 = vmatpush1.bf16.msra.mxu0 %v2464
    %3468 = vmatprep.subr.bf16.mxu0 %v2461
    %3469 = vmatpush1.bf16.msra.mxu0 %v2460
    %3470 = vmatprep.subr.bf16.mxu0 %v2457
    %3471 = vmatpush1.bf16.msra.mxu0 %v2456
    %3472 = vmatprep.subr.bf16.mxu0 %v2453
    %3473 = vmatpush1.bf16.msra.mxu0 %v2452
    %3474 = vmatprep.subr.bf16.mxu0 %v2449
    %3475 = vmatpush1.bf16.msra.mxu0 %v2448
    %3476 = vmatprep.subr.bf16.mxu0 %v2445
    %3477 = vmatpush1.bf16.msra.mxu0 %v2444
    %3478 = vmatprep.subr.bf16.mxu0 %v2441
    %3479 = vmatpush1.bf16.msra.mxu0 %v2440
    %3480 = vmatprep.subr.bf16.mxu0 %v2437
    %3481 = vmatpush1.bf16.msra.mxu0 %v2436
    %3482 = vmatprep.subr.bf16.mxu0 0
    %3483 = vmatpush2.bf16.msra.mxu0 0
    %3484 = vmatprep.subr.bf16.mxu0 0
    %3485 = vmatpush2.bf16.msra.mxu0 0
    %3486 = vmatprep.subr.bf16.mxu0 0
    %3487 = vmatpush2.bf16.msra.mxu0 0
    %3488 = vmatprep.subr.bf16.mxu0 0
    %3489 = vmatpush2.bf16.msra.mxu0 0
    %3490 = vmatprep.subr.bf16.mxu0 0
    %3491 = vmatpush2.bf16.msra.mxu0 0
    %3492 = vmatprep.subr.bf16.mxu0 0
    %3493 = vmatpush2.bf16.msra.mxu0 0
    %3494 = vmatprep.subr.bf16.mxu0 0
    %3495 = vmatpush2.bf16.msra.mxu0 0
    %3496 = vmatprep.subr.bf16.mxu0 0
    %3497 = vmatpush2.bf16.msra.mxu0 0
    %3498 = vmatprep.mubr.bf16.mxu0 0
    %3499 = vmatmul.mubr.bf16.gmra.mxu0 %v3464
    %v3500 = vpop.f32.mrf.mxu0
    %v3501 = vadd.f32 0.0, %v3500
    %v3502 = vpop.f32.mrf.mxu0
    %v3503 = vadd.f32 0.0, %v3502
    %v3504 = vpop.f32.mrf.mxu0
    %v3505 = vpop.f32.mrf.mxu0
    %3506 = vdwg.mxu0
    %3507 = vmatprep.subr.bf16.mxu0 %v2467
    %3508 = vmatpush1.bf16.msra.mxu0 %v2466
    %3509 = vmatprep.subr.bf16.mxu0 %v2463
    %3510 = vmatpush1.bf16.msra.mxu0 %v2462
    %3511 = vmatprep.subr.bf16.mxu0 %v2459
    %3512 = vmatpush1.bf16.msra.mxu0 %v2458
    %3513 = vmatprep.subr.bf16.mxu0 %v2455
    %3514 = vmatpush1.bf16.msra.mxu0 %v2454
    %3515 = vmatprep.subr.bf16.mxu0 %v2451
    %3516 = vmatpush1.bf16.msra.mxu0 %v2450
    %3517 = vmatprep.subr.bf16.mxu0 %v2447
    %3518 = vmatpush1.bf16.msra.mxu0 %v2446
    %3519 = vmatprep.subr.bf16.mxu0 %v2443
    %3520 = vmatpush1.bf16.msra.mxu0 %v2442
    %3521 = vmatprep.subr.bf16.mxu0 %v2439
    %3522 = vmatpush1.bf16.msra.mxu0 %v2438
    %3523 = vmatprep.subr.bf16.mxu0 0
    %3524 = vmatpush2.bf16.msra.mxu0 0
    %3525 = vmatprep.subr.bf16.mxu0 0
    %3526 = vmatpush2.bf16.msra.mxu0 0
    %3527 = vmatprep.subr.bf16.mxu0 0
    %3528 = vmatpush2.bf16.msra.mxu0 0
    %3529 = vmatprep.subr.bf16.mxu0 0
    %3530 = vmatpush2.bf16.msra.mxu0 0
    %3531 = vmatprep.subr.bf16.mxu0 0
    %3532 = vmatpush2.bf16.msra.mxu0 0
    %3533 = vmatprep.subr.bf16.mxu0 0
    %3534 = vmatpush2.bf16.msra.mxu0 0
    %3535 = vmatprep.subr.bf16.mxu0 0
    %3536 = vmatpush2.bf16.msra.mxu0 0
    %3537 = vmatprep.subr.bf16.mxu0 0
    %3538 = vmatpush2.bf16.msra.mxu0 0
    %3539 = vmatprep.mubr.bf16.mxu0 0
    %3540 = vmatmul.mubr.bf16.gmra.mxu0 %v3464
    %v3541 = vpop.f32.mrf.mxu0
    %v3542 = vadd.f32 0.0, %v3541
    %v3543 = vpop.f32.mrf.mxu0
    %v3544 = vadd.f32 0.0, %v3543
    %v3545 = vpop.f32.mrf.mxu0
    %v3546 = vpop.f32.mrf.mxu0
    %3547 = vdwg.mxu0
    %v3552 = vcombine.low %v3501, %v3503
    %v3553 = vcombine.low %v3542, %v3544
    %v3555 = vunpack.c.l.s4 1983009808
    %v3556 = vunpack.c.0.s8 %v3555
    %v3557 = vlaneseq
    %v3558 = vshrl.u32 %v3557, 7
    %v3559 = vsub.s32 %v3556, %v3558
    %v3560 = vrot.slane %v3552, %v3559
    %v3562 = vunpack.c.l.s4 1983009808
    %v3563 = vunpack.c.0.s8 %v3562
    %v3564 = vlaneseq
    %v3565 = vshrl.u32 %v3564, 7
    %v3566 = vsub.s32 %v3563, %v3565
    %v3567 = vrot.slane %v3553, %v3566
    %v3568 = vcombine.low %v3560, %v3567
    %v3570 = vadd.f32 %v3465, %v3568
    %v3571 = vxor.u32 %v3570, 2147483648
    %v3572 = vmul.f32 %v3571, 1.442695
    %v3573 = vpow.pop %v3572
    %v3574 = vadd.f32 %v3573, 1.0
    %v3575 = vrcp.pop %v3574
    %v3576 = vmul.f32 1.0, %v3575
    %v3578 = vrot.slane %v3570, 2
    %v3580 = vxor.u32 %v3578, 2147483648
    %v3581 = vmul.f32 %v3580, 1.442695
    %v3582 = vpow.pop %v3581
    %v3583 = vadd.f32 %v3582, 1.0
    %v3584 = vrcp.pop %v3583
    %v3585 = vmul.f32 1.0, %v3584
    %v3586 = vrot.slane %v3570, 4
    %v3588 = vtanh.pop %v3586
    %v3589 = vrot.slane %v3570, 6
    %v3591 = vxor.u32 %v3589, 2147483648
    %v3592 = vmul.f32 %v3591, 1.442695
    %v3593 = vpow.pop %v3592
    %v3594 = vadd.f32 %v3593, 1.0
    %v3595 = vrcp.pop %v3594
    %v3596 = vmul.f32 1.0, %v3595
    %v3597 = vmul.f32 %v3585, %v3461
    %v3598 = vmul.f32 %v3576, %v3588
    %v3599 = vadd.f32 %v3597, %v3598
    %v3600 = vtanh.pop %v3599
    %v3601 = vmul.f32 %v3596, %v3600
    %v3602 = vpack.c.bf16 %v3601, %v3601
    %s3603 = scalar_lea.vmem [#allocation24], 2
    %3604 = vst [vmem:[%s3603] sm:$0x3] %v3601
    %s3605 = scalar_lea.vmem [#allocation26], 2
    %3606 = vst [vmem:[%s3605] sm:$0x3] %v3599
    %v3607 = vld [vmem:[#allocation12] sm:$0xf]
    %v3608 = vld [vmem:[#allocation12 + $0x4] sm:$0xf]
    %v3609 = vld [vmem:[#allocation12 + $0x8] sm:$0xf]
    %v3610 = vld [vmem:[#allocation12 + $0xc] sm:$0xf]
    %v3611 = vld [vmem:[#allocation12 + $0x10] sm:$0xf]
    %v3612 = vld [vmem:[#allocation12 + $0x14] sm:$0xf]
    %v3613 = vld [vmem:[#allocation12 + $0x18] sm:$0xf]
    %v3614 = vld [vmem:[#allocation12 + $0x1c] sm:$0xf]
    %v3615 = vld [vmem:[#allocation12 + $0x20] sm:$0xf]
    %v3616 = vld [vmem:[#allocation12 + $0x24] sm:$0xf]
    %v3617 = vld [vmem:[#allocation12 + $0x28] sm:$0xf]
    %v3618 = vld [vmem:[#allocation12 + $0x2c] sm:$0xf]
    %v3619 = vld [vmem:[#allocation12 + $0x30] sm:$0xf]
    %v3620 = vld [vmem:[#allocation12 + $0x34] sm:$0xf]
    %v3621 = vld [vmem:[#allocation12 + $0x38] sm:$0xf]
    %v3622 = vld [vmem:[#allocation12 + $0x3c] sm:$0xf]
    %v3623 = vld [vmem:[%s10] sm:$0x1]
    %v3625 = vlaneseq
    %v3626 = vshrl.u32 %v3625, 7
    %v3627 = vsub.s32 0, %v3626
    %v3628 = vrot.slane %v3623, %v3627
    %v3638 = vcombine.low %v2636, %v2774
    %v3639 = vcombine.low %v2912, %v3050
    %v3640 = vcombine.low %v3188, %v3326
    %v3641 = vcombine.low %v3464, %v3602
    %v3643 = vunpack.c.l.s4 1966171168
    %v3644 = vunpack.c.0.s8 %v3643
    %v3645 = vlaneseq
    %v3646 = vshrl.u32 %v3645, 7
    %v3647 = vsub.s32 %v3644, %v3646
    %v3648 = vrot.slane %v3638, %v3647
    %v3650 = vunpack.c.l.s4 1966171168
    %v3651 = vunpack.c.0.s8 %v3650
    %v3652 = vlaneseq
    %v3653 = vshrl.u32 %v3652, 7
    %v3654 = vsub.s32 %v3651, %v3653
    %v3655 = vrot.slane %v3639, %v3654
    %v3657 = vunpack.c.l.s4 1966171168
    %v3658 = vunpack.c.0.s8 %v3657
    %v3659 = vlaneseq
    %v3660 = vshrl.u32 %v3659, 7
    %v3661 = vsub.s32 %v3658, %v3660
    %v3662 = vrot.slane %v3640, %v3661
    %v3664 = vunpack.c.l.s4 1966171168
    %v3665 = vunpack.c.0.s8 %v3664
    %v3666 = vlaneseq
    %v3667 = vshrl.u32 %v3666, 7
    %v3668 = vsub.s32 %v3665, %v3667
    %v3669 = vrot.slane %v3641, %v3668
    %v3670 = vcombine.low %v3648, %v3655
    %v3671 = vcombine.low %v3662, %v3669
    %v3673 = vunpack.c.l.s4 1966171168
    %v3674 = vunpack.c.0.s8 %v3673
    %v3675 = vlaneseq
    %v3676 = vshrl.u32 %v3675, 7
    %v3677 = vsub.s32 %v3674, %v3676
    %v3678 = vrot.slane %v3670, %v3677
    %v3680 = vunpack.c.l.s4 1966171168
    %v3681 = vunpack.c.0.s8 %v3680
    %v3682 = vlaneseq
    %v3683 = vshrl.u32 %v3682, 7
    %v3684 = vsub.s32 %v3681, %v3683
    %v3685 = vrot.slane %v3671, %v3684
    %v3686 = vcombine.low %v3678, %v3685
    %v3704 = vunpack.c.l.b16 %v3607
    %v3705 = vunpack.c.l.b16 %v3608
    %v3706 = vunpack.c.l.b16 %v3609
    %v3707 = vunpack.c.l.b16 %v3610
    %v3708 = vunpack.c.l.b16 %v3611
    %v3709 = vunpack.c.l.b16 %v3612
    %v3710 = vunpack.c.l.b16 %v3613
    %v3711 = vunpack.c.l.b16 %v3614
    %v3712 = vunpack.c.l.b16 %v3615
    %v3713 = vunpack.c.l.b16 %v3616
    %v3714 = vunpack.c.l.b16 %v3617
    %v3715 = vunpack.c.l.b16 %v3618
    %v3716 = vunpack.c.l.b16 %v3619
    %v3717 = vunpack.c.l.b16 %v3620
    %v3718 = vunpack.c.l.b16 %v3621
    %v3719 = vunpack.c.l.b16 %v3622
    %v3720 = vpack.c.b16 %v3705, %v3704
    %v3721 = vpack.c.b16 %v3707, %v3706
    %v3722 = vpack.c.b16 %v3709, %v3708
    %v3723 = vpack.c.b16 %v3711, %v3710
    %v3724 = vpack.c.b16 %v3713, %v3712
    %v3725 = vpack.c.b16 %v3715, %v3714
    %v3726 = vpack.c.b16 %v3717, %v3716
    %v3727 = vpack.c.b16 %v3719, %v3718
    %3736 = vmatprep.subr.bf16.mxu0 0
    %3737 = vmatpush1.bf16.msra.mxu0 %v3727
    %3738 = vmatprep.subr.bf16.mxu0 0
    %3739 = vmatpush1.bf16.msra.mxu0 %v3726
    %3740 = vmatprep.subr.bf16.mxu0 0
    %3741 = vmatpush1.bf16.msra.mxu0 %v3725
    %3742 = vmatprep.subr.bf16.mxu0 0
    %3743 = vmatpush1.bf16.msra.mxu0 %v3724
    %3744 = vmatprep.subr.bf16.mxu0 0
    %3745 = vmatpush1.bf16.msra.mxu0 %v3723
    %3746 = vmatprep.subr.bf16.mxu0 0
    %3747 = vmatpush1.bf16.msra.mxu0 %v3722
    %3748 = vmatprep.subr.bf16.mxu0 0
    %3749 = vmatpush1.bf16.msra.mxu0 %v3721
    %3750 = vmatprep.subr.bf16.mxu0 0
    %3751 = vmatpush1.bf16.msra.mxu0 %v3720
    %3752 = vmatprep.subr.bf16.mxu0 0
    %3753 = vmatpush2.bf16.msra.mxu0 0
    %3754 = vmatprep.subr.bf16.mxu0 0
    %3755 = vmatpush2.bf16.msra.mxu0 0
    %3756 = vmatprep.subr.bf16.mxu0 0
    %3757 = vmatpush2.bf16.msra.mxu0 0
    %3758 = vmatprep.subr.bf16.mxu0 0
    %3759 = vmatpush2.bf16.msra.mxu0 0
    %3760 = vmatprep.subr.bf16.mxu0 0
    %3761 = vmatpush2.bf16.msra.mxu0 0
    %3762 = vmatprep.subr.bf16.mxu0 0
    %3763 = vmatpush2.bf16.msra.mxu0 0
    %3764 = vmatprep.subr.bf16.mxu0 0
    %3765 = vmatpush2.bf16.msra.mxu0 0
    %3766 = vmatprep.subr.bf16.mxu0 0
    %3767 = vmatpush2.bf16.msra.mxu0 0
    %3768 = vmatprep.mubr.bf16.mxu0 0
    %3769 = vmatmul.mubr.bf16.gmra.mxu0 %v3686
    %v3770 = vpop.f32.mrf.mxu0
    %v3771 = vadd.f32 %v3628, %v3770
    %v3772 = vpop.f32.mrf.mxu0
    %v3773 = vpop.f32.mrf.mxu0
    %v3774 = vadd.f32 %v3628, %v3773
    %v3775 = vpop.f32.mrf.mxu0
    %3776 = vdwg.mxu0
    %vm3777 = vcmp.gt.f32.partialorder %v3771, 0.0
    %vm3778 = vcmp.gt.f32.partialorder %v3774, 0.0
    %v3779 = vmul.f32 %v3771, 0.01
    %v3780 = vmul.f32 %v3774, 0.01
    %v3781 = vsel %vm3777, %v3771, %v3779
    %v3782 = vsel %vm3778, %v3774, %v3780
    %v3783 = vpack.c.bf16 %v3782, %v3781
    %v3784 = vld [vmem:[#allocation14] sm:$0xf]
    %v3785 = vld [vmem:[#allocation14 + $0x4] sm:$0xf]
    %v3786 = vld [vmem:[#allocation14 + $0x8] sm:$0xf]
    %v3787 = vld [vmem:[#allocation14 + $0xc] sm:$0xf]
    %v3788 = vld [vmem:[#allocation14 + $0x10] sm:$0xf]
    %v3789 = vld [vmem:[#allocation14 + $0x14] sm:$0xf]
    %v3790 = vld [vmem:[#allocation14 + $0x18] sm:$0xf]
    %v3791 = vld [vmem:[#allocation14 + $0x1c] sm:$0xf]
    %v3792 = vld [vmem:[#allocation14 + $0x20] sm:$0xf]
    %v3793 = vld [vmem:[#allocation14 + $0x24] sm:$0xf]
    %v3794 = vld [vmem:[#allocation14 + $0x28] sm:$0xf]
    %v3795 = vld [vmem:[#allocation14 + $0x2c] sm:$0xf]
    %v3796 = vld [vmem:[#allocation14 + $0x30] sm:$0xf]
    %v3797 = vld [vmem:[#allocation14 + $0x34] sm:$0xf]
    %v3798 = vld [vmem:[#allocation14 + $0x38] sm:$0xf]
    %v3799 = vld [vmem:[#allocation14 + $0x3c] sm:$0xf]
    %v3800 = vld [vmem:[%s12] sm:$0x1]
    %v3802 = vlaneseq
    %v3803 = vshrl.u32 %v3802, 7
    %v3804 = vsub.s32 0, %v3803
    %v3805 = vrot.slane %v3800, %v3804
    %v3823 = vunpack.c.l.b16 %v3784
    %v3824 = vunpack.c.l.b16 %v3785
    %v3825 = vunpack.c.l.b16 %v3786
    %v3826 = vunpack.c.l.b16 %v3787
    %v3827 = vunpack.c.l.b16 %v3788
    %v3828 = vunpack.c.l.b16 %v3789
    %v3829 = vunpack.c.l.b16 %v3790
    %v3830 = vunpack.c.l.b16 %v3791
    %v3831 = vunpack.c.l.b16 %v3792
    %v3832 = vunpack.c.l.b16 %v3793
    %v3833 = vunpack.c.l.b16 %v3794
    %v3834 = vunpack.c.l.b16 %v3795
    %v3835 = vunpack.c.l.b16 %v3796
    %v3836 = vunpack.c.l.b16 %v3797
    %v3837 = vunpack.c.l.b16 %v3798
    %v3838 = vunpack.c.l.b16 %v3799
    %v3839 = vpack.c.b16 %v3824, %v3823
    %v3840 = vpack.c.b16 %v3826, %v3825
    %v3841 = vpack.c.b16 %v3828, %v3827
    %v3842 = vpack.c.b16 %v3830, %v3829
    %v3843 = vpack.c.b16 %v3832, %v3831
    %v3844 = vpack.c.b16 %v3834, %v3833
    %v3845 = vpack.c.b16 %v3836, %v3835
    %v3846 = vpack.c.b16 %v3838, %v3837
    %3855 = vmatprep.subr.bf16.mxu0 0
    %3856 = vmatpush1.bf16.msra.mxu0 %v3846
    %3857 = vmatprep.subr.bf16.mxu0 0
    %3858 = vmatpush1.bf16.msra.mxu0 %v3845
    %3859 = vmatprep.subr.bf16.mxu0 0
    %3860 = vmatpush1.bf16.msra.mxu0 %v3844
    %3861 = vmatprep.subr.bf16.mxu0 0
    %3862 = vmatpush1.bf16.msra.mxu0 %v3843
    %3863 = vmatprep.subr.bf16.mxu0 0
    %3864 = vmatpush1.bf16.msra.mxu0 %v3842
    %3865 = vmatprep.subr.bf16.mxu0 0
    %3866 = vmatpush1.bf16.msra.mxu0 %v3841
    %3867 = vmatprep.subr.bf16.mxu0 0
    %3868 = vmatpush1.bf16.msra.mxu0 %v3840
    %3869 = vmatprep.subr.bf16.mxu0 0
    %3870 = vmatpush1.bf16.msra.mxu0 %v3839
    %3871 = vmatprep.subr.bf16.mxu0 0
    %3872 = vmatpush2.bf16.msra.mxu0 0
    %3873 = vmatprep.subr.bf16.mxu0 0
    %3874 = vmatpush2.bf16.msra.mxu0 0
    %3875 = vmatprep.subr.bf16.mxu0 0
    %3876 = vmatpush2.bf16.msra.mxu0 0
    %3877 = vmatprep.subr.bf16.mxu0 0
    %3878 = vmatpush2.bf16.msra.mxu0 0
    %3879 = vmatprep.subr.bf16.mxu0 0
    %3880 = vmatpush2.bf16.msra.mxu0 0
    %3881 = vmatprep.subr.bf16.mxu0 0
    %3882 = vmatpush2.bf16.msra.mxu0 0
    %3883 = vmatprep.subr.bf16.mxu0 0
    %3884 = vmatpush2.bf16.msra.mxu0 0
    %3885 = vmatprep.subr.bf16.mxu0 0
    %3886 = vmatpush2.bf16.msra.mxu0 0
    %3887 = vmatprep.mubr.bf16.mxu0 0
    %3888 = vmatmul.mubr.bf16.gmra.mxu0 %v3783
    %v3889 = vpop.f32.mrf.mxu0
    %v3890 = vadd.f32 %v3805, %v3889
    %v3891 = vpop.f32.mrf.mxu0
    %v3892 = vpop.f32.mrf.mxu0
    %v3893 = vadd.f32 %v3805, %v3892
    %v3894 = vpop.f32.mrf.mxu0
    %3895 = vdwg.mxu0
    %v3896 = vld [vmem:[#allocation15] sm:$0xf]
    %v3897 = vld [vmem:[#allocation15 + $0x4] sm:$0xf]
    %v3898 = vld [vmem:[#allocation15 + $0x8] sm:$0xf]
    %v3899 = vld [vmem:[#allocation15 + $0xc] sm:$0xf]
    %v3900 = vld [vmem:[#allocation15 + $0x10] sm:$0xf]
    %v3901 = vld [vmem:[#allocation15 + $0x14] sm:$0xf]
    %v3902 = vld [vmem:[#allocation15 + $0x18] sm:$0xf]
    %v3903 = vld [vmem:[#allocation15 + $0x1c] sm:$0xf]
    %v3904 = vld [vmem:[#allocation15 + $0x20] sm:$0xf]
    %v3905 = vld [vmem:[#allocation15 + $0x24] sm:$0xf]
    %v3906 = vld [vmem:[#allocation15 + $0x28] sm:$0xf]
    %v3907 = vld [vmem:[#allocation15 + $0x2c] sm:$0xf]
    %v3908 = vld [vmem:[#allocation15 + $0x30] sm:$0xf]
    %v3909 = vld [vmem:[#allocation15 + $0x34] sm:$0xf]
    %v3910 = vld [vmem:[#allocation15 + $0x38] sm:$0xf]
    %v3911 = vld [vmem:[#allocation15 + $0x3c] sm:$0xf]
    %v3912 = vld [vmem:[%s14] sm:$0x1]
    %v3914 = vlaneseq
    %v3915 = vshrl.u32 %v3914, 7
    %v3916 = vsub.s32 0, %v3915
    %v3917 = vrot.slane %v3912, %v3916
    %v3935 = vunpack.c.l.b16 %v3896
    %v3936 = vunpack.c.l.b16 %v3897
    %v3937 = vunpack.c.l.b16 %v3898
    %v3938 = vunpack.c.l.b16 %v3899
    %v3939 = vunpack.c.l.b16 %v3900
    %v3940 = vunpack.c.l.b16 %v3901
    %v3941 = vunpack.c.l.b16 %v3902
    %v3942 = vunpack.c.l.b16 %v3903
    %v3943 = vunpack.c.l.b16 %v3904
    %v3944 = vunpack.c.l.b16 %v3905
    %v3945 = vunpack.c.l.b16 %v3906
    %v3946 = vunpack.c.l.b16 %v3907
    %v3947 = vunpack.c.l.b16 %v3908
    %v3948 = vunpack.c.l.b16 %v3909
    %v3949 = vunpack.c.l.b16 %v3910
    %v3950 = vunpack.c.l.b16 %v3911
    %v3951 = vpack.c.b16 %v3936, %v3935
    %v3952 = vpack.c.b16 %v3938, %v3937
    %v3953 = vpack.c.b16 %v3940, %v3939
    %v3954 = vpack.c.b16 %v3942, %v3941
    %v3955 = vpack.c.b16 %v3944, %v3943
    %v3956 = vpack.c.b16 %v3946, %v3945
    %v3957 = vpack.c.b16 %v3948, %v3947
    %v3958 = vpack.c.b16 %v3950, %v3949
    %3967 = vmatprep.subr.bf16.mxu0 0
    %3968 = vmatpush1.bf16.msra.mxu0 %v3958
    %3969 = vmatprep.subr.bf16.mxu0 0
    %3970 = vmatpush1.bf16.msra.mxu0 %v3957
    %3971 = vmatprep.subr.bf16.mxu0 0
    %3972 = vmatpush1.bf16.msra.mxu0 %v3956
    %3973 = vmatprep.subr.bf16.mxu0 0
    %3974 = vmatpush1.bf16.msra.mxu0 %v3955
    %3975 = vmatprep.subr.bf16.mxu0 0
    %3976 = vmatpush1.bf16.msra.mxu0 %v3954
    %3977 = vmatprep.subr.bf16.mxu0 0
    %3978 = vmatpush1.bf16.msra.mxu0 %v3953
    %3979 = vmatprep.subr.bf16.mxu0 0
    %3980 = vmatpush1.bf16.msra.mxu0 %v3952
    %3981 = vmatprep.subr.bf16.mxu0 0
    %3982 = vmatpush1.bf16.msra.mxu0 %v3951
    %3983 = vmatprep.subr.bf16.mxu0 0
    %3984 = vmatpush2.bf16.msra.mxu0 0
    %3985 = vmatprep.subr.bf16.mxu0 0
    %3986 = vmatpush2.bf16.msra.mxu0 0
    %3987 = vmatprep.subr.bf16.mxu0 0
    %3988 = vmatpush2.bf16.msra.mxu0 0
    %3989 = vmatprep.subr.bf16.mxu0 0
    %3990 = vmatpush2.bf16.msra.mxu0 0
    %3991 = vmatprep.subr.bf16.mxu0 0
    %3992 = vmatpush2.bf16.msra.mxu0 0
    %3993 = vmatprep.subr.bf16.mxu0 0
    %3994 = vmatpush2.bf16.msra.mxu0 0
    %3995 = vmatprep.subr.bf16.mxu0 0
    %3996 = vmatpush2.bf16.msra.mxu0 0
    %3997 = vmatprep.subr.bf16.mxu0 0
    %3998 = vmatpush2.bf16.msra.mxu0 0
    %3999 = vmatprep.mubr.bf16.mxu0 0
    %4000 = vmatmul.mubr.bf16.gmra.mxu0 %v3783
    %v4001 = vpop.f32.mrf.mxu0
    %v4002 = vadd.f32 %v3917, %v4001
    %v4003 = vpop.f32.mrf.mxu0
    %v4004 = vpop.f32.mrf.mxu0
    %v4005 = vadd.f32 %v3917, %v4004
    %v4006 = vpop.f32.mrf.mxu0
    %4007 = vdwg.mxu0
    %v4008 = vld [vmem:[#allocation17] sm:$0xf]
    %v4009 = vld [vmem:[#allocation17 + $0x4] sm:$0xf]
    %v4010 = vld [vmem:[#allocation17 + $0x8] sm:$0xf]
    %v4011 = vld [vmem:[#allocation17 + $0xc] sm:$0xf]
    %v4012 = vld [vmem:[#allocation17 + $0x10] sm:$0xf]
    %v4013 = vld [vmem:[#allocation17 + $0x14] sm:$0xf]
    %v4014 = vld [vmem:[#allocation17 + $0x18] sm:$0xf]
    %v4015 = vld [vmem:[#allocation17 + $0x1c] sm:$0xf]
    %v4016 = vld [vmem:[#allocation17 + $0x20] sm:$0xf]
    %v4017 = vld [vmem:[#allocation17 + $0x24] sm:$0xf]
    %v4018 = vld [vmem:[#allocation17 + $0x28] sm:$0xf]
    %v4019 = vld [vmem:[#allocation17 + $0x2c] sm:$0xf]
    %v4020 = vld [vmem:[#allocation17 + $0x30] sm:$0xf]
    %v4021 = vld [vmem:[#allocation17 + $0x34] sm:$0xf]
    %v4022 = vld [vmem:[#allocation17 + $0x38] sm:$0xf]
    %v4023 = vld [vmem:[#allocation17 + $0x3c] sm:$0xf]
    %v4024 = vld [vmem:[%s16] sm:$0x1]
    %v4026 = vlaneseq
    %v4027 = vshrl.u32 %v4026, 7
    %v4028 = vsub.s32 0, %v4027
    %v4029 = vrot.slane %v4024, %v4028
    %v4047 = vunpack.c.l.b16 %v4008
    %v4048 = vunpack.c.l.b16 %v4009
    %v4049 = vunpack.c.l.b16 %v4010
    %v4050 = vunpack.c.l.b16 %v4011
    %v4051 = vunpack.c.l.b16 %v4012
    %v4052 = vunpack.c.l.b16 %v4013
    %v4053 = vunpack.c.l.b16 %v4014
    %v4054 = vunpack.c.l.b16 %v4015
    %v4055 = vunpack.c.l.b16 %v4016
    %v4056 = vunpack.c.l.b16 %v4017
    %v4057 = vunpack.c.l.b16 %v4018
    %v4058 = vunpack.c.l.b16 %v4019
    %v4059 = vunpack.c.l.b16 %v4020
    %v4060 = vunpack.c.l.b16 %v4021
    %v4061 = vunpack.c.l.b16 %v4022
    %v4062 = vunpack.c.l.b16 %v4023
    %v4063 = vpack.c.b16 %v4048, %v4047
    %v4064 = vpack.c.b16 %v4050, %v4049
    %v4065 = vpack.c.b16 %v4052, %v4051
    %v4066 = vpack.c.b16 %v4054, %v4053
    %v4067 = vpack.c.b16 %v4056, %v4055
    %v4068 = vpack.c.b16 %v4058, %v4057
    %v4069 = vpack.c.b16 %v4060, %v4059
    %v4070 = vpack.c.b16 %v4062, %v4061
    %4079 = vmatprep.subr.bf16.mxu0 0
    %4080 = vmatpush1.bf16.msra.mxu0 %v4070
    %4081 = vmatprep.subr.bf16.mxu0 0
    %4082 = vmatpush1.bf16.msra.mxu0 %v4069
    %4083 = vmatprep.subr.bf16.mxu0 0
    %4084 = vmatpush1.bf16.msra.mxu0 %v4068
    %4085 = vmatprep.subr.bf16.mxu0 0
    %4086 = vmatpush1.bf16.msra.mxu0 %v4067
    %4087 = vmatprep.subr.bf16.mxu0 0
    %4088 = vmatpush1.bf16.msra.mxu0 %v4066
    %4089 = vmatprep.subr.bf16.mxu0 0
    %4090 = vmatpush1.bf16.msra.mxu0 %v4065
    %4091 = vmatprep.subr.bf16.mxu0 0
    %4092 = vmatpush1.bf16.msra.mxu0 %v4064
    %4093 = vmatprep.subr.bf16.mxu0 0
    %4094 = vmatpush1.bf16.msra.mxu0 %v4063
    %4095 = vmatprep.subr.bf16.mxu0 0
    %4096 = vmatpush2.bf16.msra.mxu0 0
    %4097 = vmatprep.subr.bf16.mxu0 0
    %4098 = vmatpush2.bf16.msra.mxu0 0
    %4099 = vmatprep.subr.bf16.mxu0 0
    %4100 = vmatpush2.bf16.msra.mxu0 0
    %4101 = vmatprep.subr.bf16.mxu0 0
    %4102 = vmatpush2.bf16.msra.mxu0 0
    %4103 = vmatprep.subr.bf16.mxu0 0
    %4104 = vmatpush2.bf16.msra.mxu0 0
    %4105 = vmatprep.subr.bf16.mxu0 0
    %4106 = vmatpush2.bf16.msra.mxu0 0
    %4107 = vmatprep.subr.bf16.mxu0 0
    %4108 = vmatpush2.bf16.msra.mxu0 0
    %4109 = vmatprep.subr.bf16.mxu0 0
    %4110 = vmatpush2.bf16.msra.mxu0 0
    %4111 = vmatprep.mubr.bf16.mxu0 0
    %4112 = vmatmul.mubr.bf16.gmra.mxu0 %v3783
    %v4113 = vpop.f32.mrf.mxu0
    %v4114 = vadd.f32 %v4029, %v4113
    %v4115 = vpop.f32.mrf.mxu0
    %v4116 = vpop.f32.mrf.mxu0
    %v4117 = vadd.f32 %v4029, %v4116
    %v4118 = vpop.f32.mrf.mxu0
    %4119 = vdwg.mxu0
    %v4120 = vmul.f32 %v3890, 0.17677669
    %v4121 = vmul.f32 %v3893, 0.17677669
    %v4122 = vpack.c.bf16 %v4121, %v4120
    %v4124 = vcombine.high %v4122, %v4122
    %v4126 = vunpack.c.l.s4 1966171168
    %v4127 = vunpack.c.0.s8 %v4126
    %v4128 = vlaneseq
    %v4129 = vshrl.u32 %v4128, 7
    %v4130 = vsub.s32 %v4127, %v4129
    %v4131 = vrot.slane %v4122, %v4130
    %v4133 = vunpack.c.l.s4 1966171168
    %v4134 = vunpack.c.0.s8 %v4133
    %v4135 = vlaneseq
    %v4136 = vshrl.u32 %v4135, 7
    %v4137 = vsub.s32 %v4134, %v4136
    %v4138 = vrot.slane %v4124, %v4137
    %v4139 = vcombine.high %v4131, %v4131
    %v4140 = vcombine.high %v4138, %v4138
    %v4142 = vunpack.c.l.s4 1966171168
    %v4143 = vunpack.c.0.s8 %v4142
    %v4144 = vlaneseq
    %v4145 = vshrl.u32 %v4144, 7
    %v4146 = vsub.s32 %v4143, %v4145
    %v4147 = vrot.slane %v4131, %v4146
    %v4149 = vunpack.c.l.s4 1966171168
    %v4150 = vunpack.c.0.s8 %v4149
    %v4151 = vlaneseq
    %v4152 = vshrl.u32 %v4151, 7
    %v4153 = vsub.s32 %v4150, %v4152
    %v4154 = vrot.slane %v4138, %v4153
    %v4156 = vunpack.c.l.s4 1966171168
    %v4157 = vunpack.c.0.s8 %v4156
    %v4158 = vlaneseq
    %v4159 = vshrl.u32 %v4158, 7
    %v4160 = vsub.s32 %v4157, %v4159
    %v4161 = vrot.slane %v4139, %v4160
    %v4163 = vunpack.c.l.s4 1966171168
    %v4164 = vunpack.c.0.s8 %v4163
    %v4165 = vlaneseq
    %v4166 = vshrl.u32 %v4165, 7
    %v4167 = vsub.s32 %v4164, %v4166
    %v4168 = vrot.slane %v4140, %v4167
    %v4169 = vcombine.high %v4147, %v4147
    %v4170 = vcombine.high %v4154, %v4154
    %v4171 = vcombine.high %v4161, %v4161
    %v4172 = vcombine.high %v4168, %v4168
    %v4181 = vpack.c.bf16 %v4005, %v4002
    %v4183 = vcombine.high %v4181, %v4181
    %v4185 = vunpack.c.l.s4 1966171168
    %v4186 = vunpack.c.0.s8 %v4185
    %v4187 = vlaneseq
    %v4188 = vshrl.u32 %v4187, 7
    %v4189 = vsub.s32 %v4186, %v4188
    %v4190 = vrot.slane %v4181, %v4189
    %v4192 = vunpack.c.l.s4 1966171168
    %v4193 = vunpack.c.0.s8 %v4192
    %v4194 = vlaneseq
    %v4195 = vshrl.u32 %v4194, 7
    %v4196 = vsub.s32 %v4193, %v4195
    %v4197 = vrot.slane %v4183, %v4196
    %v4198 = vcombine.high %v4190, %v4190
    %v4199 = vcombine.high %v4197, %v4197
    %v4201 = vunpack.c.l.s4 1966171168
    %v4202 = vunpack.c.0.s8 %v4201
    %v4203 = vlaneseq
    %v4204 = vshrl.u32 %v4203, 7
    %v4205 = vsub.s32 %v4202, %v4204
    %v4206 = vrot.slane %v4190, %v4205
    %v4208 = vunpack.c.l.s4 1966171168
    %v4209 = vunpack.c.0.s8 %v4208
    %v4210 = vlaneseq
    %v4211 = vshrl.u32 %v4210, 7
    %v4212 = vsub.s32 %v4209, %v4211
    %v4213 = vrot.slane %v4197, %v4212
    %v4215 = vunpack.c.l.s4 1966171168
    %v4216 = vunpack.c.0.s8 %v4215
    %v4217 = vlaneseq
    %v4218 = vshrl.u32 %v4217, 7
    %v4219 = vsub.s32 %v4216, %v4218
    %v4220 = vrot.slane %v4198, %v4219
    %v4222 = vunpack.c.l.s4 1966171168
    %v4223 = vunpack.c.0.s8 %v4222
    %v4224 = vlaneseq
    %v4225 = vshrl.u32 %v4224, 7
    %v4226 = vsub.s32 %v4223, %v4225
    %v4227 = vrot.slane %v4199, %v4226
    %v4228 = vcombine.high %v4206, %v4206
    %v4229 = vcombine.high %v4213, %v4213
    %v4230 = vcombine.high %v4220, %v4220
    %v4231 = vcombine.high %v4227, %v4227
    %v4240 = vpack.c.bf16 %v4117, %v4114
    %v4242 = vcombine.high %v4240, %v4240
    %v4244 = vunpack.c.l.s4 1966171168
    %v4245 = vunpack.c.0.s8 %v4244
    %v4246 = vlaneseq
    %v4247 = vshrl.u32 %v4246, 7
    %v4248 = vsub.s32 %v4245, %v4247
    %v4249 = vrot.slane %v4240, %v4248
    %v4251 = vunpack.c.l.s4 1966171168
    %v4252 = vunpack.c.0.s8 %v4251
    %v4253 = vlaneseq
    %v4254 = vshrl.u32 %v4253, 7
    %v4255 = vsub.s32 %v4252, %v4254
    %v4256 = vrot.slane %v4242, %v4255
    %v4257 = vcombine.high %v4249, %v4249
    %v4258 = vcombine.high %v4256, %v4256
    %v4260 = vunpack.c.l.s4 1966171168
    %v4261 = vunpack.c.0.s8 %v4260
    %v4262 = vlaneseq
    %v4263 = vshrl.u32 %v4262, 7
    %v4264 = vsub.s32 %v4261, %v4263
    %v4265 = vrot.slane %v4249, %v4264
    %v4267 = vunpack.c.l.s4 1966171168
    %v4268 = vunpack.c.0.s8 %v4267
    %v4269 = vlaneseq
    %v4270 = vshrl.u32 %v4269, 7
    %v4271 = vsub.s32 %v4268, %v4270
    %v4272 = vrot.slane %v4256, %v4271
    %v4274 = vunpack.c.l.s4 1966171168
    %v4275 = vunpack.c.0.s8 %v4274
    %v4276 = vlaneseq
    %v4277 = vshrl.u32 %v4276, 7
    %v4278 = vsub.s32 %v4275, %v4277
    %v4279 = vrot.slane %v4257, %v4278
    %v4281 = vunpack.c.l.s4 1966171168
    %v4282 = vunpack.c.0.s8 %v4281
    %v4283 = vlaneseq
    %v4284 = vshrl.u32 %v4283, 7
    %v4285 = vsub.s32 %v4282, %v4284
    %v4286 = vrot.slane %v4258, %v4285
    %v4287 = vcombine.high %v4265, %v4265
    %v4288 = vcombine.high %v4272, %v4272
    %v4289 = vcombine.high %v4279, %v4279
    %v4290 = vcombine.high %v4286, %v4286
    %4291 = vmatprep.subr.bf16.mxu0 0
    %4292 = vmatpush1.bf16.xpose.msra.mxu0 0
    %4293 = vmatprep.subr.bf16.mxu0 0
    %4294 = vmatpush1.bf16.xpose.msra.mxu0 0
    %4295 = vmatprep.subr.bf16.mxu0 0
    %4296 = vmatpush1.bf16.xpose.msra.mxu0 0
    %4297 = vmatprep.subr.bf16.mxu0 0
    %4298 = vmatpush1.bf16.xpose.msra.mxu0 0
    %4299 = vmatprep.subr.bf16.mxu0 0
    %4300 = vmatpush1.bf16.xpose.msra.mxu0 0
    %4301 = vmatprep.subr.bf16.mxu0 0
    %4302 = vmatpush1.bf16.xpose.msra.mxu0 0
    %4303 = vmatprep.subr.bf16.mxu0 0
    %4304 = vmatpush1.bf16.xpose.msra.mxu0 0
    %4305 = vmatprep.subr.bf16.mxu0 0
    %4306 = vmatpush1.bf16.xpose.msra.mxu0 %v4206
    %4307 = vmatprep.subr.bf16.mxu0 0
    %4308 = vmatpush2.bf16.xpose.msra.mxu0 0
    %4309 = vmatprep.subr.bf16.mxu0 0
    %4310 = vmatpush2.bf16.xpose.msra.mxu0 0
    %4311 = vmatprep.subr.bf16.mxu0 0
    %4312 = vmatpush2.bf16.xpose.msra.mxu0 0
    %4313 = vmatprep.subr.bf16.mxu0 0
    %4314 = vmatpush2.bf16.xpose.msra.mxu0 0
    %4315 = vmatprep.subr.bf16.mxu0 0
    %4316 = vmatpush2.bf16.xpose.msra.mxu0 0
    %4317 = vmatprep.subr.bf16.mxu0 0
    %4318 = vmatpush2.bf16.xpose.msra.mxu0 0
    %4319 = vmatprep.subr.bf16.mxu0 0
    %4320 = vmatpush2.bf16.xpose.msra.mxu0 0
    %4321 = vmatprep.subr.bf16.mxu0 0
    %4322 = vmatpush2.bf16.xpose.msra.mxu0 0
    %4323 = vmatprep.mubr.bf16.mxu0 0
    %4324 = vmatmul.mubr.bf16.gmra.mxu0 %v4147
    %v4325 = vpop.f32.mrf.mxu0
    %v4326 = vadd.f32 0.0, %v4325
    %v4327 = vpop.f32.mrf.mxu0
    %v4328 = vpop.f32.mrf.mxu0
    %v4329 = vpop.f32.mrf.mxu0
    %4330 = vdwg.mxu0
    %4331 = vmatprep.subr.bf16.mxu0 0
    %4332 = vmatpush1.bf16.xpose.msra.mxu0 0
    %4333 = vmatprep.subr.bf16.mxu0 0
    %4334 = vmatpush1.bf16.xpose.msra.mxu0 0
    %4335 = vmatprep.subr.bf16.mxu0 0
    %4336 = vmatpush1.bf16.xpose.msra.mxu0 0
    %4337 = vmatprep.subr.bf16.mxu0 0
    %4338 = vmatpush1.bf16.xpose.msra.mxu0 0
    %4339 = vmatprep.subr.bf16.mxu0 0
    %4340 = vmatpush1.bf16.xpose.msra.mxu0 0
    %4341 = vmatprep.subr.bf16.mxu0 0
    %4342 = vmatpush1.bf16.xpose.msra.mxu0 0
    %4343 = vmatprep.subr.bf16.mxu0 0
    %4344 = vmatpush1.bf16.xpose.msra.mxu0 0
    %4345 = vmatprep.subr.bf16.mxu0 0
    %4346 = vmatpush1.bf16.xpose.msra.mxu0 %v4220
    %4347 = vmatprep.subr.bf16.mxu0 0
    %4348 = vmatpush2.bf16.xpose.msra.mxu0 0
    %4349 = vmatprep.subr.bf16.mxu0 0
    %4350 = vmatpush2.bf16.xpose.msra.mxu0 0
    %4351 = vmatprep.subr.bf16.mxu0 0
    %4352 = vmatpush2.bf16.xpose.msra.mxu0 0
    %4353 = vmatprep.subr.bf16.mxu0 0
    %4354 = vmatpush2.bf16.xpose.msra.mxu0 0
    %4355 = vmatprep.subr.bf16.mxu0 0
    %4356 = vmatpush2.bf16.xpose.msra.mxu0 0
    %4357 = vmatprep.subr.bf16.mxu0 0
    %4358 = vmatpush2.bf16.xpose.msra.mxu0 0
    %4359 = vmatprep.subr.bf16.mxu0 0
    %4360 = vmatpush2.bf16.xpose.msra.mxu0 0
    %4361 = vmatprep.subr.bf16.mxu0 0
    %4362 = vmatpush2.bf16.xpose.msra.mxu0 0
    %4363 = vmatprep.mubr.bf16.mxu0 0
    %4364 = vmatmul.mubr.bf16.gmra.mxu0 %v4161
    %v4365 = vpop.f32.mrf.mxu0
    %v4366 = vadd.f32 0.0, %v4365
    %v4367 = vpop.f32.mrf.mxu0
    %v4368 = vpop.f32.mrf.mxu0
    %v4369 = vpop.f32.mrf.mxu0
    %4370 = vdwg.mxu0
    %4371 = vmatprep.subr.bf16.mxu0 0
    %4372 = vmatpush1.bf16.xpose.msra.mxu0 0
    %4373 = vmatprep.subr.bf16.mxu0 0
    %4374 = vmatpush1.bf16.xpose.msra.mxu0 0
    %4375 = vmatprep.subr.bf16.mxu0 0
    %4376 = vmatpush1.bf16.xpose.msra.mxu0 0
    %4377 = vmatprep.subr.bf16.mxu0 0
    %4378 = vmatpush1.bf16.xpose.msra.mxu0 0
    %4379 = vmatprep.subr.bf16.mxu0 0
    %4380 = vmatpush1.bf16.xpose.msra.mxu0 0
    %4381 = vmatprep.subr.bf16.mxu0 0
    %4382 = vmatpush1.bf16.xpose.msra.mxu0 0
    %4383 = vmatprep.subr.bf16.mxu0 0
    %4384 = vmatpush1.bf16.xpose.msra.mxu0 0
    %4385 = vmatprep.subr.bf16.mxu0 0
    %4386 = vmatpush1.bf16.xpose.msra.mxu0 %v4228
    %4387 = vmatprep.subr.bf16.mxu0 0
    %4388 = vmatpush2.bf16.xpose.msra.mxu0 0
    %4389 = vmatprep.subr.bf16.mxu0 0
    %4390 = vmatpush2.bf16.xpose.msra.mxu0 0
    %4391 = vmatprep.subr.bf16.mxu0 0
    %4392 = vmatpush2.bf16.xpose.msra.mxu0 0
    %4393 = vmatprep.subr.bf16.mxu0 0
    %4394 = vmatpush2.bf16.xpose.msra.mxu0 0
    %4395 = vmatprep.subr.bf16.mxu0 0
    %4396 = vmatpush2.bf16.xpose.msra.mxu0 0
    %4397 = vmatprep.subr.bf16.mxu0 0
    %4398 = vmatpush2.bf16.xpose.msra.mxu0 0
    %4399 = vmatprep.subr.bf16.mxu0 0
    %4400 = vmatpush2.bf16.xpose.msra.mxu0 0
    %4401 = vmatprep.subr.bf16.mxu0 0
    %4402 = vmatpush2.bf16.xpose.msra.mxu0 0
    %4403 = vmatprep.mubr.bf16.mxu0 0
    %4404 = vmatmul.mubr.bf16.gmra.mxu0 %v4169
    %v4405 = vpop.f32.mrf.mxu0
    %v4406 = vadd.f32 0.0, %v4405
    %v4407 = vpop.f32.mrf.mxu0
    %v4408 = vpop.f32.mrf.mxu0
    %v4409 = vpop.f32.mrf.mxu0
    %4410 = vdwg.mxu0
    %4411 = vmatprep.subr.bf16.mxu0 0
    %4412 = vmatpush1.bf16.xpose.msra.mxu0 0
    %4413 = vmatprep.subr.bf16.mxu0 0
    %4414 = vmatpush1.bf16.xpose.msra.mxu0 0
    %4415 = vmatprep.subr.bf16.mxu0 0
    %4416 = vmatpush1.bf16.xpose.msra.mxu0 0
    %4417 = vmatprep.subr.bf16.mxu0 0
    %4418 = vmatpush1.bf16.xpose.msra.mxu0 0
    %4419 = vmatprep.subr.bf16.mxu0 0
    %4420 = vmatpush1.bf16.xpose.msra.mxu0 0
    %4421 = vmatprep.subr.bf16.mxu0 0
    %4422 = vmatpush1.bf16.xpose.msra.mxu0 0
    %4423 = vmatprep.subr.bf16.mxu0 0
    %4424 = vmatpush1.bf16.xpose.msra.mxu0 0
    %4425 = vmatprep.subr.bf16.mxu0 0
    %4426 = vmatpush1.bf16.xpose.msra.mxu0 %v4230
    %4427 = vmatprep.subr.bf16.mxu0 0
    %4428 = vmatpush2.bf16.xpose.msra.mxu0 0
    %4429 = vmatprep.subr.bf16.mxu0 0
    %4430 = vmatpush2.bf16.xpose.msra.mxu0 0
    %4431 = vmatprep.subr.bf16.mxu0 0
    %4432 = vmatpush2.bf16.xpose.msra.mxu0 0
    %4433 = vmatprep.subr.bf16.mxu0 0
    %4434 = vmatpush2.bf16.xpose.msra.mxu0 0
    %4435 = vmatprep.subr.bf16.mxu0 0
    %4436 = vmatpush2.bf16.xpose.msra.mxu0 0
    %4437 = vmatprep.subr.bf16.mxu0 0
    %4438 = vmatpush2.bf16.xpose.msra.mxu0 0
    %4439 = vmatprep.subr.bf16.mxu0 0
    %4440 = vmatpush2.bf16.xpose.msra.mxu0 0
    %4441 = vmatprep.subr.bf16.mxu0 0
    %4442 = vmatpush2.bf16.xpose.msra.mxu0 0
    %4443 = vmatprep.mubr.bf16.mxu0 0
    %4444 = vmatmul.mubr.bf16.gmra.mxu0 %v4171
    %v4445 = vpop.f32.mrf.mxu0
    %v4446 = vadd.f32 0.0, %v4445
    %v4447 = vpop.f32.mrf.mxu0
    %v4448 = vpop.f32.mrf.mxu0
    %v4449 = vpop.f32.mrf.mxu0
    %4450 = vdwg.mxu0
    %4451 = vmatprep.subr.bf16.mxu0 0
    %4452 = vmatpush1.bf16.xpose.msra.mxu0 0
    %4453 = vmatprep.subr.bf16.mxu0 0
    %4454 = vmatpush1.bf16.xpose.msra.mxu0 0
    %4455 = vmatprep.subr.bf16.mxu0 0
    %4456 = vmatpush1.bf16.xpose.msra.mxu0 0
    %4457 = vmatprep.subr.bf16.mxu0 0
    %4458 = vmatpush1.bf16.xpose.msra.mxu0 0
    %4459 = vmatprep.subr.bf16.mxu0 0
    %4460 = vmatpush1.bf16.xpose.msra.mxu0 0
    %4461 = vmatprep.subr.bf16.mxu0 0
    %4462 = vmatpush1.bf16.xpose.msra.mxu0 0
    %4463 = vmatprep.subr.bf16.mxu0 0
    %4464 = vmatpush1.bf16.xpose.msra.mxu0 0
    %4465 = vmatprep.subr.bf16.mxu0 0
    %4466 = vmatpush1.bf16.xpose.msra.mxu0 %v4213
    %4467 = vmatprep.subr.bf16.mxu0 0
    %4468 = vmatpush2.bf16.xpose.msra.mxu0 0
    %4469 = vmatprep.subr.bf16.mxu0 0
    %4470 = vmatpush2.bf16.xpose.msra.mxu0 0
    %4471 = vmatprep.subr.bf16.mxu0 0
    %4472 = vmatpush2.bf16.xpose.msra.mxu0 0
    %4473 = vmatprep.subr.bf16.mxu0 0
    %4474 = vmatpush2.bf16.xpose.msra.mxu0 0
    %4475 = vmatprep.subr.bf16.mxu0 0
    %4476 = vmatpush2.bf16.xpose.msra.mxu0 0
    %4477 = vmatprep.subr.bf16.mxu0 0
    %4478 = vmatpush2.bf16.xpose.msra.mxu0 0
    %4479 = vmatprep.subr.bf16.mxu0 0
    %4480 = vmatpush2.bf16.xpose.msra.mxu0 0
    %4481 = vmatprep.subr.bf16.mxu0 0
    %4482 = vmatpush2.bf16.xpose.msra.mxu0 0
    %4483 = vmatprep.mubr.bf16.mxu0 0
    %4484 = vmatmul.mubr.bf16.gmra.mxu0 %v4154
    %v4485 = vpop.f32.mrf.mxu0
    %v4486 = vadd.f32 0.0, %v4485
    %v4487 = vpop.f32.mrf.mxu0
    %v4488 = vpop.f32.mrf.mxu0
    %v4489 = vpop.f32.mrf.mxu0
    %4490 = vdwg.mxu0
    %4491 = vmatprep.subr.bf16.mxu0 0
    %4492 = vmatpush1.bf16.xpose.msra.mxu0 0
    %4493 = vmatprep.subr.bf16.mxu0 0
    %4494 = vmatpush1.bf16.xpose.msra.mxu0 0
    %4495 = vmatprep.subr.bf16.mxu0 0
    %4496 = vmatpush1.bf16.xpose.msra.mxu0 0
    %4497 = vmatprep.subr.bf16.mxu0 0
    %4498 = vmatpush1.bf16.xpose.msra.mxu0 0
    %4499 = vmatprep.subr.bf16.mxu0 0
    %4500 = vmatpush1.bf16.xpose.msra.mxu0 0
    %4501 = vmatprep.subr.bf16.mxu0 0
    %4502 = vmatpush1.bf16.xpose.msra.mxu0 0
    %4503 = vmatprep.subr.bf16.mxu0 0
    %4504 = vmatpush1.bf16.xpose.msra.mxu0 0
    %4505 = vmatprep.subr.bf16.mxu0 0
    %4506 = vmatpush1.bf16.xpose.msra.mxu0 %v4227
    %4507 = vmatprep.subr.bf16.mxu0 0
    %4508 = vmatpush2.bf16.xpose.msra.mxu0 0
    %4509 = vmatprep.subr.bf16.mxu0 0
    %4510 = vmatpush2.bf16.xpose.msra.mxu0 0
    %4511 = vmatprep.subr.bf16.mxu0 0
    %4512 = vmatpush2.bf16.xpose.msra.mxu0 0
    %4513 = vmatprep.subr.bf16.mxu0 0
    %4514 = vmatpush2.bf16.xpose.msra.mxu0 0
    %4515 = vmatprep.subr.bf16.mxu0 0
    %4516 = vmatpush2.bf16.xpose.msra.mxu0 0
    %4517 = vmatprep.subr.bf16.mxu0 0
    %4518 = vmatpush2.bf16.xpose.msra.mxu0 0
    %4519 = vmatprep.subr.bf16.mxu0 0
    %4520 = vmatpush2.bf16.xpose.msra.mxu0 0
    %4521 = vmatprep.subr.bf16.mxu0 0
    %4522 = vmatpush2.bf16.xpose.msra.mxu0 0
    %4523 = vmatprep.mubr.bf16.mxu0 0
    %4524 = vmatmul.mubr.bf16.gmra.mxu0 %v4168
    %v4525 = vpop.f32.mrf.mxu0
    %v4526 = vadd.f32 0.0, %v4525
    %v4527 = vpop.f32.mrf.mxu0
    %v4528 = vpop.f32.mrf.mxu0
    %v4529 = vpop.f32.mrf.mxu0
    %4530 = vdwg.mxu0
    %4531 = vmatprep.subr.bf16.mxu0 0
    %4532 = vmatpush1.bf16.xpose.msra.mxu0 0
    %4533 = vmatprep.subr.bf16.mxu0 0
    %4534 = vmatpush1.bf16.xpose.msra.mxu0 0
    %4535 = vmatprep.subr.bf16.mxu0 0
    %4536 = vmatpush1.bf16.xpose.msra.mxu0 0
    %4537 = vmatprep.subr.bf16.mxu0 0
    %4538 = vmatpush1.bf16.xpose.msra.mxu0 0
    %4539 = vmatprep.subr.bf16.mxu0 0
    %4540 = vmatpush1.bf16.xpose.msra.mxu0 0
    %4541 = vmatprep.subr.bf16.mxu0 0
    %4542 = vmatpush1.bf16.xpose.msra.mxu0 0
    %4543 = vmatprep.subr.bf16.mxu0 0
    %4544 = vmatpush1.bf16.xpose.msra.mxu0 0
    %4545 = vmatprep.subr.bf16.mxu0 0
    %4546 = vmatpush1.bf16.xpose.msra.mxu0 %v4229
    %4547 = vmatprep.subr.bf16.mxu0 0
    %4548 = vmatpush2.bf16.xpose.msra.mxu0 0
    %4549 = vmatprep.subr.bf16.mxu0 0
    %4550 = vmatpush2.bf16.xpose.msra.mxu0 0
    %4551 = vmatprep.subr.bf16.mxu0 0
    %4552 = vmatpush2.bf16.xpose.msra.mxu0 0
    %4553 = vmatprep.subr.bf16.mxu0 0
    %4554 = vmatpush2.bf16.xpose.msra.mxu0 0
    %4555 = vmatprep.subr.bf16.mxu0 0
    %4556 = vmatpush2.bf16.xpose.msra.mxu0 0
    %4557 = vmatprep.subr.bf16.mxu0 0
    %4558 = vmatpush2.bf16.xpose.msra.mxu0 0
    %4559 = vmatprep.subr.bf16.mxu0 0
    %4560 = vmatpush2.bf16.xpose.msra.mxu0 0
    %4561 = vmatprep.subr.bf16.mxu0 0
    %4562 = vmatpush2.bf16.xpose.msra.mxu0 0
    %4563 = vmatprep.mubr.bf16.mxu0 0
    %4564 = vmatmul.mubr.bf16.gmra.mxu0 %v4170
    %v4565 = vpop.f32.mrf.mxu0
    %v4566 = vadd.f32 0.0, %v4565
    %v4567 = vpop.f32.mrf.mxu0
    %v4568 = vpop.f32.mrf.mxu0
    %v4569 = vpop.f32.mrf.mxu0
    %4570 = vdwg.mxu0
    %4571 = vmatprep.subr.bf16.mxu0 0
    %4572 = vmatpush1.bf16.xpose.msra.mxu0 0
    %4573 = vmatprep.subr.bf16.mxu0 0
    %4574 = vmatpush1.bf16.xpose.msra.mxu0 0
    %4575 = vmatprep.subr.bf16.mxu0 0
    %4576 = vmatpush1.bf16.xpose.msra.mxu0 0
    %4577 = vmatprep.subr.bf16.mxu0 0
    %4578 = vmatpush1.bf16.xpose.msra.mxu0 0
    %4579 = vmatprep.subr.bf16.mxu0 0
    %4580 = vmatpush1.bf16.xpose.msra.mxu0 0
    %4581 = vmatprep.subr.bf16.mxu0 0
    %4582 = vmatpush1.bf16.xpose.msra.mxu0 0
    %4583 = vmatprep.subr.bf16.mxu0 0
    %4584 = vmatpush1.bf16.xpose.msra.mxu0 0
    %4585 = vmatprep.subr.bf16.mxu0 0
    %4586 = vmatpush1.bf16.xpose.msra.mxu0 %v4231
    %4587 = vmatprep.subr.bf16.mxu0 0
    %4588 = vmatpush2.bf16.xpose.msra.mxu0 0
    %4589 = vmatprep.subr.bf16.mxu0 0
    %4590 = vmatpush2.bf16.xpose.msra.mxu0 0
    %4591 = vmatprep.subr.bf16.mxu0 0
    %4592 = vmatpush2.bf16.xpose.msra.mxu0 0
    %4593 = vmatprep.subr.bf16.mxu0 0
    %4594 = vmatpush2.bf16.xpose.msra.mxu0 0
    %4595 = vmatprep.subr.bf16.mxu0 0
    %4596 = vmatpush2.bf16.xpose.msra.mxu0 0
    %4597 = vmatprep.subr.bf16.mxu0 0
    %4598 = vmatpush2.bf16.xpose.msra.mxu0 0
    %4599 = vmatprep.subr.bf16.mxu0 0
    %4600 = vmatpush2.bf16.xpose.msra.mxu0 0
    %4601 = vmatprep.subr.bf16.mxu0 0
    %4602 = vmatpush2.bf16.xpose.msra.mxu0 0
    %4603 = vmatprep.mubr.bf16.mxu0 0
    %4604 = vmatmul.mubr.bf16.gmra.mxu0 %v4172
    %v4605 = vpop.f32.mrf.mxu0
    %v4606 = vadd.f32 0.0, %v4605
    %v4607 = vpop.f32.mrf.mxu0
    %v4608 = vpop.f32.mrf.mxu0
    %v4609 = vpop.f32.mrf.mxu0
    %4610 = vdwg.mxu0
    %vm4611 = vcmask 9216
    %v4612 = vsel %vm4611, %v4326, -inf
    %4613 = vmax.xlane.f32.xlu0 %v4612
    %v4614 = vpop.xlane.xlu0 %4613
    %v4615 = vsel %vm4611, %v4366, -inf
    %4616 = vmax.xlane.f32.xlu0 %v4615
    %v4617 = vpop.xlane.xlu0 %4616
    %v4618 = vsel %vm4611, %v4406, -inf
    %4619 = vmax.xlane.f32.xlu0 %v4618
    %v4620 = vpop.xlane.xlu0 %4619
    %v4621 = vsel %vm4611, %v4446, -inf
    %4622 = vmax.xlane.f32.xlu0 %v4621
    %v4623 = vpop.xlane.xlu0 %4622
    %v4624 = vsel %vm4611, %v4486, -inf
    %4625 = vmax.xlane.f32.xlu0 %v4624
    %v4626 = vpop.xlane.xlu0 %4625
    %v4627 = vsel %vm4611, %v4526, -inf
    %4628 = vmax.xlane.f32.xlu0 %v4627
    %v4629 = vpop.xlane.xlu0 %4628
    %v4630 = vsel %vm4611, %v4566, -inf
    %4631 = vmax.xlane.f32.xlu0 %v4630
    %v4632 = vpop.xlane.xlu0 %4631
    %v4633 = vsel %vm4611, %v4606, -inf
    %4634 = vmax.xlane.f32.xlu0 %v4633
    %v4635 = vpop.xlane.xlu0 %4634
    %v4636 = vsub.f32 %v4326, %v4614
    %v4637 = vsub.f32 %v4366, %v4617
    %v4638 = vsub.f32 %v4406, %v4620
    %v4639 = vsub.f32 %v4446, %v4623
    %v4640 = vsub.f32 %v4486, %v4626
    %v4641 = vsub.f32 %v4526, %v4629
    %v4642 = vsub.f32 %v4566, %v4632
    %v4643 = vsub.f32 %v4606, %v4635
    %v4644 = vmul.f32 %v4636, 1.442695
    %v4645 = vpow.pop %v4644
    %v4646 = vmul.f32 %v4637, 1.442695
    %v4647 = vpow.pop %v4646
    %v4648 = vmul.f32 %v4638, 1.442695
    %v4649 = vpow.pop %v4648
    %v4650 = vmul.f32 %v4639, 1.442695
    %v4651 = vpow.pop %v4650
    %v4652 = vmul.f32 %v4640, 1.442695
    %v4653 = vpow.pop %v4652
    %v4654 = vmul.f32 %v4641, 1.442695
    %v4655 = vpow.pop %v4654
    %v4656 = vmul.f32 %v4642, 1.442695
    %v4657 = vpow.pop %v4656
    %v4658 = vmul.f32 %v4643, 1.442695
    %v4659 = vpow.pop %v4658
    %v4660 = vsel %vm4611, %v4645, 0.0
    %4661 = vadd.xlane.f32.xlu0 %v4660
    %v4662 = vpop.xlane.xlu0 %4661
    %v4663 = vsel %vm4611, %v4647, 0.0
    %4664 = vadd.xlane.f32.xlu0 %v4663
    %v4665 = vpop.xlane.xlu0 %4664
    %v4666 = vsel %vm4611, %v4649, 0.0
    %4667 = vadd.xlane.f32.xlu0 %v4666
    %v4668 = vpop.xlane.xlu0 %4667
    %v4669 = vsel %vm4611, %v4651, 0.0
    %4670 = vadd.xlane.f32.xlu0 %v4669
    %v4671 = vpop.xlane.xlu0 %4670
    %v4672 = vsel %vm4611, %v4653, 0.0
    %4673 = vadd.xlane.f32.xlu0 %v4672
    %v4674 = vpop.xlane.xlu0 %4673
    %v4675 = vsel %vm4611, %v4655, 0.0
    %4676 = vadd.xlane.f32.xlu0 %v4675
    %v4677 = vpop.xlane.xlu0 %4676
    %v4678 = vsel %vm4611, %v4657, 0.0
    %4679 = vadd.xlane.f32.xlu0 %v4678
    %v4680 = vpop.xlane.xlu0 %4679
    %v4681 = vsel %vm4611, %v4659, 0.0
    %4682 = vadd.xlane.f32.xlu0 %v4681
    %v4683 = vpop.xlane.xlu0 %4682
    %v4684 = vrcp.pop %v4662
    %v4685 = vrcp.pop %v4665
    %v4686 = vrcp.pop %v4668
    %v4687 = vrcp.pop %v4671
    %v4688 = vrcp.pop %v4674
    %v4689 = vrcp.pop %v4677
    %v4690 = vrcp.pop %v4680
    %v4691 = vrcp.pop %v4683
    %v4692 = vmul.f32 %v4645, %v4684
    %v4693 = vmul.f32 %v4647, %v4685
    %v4694 = vmul.f32 %v4649, %v4686
    %v4695 = vmul.f32 %v4651, %v4687
    %v4696 = vmul.f32 %v4653, %v4688
    %v4697 = vmul.f32 %v4655, %v4689
    %v4698 = vmul.f32 %v4657, %v4690
    %v4699 = vmul.f32 %v4659, %v4691
    %v4700 = vpack.c.bf16 %v4692, %v4692
    %v4701 = vpack.c.bf16 %v4693, %v4693
    %v4702 = vpack.c.bf16 %v4694, %v4694
    %v4703 = vpack.c.bf16 %v4695, %v4695
    %v4704 = vpack.c.bf16 %v4696, %v4696
    %v4705 = vpack.c.bf16 %v4697, %v4697
    %v4706 = vpack.c.bf16 %v4698, %v4698
    %v4707 = vpack.c.bf16 %v4699, %v4699
    %vm4708 = vcmask 15360
    %v4710 = vsel %vm4708, %v4700, 0
    %vm4712 = vcmask 1040384
    %v4714 = vsel %vm4712, %v4265, 0
    %4716 = vmatprep.subr.bf16.mxu0 0
    %4717 = vmatpush1.bf16.msra.mxu0 0
    %4718 = vmatprep.subr.bf16.mxu0 0
    %4719 = vmatpush1.bf16.msra.mxu0 0
    %4720 = vmatprep.subr.bf16.mxu0 0
    %4721 = vmatpush1.bf16.msra.mxu0 0
    %4722 = vmatprep.subr.bf16.mxu0 0
    %4723 = vmatpush1.bf16.msra.mxu0 0
    %4724 = vmatprep.subr.bf16.mxu0 0
    %4725 = vmatpush1.bf16.msra.mxu0 0
    %4726 = vmatprep.subr.bf16.mxu0 0
    %4727 = vmatpush1.bf16.msra.mxu0 0
    %4728 = vmatprep.subr.bf16.mxu0 0
    %4729 = vmatpush1.bf16.msra.mxu0 0
    %4730 = vmatprep.subr.bf16.mxu0 0
    %4731 = vmatpush1.bf16.msra.mxu0 %v4714
    %4732 = vmatprep.subr.bf16.mxu0 0
    %4733 = vmatpush2.bf16.msra.mxu0 0
    %4734 = vmatprep.subr.bf16.mxu0 0
    %4735 = vmatpush2.bf16.msra.mxu0 0
    %4736 = vmatprep.subr.bf16.mxu0 0
    %4737 = vmatpush2.bf16.msra.mxu0 0
    %4738 = vmatprep.subr.bf16.mxu0 0
    %4739 = vmatpush2.bf16.msra.mxu0 0
    %4740 = vmatprep.subr.bf16.mxu0 0
    %4741 = vmatpush2.bf16.msra.mxu0 0
    %4742 = vmatprep.subr.bf16.mxu0 0
    %4743 = vmatpush2.bf16.msra.mxu0 0
    %4744 = vmatprep.subr.bf16.mxu0 0
    %4745 = vmatpush2.bf16.msra.mxu0 0
    %4746 = vmatprep.subr.bf16.mxu0 0
    %4747 = vmatpush2.bf16.msra.mxu0 0
    %4748 = vmatprep.mubr.bf16.mxu0 0
    %4749 = vmatmul.mubr.bf16.gmra.mxu0 %v4710
    %v4750 = vpop.f32.mrf.mxu0
    %v4751 = vadd.f32 0.0, %v4750
    %v4752 = vpop.f32.mrf.mxu0
    %v4753 = vpop.f32.mrf.mxu0
    %v4754 = vpop.f32.mrf.mxu0
    %4755 = vdwg.mxu0
    %v4757 = vsel %vm4708, %v4701, 0
    %v4760 = vsel %vm4712, %v4279, 0
    %4762 = vmatprep.subr.bf16.mxu0 0
    %4763 = vmatpush1.bf16.msra.mxu0 0
    %4764 = vmatprep.subr.bf16.mxu0 0
    %4765 = vmatpush1.bf16.msra.mxu0 0
    %4766 = vmatprep.subr.bf16.mxu0 0
    %4767 = vmatpush1.bf16.msra.mxu0 0
    %4768 = vmatprep.subr.bf16.mxu0 0
    %4769 = vmatpush1.bf16.msra.mxu0 0
    %4770 = vmatprep.subr.bf16.mxu0 0
    %4771 = vmatpush1.bf16.msra.mxu0 0
    %4772 = vmatprep.subr.bf16.mxu0 0
    %4773 = vmatpush1.bf16.msra.mxu0 0
    %4774 = vmatprep.subr.bf16.mxu0 0
    %4775 = vmatpush1.bf16.msra.mxu0 0
    %4776 = vmatprep.subr.bf16.mxu0 0
    %4777 = vmatpush1.bf16.msra.mxu0 %v4760
    %4778 = vmatprep.subr.bf16.mxu0 0
    %4779 = vmatpush2.bf16.msra.mxu0 0
    %4780 = vmatprep.subr.bf16.mxu0 0
    %4781 = vmatpush2.bf16.msra.mxu0 0
    %4782 = vmatprep.subr.bf16.mxu0 0
    %4783 = vmatpush2.bf16.msra.mxu0 0
    %4784 = vmatprep.subr.bf16.mxu0 0
    %4785 = vmatpush2.bf16.msra.mxu0 0
    %4786 = vmatprep.subr.bf16.mxu0 0
    %4787 = vmatpush2.bf16.msra.mxu0 0
    %4788 = vmatprep.subr.bf16.mxu0 0
    %4789 = vmatpush2.bf16.msra.mxu0 0
    %4790 = vmatprep.subr.bf16.mxu0 0
    %4791 = vmatpush2.bf16.msra.mxu0 0
    %4792 = vmatprep.subr.bf16.mxu0 0
    %4793 = vmatpush2.bf16.msra.mxu0 0
    %4794 = vmatprep.mubr.bf16.mxu0 0
    %4795 = vmatmul.mubr.bf16.gmra.mxu0 %v4757
    %v4796 = vpop.f32.mrf.mxu0
    %v4797 = vadd.f32 0.0, %v4796
    %v4798 = vpop.f32.mrf.mxu0
    %v4799 = vpop.f32.mrf.mxu0
    %v4800 = vpop.f32.mrf.mxu0
    %4801 = vdwg.mxu0
    %v4803 = vsel %vm4708, %v4702, 0
    %v4806 = vsel %vm4712, %v4287, 0
    %4808 = vmatprep.subr.bf16.mxu0 0
    %4809 = vmatpush1.bf16.msra.mxu0 0
    %4810 = vmatprep.subr.bf16.mxu0 0
    %4811 = vmatpush1.bf16.msra.mxu0 0
    %4812 = vmatprep.subr.bf16.mxu0 0
    %4813 = vmatpush1.bf16.msra.mxu0 0
    %4814 = vmatprep.subr.bf16.mxu0 0
    %4815 = vmatpush1.bf16.msra.mxu0 0
    %4816 = vmatprep.subr.bf16.mxu0 0
    %4817 = vmatpush1.bf16.msra.mxu0 0
    %4818 = vmatprep.subr.bf16.mxu0 0
    %4819 = vmatpush1.bf16.msra.mxu0 0
    %4820 = vmatprep.subr.bf16.mxu0 0
    %4821 = vmatpush1.bf16.msra.mxu0 0
    %4822 = vmatprep.subr.bf16.mxu0 0
    %4823 = vmatpush1.bf16.msra.mxu0 %v4806
    %4824 = vmatprep.subr.bf16.mxu0 0
    %4825 = vmatpush2.bf16.msra.mxu0 0
    %4826 = vmatprep.subr.bf16.mxu0 0
    %4827 = vmatpush2.bf16.msra.mxu0 0
    %4828 = vmatprep.subr.bf16.mxu0 0
    %4829 = vmatpush2.bf16.msra.mxu0 0
    %4830 = vmatprep.subr.bf16.mxu0 0
    %4831 = vmatpush2.bf16.msra.mxu0 0
    %4832 = vmatprep.subr.bf16.mxu0 0
    %4833 = vmatpush2.bf16.msra.mxu0 0
    %4834 = vmatprep.subr.bf16.mxu0 0
    %4835 = vmatpush2.bf16.msra.mxu0 0
    %4836 = vmatprep.subr.bf16.mxu0 0
    %4837 = vmatpush2.bf16.msra.mxu0 0
    %4838 = vmatprep.subr.bf16.mxu0 0
    %4839 = vmatpush2.bf16.msra.mxu0 0
    %4840 = vmatprep.mubr.bf16.mxu0 0
    %4841 = vmatmul.mubr.bf16.gmra.mxu0 %v4803
    %v4842 = vpop.f32.mrf.mxu0
    %v4843 = vadd.f32 0.0, %v4842
    %v4844 = vpop.f32.mrf.mxu0
    %v4845 = vpop.f32.mrf.mxu0
    %v4846 = vpop.f32.mrf.mxu0
    %4847 = vdwg.mxu0
    %v4849 = vsel %vm4708, %v4703, 0
    %v4852 = vsel %vm4712, %v4289, 0
    %4854 = vmatprep.subr.bf16.mxu0 0
    %4855 = vmatpush1.bf16.msra.mxu0 0
    %4856 = vmatprep.subr.bf16.mxu0 0
    %4857 = vmatpush1.bf16.msra.mxu0 0
    %4858 = vmatprep.subr.bf16.mxu0 0
    %4859 = vmatpush1.bf16.msra.mxu0 0
    %4860 = vmatprep.subr.bf16.mxu0 0
    %4861 = vmatpush1.bf16.msra.mxu0 0
    %4862 = vmatprep.subr.bf16.mxu0 0
    %4863 = vmatpush1.bf16.msra.mxu0 0
    %4864 = vmatprep.subr.bf16.mxu0 0
    %4865 = vmatpush1.bf16.msra.mxu0 0
    %4866 = vmatprep.subr.bf16.mxu0 0
    %4867 = vmatpush1.bf16.msra.mxu0 0
    %4868 = vmatprep.subr.bf16.mxu0 0
    %4869 = vmatpush1.bf16.msra.mxu0 %v4852
    %4870 = vmatprep.subr.bf16.mxu0 0
    %4871 = vmatpush2.bf16.msra.mxu0 0
    %4872 = vmatprep.subr.bf16.mxu0 0
    %4873 = vmatpush2.bf16.msra.mxu0 0
    %4874 = vmatprep.subr.bf16.mxu0 0
    %4875 = vmatpush2.bf16.msra.mxu0 0
    %4876 = vmatprep.subr.bf16.mxu0 0
    %4877 = vmatpush2.bf16.msra.mxu0 0
    %4878 = vmatprep.subr.bf16.mxu0 0
    %4879 = vmatpush2.bf16.msra.mxu0 0
    %4880 = vmatprep.subr.bf16.mxu0 0
    %4881 = vmatpush2.bf16.msra.mxu0 0
    %4882 = vmatprep.subr.bf16.mxu0 0
    %4883 = vmatpush2.bf16.msra.mxu0 0
    %4884 = vmatprep.subr.bf16.mxu0 0
    %4885 = vmatpush2.bf16.msra.mxu0 0
    %4886 = vmatprep.mubr.bf16.mxu0 0
    %4887 = vmatmul.mubr.bf16.gmra.mxu0 %v4849
    %v4888 = vpop.f32.mrf.mxu0
    %v4889 = vadd.f32 0.0, %v4888
    %v4890 = vpop.f32.mrf.mxu0
    %v4891 = vpop.f32.mrf.mxu0
    %v4892 = vpop.f32.mrf.mxu0
    %4893 = vdwg.mxu0
    %v4895 = vsel %vm4708, %v4704, 0
    %v4898 = vsel %vm4712, %v4272, 0
    %4900 = vmatprep.subr.bf16.mxu0 0
    %4901 = vmatpush1.bf16.msra.mxu0 0
    %4902 = vmatprep.subr.bf16.mxu0 0
    %4903 = vmatpush1.bf16.msra.mxu0 0
    %4904 = vmatprep.subr.bf16.mxu0 0
    %4905 = vmatpush1.bf16.msra.mxu0 0
    %4906 = vmatprep.subr.bf16.mxu0 0
    %4907 = vmatpush1.bf16.msra.mxu0 0
    %4908 = vmatprep.subr.bf16.mxu0 0
    %4909 = vmatpush1.bf16.msra.mxu0 0
    %4910 = vmatprep.subr.bf16.mxu0 0
    %4911 = vmatpush1.bf16.msra.mxu0 0
    %4912 = vmatprep.subr.bf16.mxu0 0
    %4913 = vmatpush1.bf16.msra.mxu0 0
    %4914 = vmatprep.subr.bf16.mxu0 0
    %4915 = vmatpush1.bf16.msra.mxu0 %v4898
    %4916 = vmatprep.subr.bf16.mxu0 0
    %4917 = vmatpush2.bf16.msra.mxu0 0
    %4918 = vmatprep.subr.bf16.mxu0 0
    %4919 = vmatpush2.bf16.msra.mxu0 0
    %4920 = vmatprep.subr.bf16.mxu0 0
    %4921 = vmatpush2.bf16.msra.mxu0 0
    %4922 = vmatprep.subr.bf16.mxu0 0
    %4923 = vmatpush2.bf16.msra.mxu0 0
    %4924 = vmatprep.subr.bf16.mxu0 0
    %4925 = vmatpush2.bf16.msra.mxu0 0
    %4926 = vmatprep.subr.bf16.mxu0 0
    %4927 = vmatpush2.bf16.msra.mxu0 0
    %4928 = vmatprep.subr.bf16.mxu0 0
    %4929 = vmatpush2.bf16.msra.mxu0 0
    %4930 = vmatprep.subr.bf16.mxu0 0
    %4931 = vmatpush2.bf16.msra.mxu0 0
    %4932 = vmatprep.mubr.bf16.mxu0 0
    %4933 = vmatmul.mubr.bf16.gmra.mxu0 %v4895
    %v4934 = vpop.f32.mrf.mxu0
    %v4935 = vadd.f32 0.0, %v4934
    %v4936 = vpop.f32.mrf.mxu0
    %v4937 = vpop.f32.mrf.mxu0
    %v4938 = vpop.f32.mrf.mxu0
    %4939 = vdwg.mxu0
    %v4941 = vsel %vm4708, %v4705, 0
    %v4944 = vsel %vm4712, %v4286, 0
    %4946 = vmatprep.subr.bf16.mxu0 0
    %4947 = vmatpush1.bf16.msra.mxu0 0
    %4948 = vmatprep.subr.bf16.mxu0 0
    %4949 = vmatpush1.bf16.msra.mxu0 0
    %4950 = vmatprep.subr.bf16.mxu0 0
    %4951 = vmatpush1.bf16.msra.mxu0 0
    %4952 = vmatprep.subr.bf16.mxu0 0
    %4953 = vmatpush1.bf16.msra.mxu0 0
    %4954 = vmatprep.subr.bf16.mxu0 0
    %4955 = vmatpush1.bf16.msra.mxu0 0
    %4956 = vmatprep.subr.bf16.mxu0 0
    %4957 = vmatpush1.bf16.msra.mxu0 0
    %4958 = vmatprep.subr.bf16.mxu0 0
    %4959 = vmatpush1.bf16.msra.mxu0 0
    %4960 = vmatprep.subr.bf16.mxu0 0
    %4961 = vmatpush1.bf16.msra.mxu0 %v4944
    %4962 = vmatprep.subr.bf16.mxu0 0
    %4963 = vmatpush2.bf16.msra.mxu0 0
    %4964 = vmatprep.subr.bf16.mxu0 0
    %4965 = vmatpush2.bf16.msra.mxu0 0
    %4966 = vmatprep.subr.bf16.mxu0 0
    %4967 = vmatpush2.bf16.msra.mxu0 0
    %4968 = vmatprep.subr.bf16.mxu0 0
    %4969 = vmatpush2.bf16.msra.mxu0 0
    %4970 = vmatprep.subr.bf16.mxu0 0
    %4971 = vmatpush2.bf16.msra.mxu0 0
    %4972 = vmatprep.subr.bf16.mxu0 0
    %4973 = vmatpush2.bf16.msra.mxu0 0
    %4974 = vmatprep.subr.bf16.mxu0 0
    %4975 = vmatpush2.bf16.msra.mxu0 0
    %4976 = vmatprep.subr.bf16.mxu0 0
    %4977 = vmatpush2.bf16.msra.mxu0 0
    %4978 = vmatprep.mubr.bf16.mxu0 0
    %4979 = vmatmul.mubr.bf16.gmra.mxu0 %v4941
    %v4980 = vpop.f32.mrf.mxu0
    %v4981 = vadd.f32 0.0, %v4980
    %v4982 = vpop.f32.mrf.mxu0
    %v4983 = vpop.f32.mrf.mxu0
    %v4984 = vpop.f32.mrf.mxu0
    %4985 = vdwg.mxu0
    %v4987 = vsel %vm4708, %v4706, 0
    %v4990 = vsel %vm4712, %v4288, 0
    %4992 = vmatprep.subr.bf16.mxu0 0
    %4993 = vmatpush1.bf16.msra.mxu0 0
    %4994 = vmatprep.subr.bf16.mxu0 0
    %4995 = vmatpush1.bf16.msra.mxu0 0
    %4996 = vmatprep.subr.bf16.mxu0 0
    %4997 = vmatpush1.bf16.msra.mxu0 0
    %4998 = vmatprep.subr.bf16.mxu0 0
    %4999 = vmatpush1.bf16.msra.mxu0 0
    %5000 = vmatprep.subr.bf16.mxu0 0
    %5001 = vmatpush1.bf16.msra.mxu0 0
    %5002 = vmatprep.subr.bf16.mxu0 0
    %5003 = vmatpush1.bf16.msra.mxu0 0
    %5004 = vmatprep.subr.bf16.mxu0 0
    %5005 = vmatpush1.bf16.msra.mxu0 0
    %5006 = vmatprep.subr.bf16.mxu0 0
    %5007 = vmatpush1.bf16.msra.mxu0 %v4990
    %5008 = vmatprep.subr.bf16.mxu0 0
    %5009 = vmatpush2.bf16.msra.mxu0 0
    %5010 = vmatprep.subr.bf16.mxu0 0
    %5011 = vmatpush2.bf16.msra.mxu0 0
    %5012 = vmatprep.subr.bf16.mxu0 0
    %5013 = vmatpush2.bf16.msra.mxu0 0
    %5014 = vmatprep.subr.bf16.mxu0 0
    %5015 = vmatpush2.bf16.msra.mxu0 0
    %5016 = vmatprep.subr.bf16.mxu0 0
    %5017 = vmatpush2.bf16.msra.mxu0 0
    %5018 = vmatprep.subr.bf16.mxu0 0
    %5019 = vmatpush2.bf16.msra.mxu0 0
    %5020 = vmatprep.subr.bf16.mxu0 0
    %5021 = vmatpush2.bf16.msra.mxu0 0
    %5022 = vmatprep.subr.bf16.mxu0 0
    %5023 = vmatpush2.bf16.msra.mxu0 0
    %5024 = vmatprep.mubr.bf16.mxu0 0
    %5025 = vmatmul.mubr.bf16.gmra.mxu0 %v4987
    %v5026 = vpop.f32.mrf.mxu0
    %v5027 = vadd.f32 0.0, %v5026
    %v5028 = vpop.f32.mrf.mxu0
    %v5029 = vpop.f32.mrf.mxu0
    %v5030 = vpop.f32.mrf.mxu0
    %5031 = vdwg.mxu0
    %v5033 = vsel %vm4708, %v4707, 0
    %v5036 = vsel %vm4712, %v4290, 0
    %5038 = vmatprep.subr.bf16.mxu0 0
    %5039 = vmatpush1.bf16.msra.mxu0 0
    %5040 = vmatprep.subr.bf16.mxu0 0
    %5041 = vmatpush1.bf16.msra.mxu0 0
    %5042 = vmatprep.subr.bf16.mxu0 0
    %5043 = vmatpush1.bf16.msra.mxu0 0
    %5044 = vmatprep.subr.bf16.mxu0 0
    %5045 = vmatpush1.bf16.msra.mxu0 0
    %5046 = vmatprep.subr.bf16.mxu0 0
    %5047 = vmatpush1.bf16.msra.mxu0 0
    %5048 = vmatprep.subr.bf16.mxu0 0
    %5049 = vmatpush1.bf16.msra.mxu0 0
    %5050 = vmatprep.subr.bf16.mxu0 0
    %5051 = vmatpush1.bf16.msra.mxu0 0
    %5052 = vmatprep.subr.bf16.mxu0 0
    %5053 = vmatpush1.bf16.msra.mxu0 %v5036
    %5054 = vmatprep.subr.bf16.mxu0 0
    %5055 = vmatpush2.bf16.msra.mxu0 0
    %5056 = vmatprep.subr.bf16.mxu0 0
    %5057 = vmatpush2.bf16.msra.mxu0 0
    %5058 = vmatprep.subr.bf16.mxu0 0
    %5059 = vmatpush2.bf16.msra.mxu0 0
    %5060 = vmatprep.subr.bf16.mxu0 0
    %5061 = vmatpush2.bf16.msra.mxu0 0
    %5062 = vmatprep.subr.bf16.mxu0 0
    %5063 = vmatpush2.bf16.msra.mxu0 0
    %5064 = vmatprep.subr.bf16.mxu0 0
    %5065 = vmatpush2.bf16.msra.mxu0 0
    %5066 = vmatprep.subr.bf16.mxu0 0
    %5067 = vmatpush2.bf16.msra.mxu0 0
    %5068 = vmatprep.subr.bf16.mxu0 0
    %5069 = vmatpush2.bf16.msra.mxu0 0
    %5070 = vmatprep.mubr.bf16.mxu0 0
    %5071 = vmatmul.mubr.bf16.gmra.mxu0 %v5033
    %v5072 = vpop.f32.mrf.mxu0
    %v5073 = vadd.f32 0.0, %v5072
    %v5074 = vpop.f32.mrf.mxu0
    %v5075 = vpop.f32.mrf.mxu0
    %v5076 = vpop.f32.mrf.mxu0
    %5077 = vdwg.mxu0
    %v5086 = vcombine.low %v4751, %v4797
    %v5087 = vcombine.low %v4843, %v4889
    %v5089 = vunpack.c.l.s4 1983009808
    %v5090 = vunpack.c.0.s8 %v5089
    %v5091 = vlaneseq
    %v5092 = vshrl.u32 %v5091, 7
    %v5093 = vsub.s32 %v5090, %v5092
    %v5094 = vrot.slane %v5086, %v5093
    %v5096 = vunpack.c.l.s4 1983009808
    %v5097 = vunpack.c.0.s8 %v5096
    %v5098 = vlaneseq
    %v5099 = vshrl.u32 %v5098, 7
    %v5100 = vsub.s32 %v5097, %v5099
    %v5101 = vrot.slane %v5087, %v5100
    %v5102 = vcombine.low %v5094, %v5101
    %v5103 = vcombine.low %v4935, %v4981
    %v5104 = vcombine.low %v5027, %v5073
    %v5106 = vunpack.c.l.s4 1983009808
    %v5107 = vunpack.c.0.s8 %v5106
    %v5108 = vlaneseq
    %v5109 = vshrl.u32 %v5108, 7
    %v5110 = vsub.s32 %v5107, %v5109
    %v5111 = vrot.slane %v5103, %v5110
    %v5113 = vunpack.c.l.s4 1983009808
    %v5114 = vunpack.c.0.s8 %v5113
    %v5115 = vlaneseq
    %v5116 = vshrl.u32 %v5115, 7
    %v5117 = vsub.s32 %v5114, %v5116
    %v5118 = vrot.slane %v5104, %v5117
    %v5119 = vcombine.low %v5111, %v5118
    %v5122 = vpack.c.bf16 %v5119, %v5102
    %v5123 = vld [vmem:[#allocation18] sm:$0xf]
    %v5124 = vld [vmem:[#allocation18 + $0x4] sm:$0xf]
    %v5125 = vld [vmem:[#allocation18 + $0x8] sm:$0xf]
    %v5126 = vld [vmem:[#allocation18 + $0xc] sm:$0xf]
    %v5127 = vld [vmem:[#allocation18 + $0x10] sm:$0xf]
    %v5128 = vld [vmem:[#allocation18 + $0x14] sm:$0xf]
    %v5129 = vld [vmem:[#allocation18 + $0x18] sm:$0xf]
    %v5130 = vld [vmem:[#allocation18 + $0x1c] sm:$0xf]
    %v5131 = vld [vmem:[#allocation18 + $0x20] sm:$0xf]
    %v5132 = vld [vmem:[#allocation18 + $0x24] sm:$0xf]
    %v5133 = vld [vmem:[#allocation18 + $0x28] sm:$0xf]
    %v5134 = vld [vmem:[#allocation18 + $0x2c] sm:$0xf]
    %v5135 = vld [vmem:[#allocation18 + $0x30] sm:$0xf]
    %v5136 = vld [vmem:[#allocation18 + $0x34] sm:$0xf]
    %v5137 = vld [vmem:[#allocation18 + $0x38] sm:$0xf]
    %v5138 = vld [vmem:[#allocation18 + $0x3c] sm:$0xf]
    %v5139 = vld [vmem:[%s18] sm:$0x1]
    %v5141 = vlaneseq
    %v5142 = vshrl.u32 %v5141, 7
    %v5143 = vsub.s32 0, %v5142
    %v5144 = vrot.slane %v5139, %v5143
    %v5162 = vunpack.c.l.b16 %v5123
    %v5163 = vunpack.c.l.b16 %v5124
    %v5164 = vunpack.c.l.b16 %v5125
    %v5165 = vunpack.c.l.b16 %v5126
    %v5166 = vunpack.c.l.b16 %v5127
    %v5167 = vunpack.c.l.b16 %v5128
    %v5168 = vunpack.c.l.b16 %v5129
    %v5169 = vunpack.c.l.b16 %v5130
    %v5170 = vunpack.c.l.b16 %v5131
    %v5171 = vunpack.c.l.b16 %v5132
    %v5172 = vunpack.c.l.b16 %v5133
    %v5173 = vunpack.c.l.b16 %v5134
    %v5174 = vunpack.c.l.b16 %v5135
    %v5175 = vunpack.c.l.b16 %v5136
    %v5176 = vunpack.c.l.b16 %v5137
    %v5177 = vunpack.c.l.b16 %v5138
    %v5178 = vpack.c.b16 %v5163, %v5162
    %v5179 = vpack.c.b16 %v5165, %v5164
    %v5180 = vpack.c.b16 %v5167, %v5166
    %v5181 = vpack.c.b16 %v5169, %v5168
    %v5182 = vpack.c.b16 %v5171, %v5170
    %v5183 = vpack.c.b16 %v5173, %v5172
    %v5184 = vpack.c.b16 %v5175, %v5174
    %v5185 = vpack.c.b16 %v5177, %v5176
    %5194 = vmatprep.subr.bf16.mxu0 0
    %5195 = vmatpush1.bf16.msra.mxu0 %v5185
    %5196 = vmatprep.subr.bf16.mxu0 0
    %5197 = vmatpush1.bf16.msra.mxu0 %v5184
    %5198 = vmatprep.subr.bf16.mxu0 0
    %5199 = vmatpush1.bf16.msra.mxu0 %v5183
    %5200 = vmatprep.subr.bf16.mxu0 0
    %5201 = vmatpush1.bf16.msra.mxu0 %v5182
    %5202 = vmatprep.subr.bf16.mxu0 0
    %5203 = vmatpush1.bf16.msra.mxu0 %v5181
    %5204 = vmatprep.subr.bf16.mxu0 0
    %5205 = vmatpush1.bf16.msra.mxu0 %v5180
    %5206 = vmatprep.subr.bf16.mxu0 0
    %5207 = vmatpush1.bf16.msra.mxu0 %v5179
    %5208 = vmatprep.subr.bf16.mxu0 0
    %5209 = vmatpush1.bf16.msra.mxu0 %v5178
    %5210 = vmatprep.subr.bf16.mxu0 0
    %5211 = vmatpush2.bf16.msra.mxu0 0
    %5212 = vmatprep.subr.bf16.mxu0 0
    %5213 = vmatpush2.bf16.msra.mxu0 0
    %5214 = vmatprep.subr.bf16.mxu0 0
    %5215 = vmatpush2.bf16.msra.mxu0 0
    %5216 = vmatprep.subr.bf16.mxu0 0
    %5217 = vmatpush2.bf16.msra.mxu0 0
    %5218 = vmatprep.subr.bf16.mxu0 0
    %5219 = vmatpush2.bf16.msra.mxu0 0
    %5220 = vmatprep.subr.bf16.mxu0 0
    %5221 = vmatpush2.bf16.msra.mxu0 0
    %5222 = vmatprep.subr.bf16.mxu0 0
    %5223 = vmatpush2.bf16.msra.mxu0 0
    %5224 = vmatprep.subr.bf16.mxu0 0
    %5225 = vmatpush2.bf16.msra.mxu0 0
    %5226 = vmatprep.mubr.bf16.mxu0 0
    %5227 = vmatmul.mubr.bf16.gmra.mxu0 %v5122
    %v5228 = vpop.f32.mrf.mxu0
    %v5229 = vadd.f32 %v5144, %v5228
    %v5230 = vpop.f32.mrf.mxu0
    %v5231 = vpop.f32.mrf.mxu0
    %v5232 = vadd.f32 %v5144, %v5231
    %v5233 = vpop.f32.mrf.mxu0
    %5234 = vdwg.mxu0
    %v5235 = vpack.c.bf16 %v5232, %v5229
    %v5236 = vld [vmem:[#allocation20] sm:$0xf]
    %v5237 = vld [vmem:[#allocation20 + $0x4] sm:$0xf]
    %v5238 = vld [vmem:[#allocation20 + $0x8] sm:$0xf]
    %v5239 = vld [vmem:[#allocation20 + $0xc] sm:$0xf]
    %v5240 = vld [vmem:[#allocation20 + $0x10] sm:$0xf]
    %v5241 = vld [vmem:[#allocation20 + $0x14] sm:$0xf]
    %v5242 = vld [vmem:[#allocation20 + $0x18] sm:$0xf]
    %v5243 = vld [vmem:[#allocation20 + $0x1c] sm:$0xf]
    %v5244 = vld [vmem:[#allocation20 + $0x20] sm:$0xf]
    %v5245 = vld [vmem:[#allocation20 + $0x24] sm:$0xf]
    %v5246 = vld [vmem:[#allocation20 + $0x28] sm:$0xf]
    %v5247 = vld [vmem:[#allocation20 + $0x2c] sm:$0xf]
    %v5248 = vld [vmem:[#allocation20 + $0x30] sm:$0xf]
    %v5249 = vld [vmem:[#allocation20 + $0x34] sm:$0xf]
    %v5250 = vld [vmem:[#allocation20 + $0x38] sm:$0xf]
    %v5251 = vld [vmem:[#allocation20 + $0x3c] sm:$0xf]
    %v5252 = vld [vmem:[#allocation21] sm:$0x1]
    %v5254 = vlaneseq
    %v5255 = vshrl.u32 %v5254, 7
    %v5256 = vsub.s32 0, %v5255
    %v5257 = vrot.slane %v5252, %v5256
    %v5275 = vunpack.c.l.b16 %v5236
    %v5276 = vunpack.c.l.b16 %v5237
    %v5277 = vunpack.c.l.b16 %v5238
    %v5278 = vunpack.c.l.b16 %v5239
    %v5279 = vunpack.c.l.b16 %v5240
    %v5280 = vunpack.c.l.b16 %v5241
    %v5281 = vunpack.c.l.b16 %v5242
    %v5282 = vunpack.c.l.b16 %v5243
    %v5283 = vunpack.c.l.b16 %v5244
    %v5284 = vunpack.c.l.b16 %v5245
    %v5285 = vunpack.c.l.b16 %v5246
    %v5286 = vunpack.c.l.b16 %v5247
    %v5287 = vunpack.c.l.b16 %v5248
    %v5288 = vunpack.c.l.b16 %v5249
    %v5289 = vunpack.c.l.b16 %v5250
    %v5290 = vunpack.c.l.b16 %v5251
    %v5291 = vpack.c.b16 %v5276, %v5275
    %v5292 = vpack.c.b16 %v5278, %v5277
    %v5293 = vpack.c.b16 %v5280, %v5279
    %v5294 = vpack.c.b16 %v5282, %v5281
    %v5295 = vpack.c.b16 %v5284, %v5283
    %v5296 = vpack.c.b16 %v5286, %v5285
    %v5297 = vpack.c.b16 %v5288, %v5287
    %v5298 = vpack.c.b16 %v5290, %v5289
    %5307 = vmatprep.subr.bf16.mxu0 0
    %5308 = vmatpush1.bf16.msra.mxu0 %v5298
    %5309 = vmatprep.subr.bf16.mxu0 0
    %5310 = vmatpush1.bf16.msra.mxu0 %v5297
    %5311 = vmatprep.subr.bf16.mxu0 0
    %5312 = vmatpush1.bf16.msra.mxu0 %v5296
    %5313 = vmatprep.subr.bf16.mxu0 0
    %5314 = vmatpush1.bf16.msra.mxu0 %v5295
    %5315 = vmatprep.subr.bf16.mxu0 0
    %5316 = vmatpush1.bf16.msra.mxu0 %v5294
    %5317 = vmatprep.subr.bf16.mxu0 0
    %5318 = vmatpush1.bf16.msra.mxu0 %v5293
    %5319 = vmatprep.subr.bf16.mxu0 0
    %5320 = vmatpush1.bf16.msra.mxu0 %v5292
    %5321 = vmatprep.subr.bf16.mxu0 0
    %5322 = vmatpush1.bf16.msra.mxu0 %v5291
    %5323 = vmatprep.subr.bf16.mxu0 0
    %5324 = vmatpush2.bf16.msra.mxu0 0
    %5325 = vmatprep.subr.bf16.mxu0 0
    %5326 = vmatpush2.bf16.msra.mxu0 0
    %5327 = vmatprep.subr.bf16.mxu0 0
    %5328 = vmatpush2.bf16.msra.mxu0 0
    %5329 = vmatprep.subr.bf16.mxu0 0
    %5330 = vmatpush2.bf16.msra.mxu0 0
    %5331 = vmatprep.subr.bf16.mxu0 0
    %5332 = vmatpush2.bf16.msra.mxu0 0
    %5333 = vmatprep.subr.bf16.mxu0 0
    %5334 = vmatpush2.bf16.msra.mxu0 0
    %5335 = vmatprep.subr.bf16.mxu0 0
    %5336 = vmatpush2.bf16.msra.mxu0 0
    %5337 = vmatprep.subr.bf16.mxu0 0
    %5338 = vmatpush2.bf16.msra.mxu0 0
    %5339 = vmatprep.mubr.bf16.mxu0 0
    %5340 = vmatmul.mubr.bf16.gmra.mxu0 %v5235
    %v5341 = vpop.f32.mrf.mxu0
    %v5342 = vadd.f32 %v5257, %v5341
    %v5343 = vpop.f32.mrf.mxu0
    %v5344 = vpop.f32.mrf.mxu0
    %v5345 = vadd.f32 %v5257, %v5344
    %v5346 = vpop.f32.mrf.mxu0
    %5347 = vdwg.mxu0
    %vm5348 = vcmp.gt.f32.partialorder %v5342, 0.0
    %vm5349 = vcmp.gt.f32.partialorder %v5345, 0.0
    %v5350 = vmul.f32 %v5342, 0.01
    %v5351 = vmul.f32 %v5345, 0.01
    %v5352 = vsel %vm5348, %v5342, %v5350
    %v5353 = vsel %vm5349, %v5345, %v5351
    %v5356 = vcombine.high %v5352, %v5352
    %v5358 = vunpack.c.l.s4 1983009808
    %v5359 = vunpack.c.0.s8 %v5358
    %v5360 = vlaneseq
    %v5361 = vshrl.u32 %v5360, 7
    %v5362 = vsub.s32 %v5359, %v5361
    %v5363 = vrot.slane %v5352, %v5362
    %v5365 = vunpack.c.l.s4 1983009808
    %v5366 = vunpack.c.0.s8 %v5365
    %v5367 = vlaneseq
    %v5368 = vshrl.u32 %v5367, 7
    %v5369 = vsub.s32 %v5366, %v5368
    %v5370 = vrot.slane %v5356, %v5369
    %v5371 = vcombine.high %v5363, %v5363
    %v5372 = vcombine.high %v5370, %v5370
    %v5373 = vcombine.high %v5353, %v5353
    %v5375 = vunpack.c.l.s4 1983009808
    %v5376 = vunpack.c.0.s8 %v5375
    %v5377 = vlaneseq
    %v5378 = vshrl.u32 %v5377, 7
    %v5379 = vsub.s32 %v5376, %v5378
    %v5380 = vrot.slane %v5353, %v5379
    %v5382 = vunpack.c.l.s4 1983009808
    %v5383 = vunpack.c.0.s8 %v5382
    %v5384 = vlaneseq
    %v5385 = vshrl.u32 %v5384, 7
    %v5386 = vsub.s32 %v5383, %v5385
    %v5387 = vrot.slane %v5373, %v5386
    %v5388 = vcombine.high %v5380, %v5380
    %v5389 = vcombine.high %v5387, %v5387
    %5398 = vst [vmem:[#allocation23] sm:$0x3] %v5363
    %5399 = vst [vmem:[#allocation23 + $0x2] sm:$0x3] %v5371
    %5400 = vst [vmem:[#allocation23 + $0x4] sm:$0x3] %v5370
    %5401 = vst [vmem:[#allocation23 + $0x6] sm:$0x3] %v5372
    %5402 = vst [vmem:[#allocation23 + $0x8] sm:$0x3] %v5380
    %5403 = vst [vmem:[#allocation23 + $0xa] sm:$0x3] %v5388
    %5404 = vst [vmem:[#allocation23 + $0xc] sm:$0x3] %v5387
    %5405 = vst [vmem:[#allocation23 + $0xe] sm:$0x3] %v5389
    // Predicated region
    $region134: #{tpu_custom_call.1} parent=1 // pred_check
      _
    $region135: #{tpu_custom_call.1} parent=1 // pred_check_branch
      %5407 = sbr.rel (0) target = $region137
    $region136: #{tpu_custom_call.1} parent=1 // pred_region
      %s5409 = ssub.s32 256, 256
      %5410 = vsyncadd [#allocation5], %s5409
      %s5411 = sshll.u32 [#allocation23], 4
      %s5412 = int_to_ptr.vmem [resolvable:$true] %s5411
      %5417 = dma.vmem_to_hbm [thread:$0]  %s5412, 256, %s21, [#allocation5], 32, 32, 2
    $region137: #{tpu_custom_call.1} parent=1 // pred_fallthru
      _
    // Predicated region
    $region138: #{tpu_custom_call.1} parent=1 // pred_check
      _
    $region139: #{tpu_custom_call.1} parent=1 // pred_check_branch
      %5419 = sbr.rel (0) target = $region141
    $region140: #{tpu_custom_call.1} parent=1 // pred_region
      %s5421 = ssub.s32 64, 64
      %5422 = vsyncadd [#allocation25], %s5421
      %s5423 = sshll.u32 [#allocation24], 4
      %s5424 = int_to_ptr.vmem [resolvable:$true] %s5423
      %5429 = dma.vmem_to_hbm [thread:$0]  %s5424, 64, %s22, [#allocation25], 32, 32, 2
    $region141: #{tpu_custom_call.1} parent=1 // pred_fallthru
      _
    // Predicated region
    $region142: #{tpu_custom_call.1} parent=1 // pred_check
      _
    $region143: #{tpu_custom_call.1} parent=1 // pred_check_branch
      %5431 = sbr.rel (0) target = $region145
    $region144: #{tpu_custom_call.1} parent=1 // pred_region
      %s5433 = ssub.s32 64, 64
      %5434 = vsyncadd [#allocation25], %s5433
      %s5435 = sshll.u32 [#allocation26], 4
      %s5436 = int_to_ptr.vmem [resolvable:$true] %s5435
      %5441 = dma.vmem_to_hbm [thread:$0]  %s5436, 64, %s23, [#allocation25], 32, 32, 2
    $region145: #{tpu_custom_call.1} parent=1 // pred_fallthru
      _
    // Predicated region
    $region146: #{tpu_custom_call.1} parent=1 // pred_check
      _
    $region147: #{tpu_custom_call.1} parent=1 // pred_check_branch
      %5443 = sbr.rel (0) target = $region149
    $region148: #{tpu_custom_call.1} parent=1 // pred_region
      %5444 = dma.done [#allocation5], 256
    $region149: #{tpu_custom_call.1} parent=1 // pred_fallthru
      _
    // Predicated region
    $region150: #{tpu_custom_call.1} parent=1 // pred_check
      _
    $region151: #{tpu_custom_call.1} parent=1 // pred_check_branch
      %5446 = sbr.rel (0) target = $region153
    $region152: #{tpu_custom_call.1} parent=1 // pred_region
      %5447 = dma.done [#allocation25], 64
    $region153: #{tpu_custom_call.1} parent=1 // pred_fallthru
      _
    // Predicated region
    $region154: #{tpu_custom_call.1} parent=1 // pred_check
      _
    $region155: #{tpu_custom_call.1} parent=1 // pred_check_branch
      %5449 = sbr.rel (0) target = $region157
    $region156: #{tpu_custom_call.1} parent=1 // pred_region
      %5450 = dma.done [#allocation25], 64
    $region157: #{tpu_custom_call.1} parent=1 // pred_fallthru
      _
    %5451 = vsyncpa [#allocation4], 1
    %5452 = vsyncpa [#allocation7], 1
    %5453 = vsyncpa [#allocation10], 1
    %5454 = vsyncpa [#allocation13], 1
    %5455 = vsyncpa [#allocation16], 1
    %5456 = vsyncpa [#allocation19], 1
    %5457 = vsyncpa [#allocation22], 1
    %5458 = vsyncpa [#allocation5], 1
    %5459 = vsyncpa [#allocation25], 1

</llo_original>
